<compile_context>
chip_gen: v6e
topology: v6e:2x2x1
jax: 0.10.0
libtpu: 0.0.40
codegen_flags: <defaults>
</compile_context>

<pallas_src>
import functools
import math

import jax
import jax.numpy as jnp
from jax.experimental import pallas as pl
from jax.experimental.pallas import tpu as pltpu

# ---------------- model hyperparameters (small, consistent with module) -------
N_LAYERS = 2
N_HEAD = 2
D_MODEL = 32
HD = D_MODEL // N_HEAD          # 16
D_FF = 4 * D_MODEL              # 128
N_VOCAB = 64
V_PAD = 128                     # lane-dense padded vocab width for the final store
CONTEXT_SIZE = 8
BATCH = 2
SEQ = 8
ROWS = BATCH * SEQ              # 16
LN_EPS = 1e-5
GELU_C = math.sqrt(2.0 / math.pi)
NEG_INF = -1e30
BLOB_W = 128

# ---------------- packed-blob row offsets (shared by packer & kernel) ---------
# bf16 "MXU weight" blob, width 128 (all offsets / row-counts multiples of 16)
W_VOCAB = 0                                     # (N_VOCAB, D)
W_LAYER0 = W_VOCAB + N_VOCAB                    # 64
W_Q = 0 * D_MODEL                               # + h*D : (D, HD) per head (scale folded)
W_K = 2 * D_MODEL                               # + h*D : (D, HD) per head
W_V = 4 * D_MODEL                               # + h*D : (D, HD) per head
W_O = 6 * D_MODEL                               # (D, D)
W_1 = 7 * D_MODEL                               # (D, D_FF)
W_2 = 8 * D_MODEL                               # (D_FF, D)
W_LSTRIDE = 8 * D_MODEL + D_FF                  # 384
W_HEAD = W_LAYER0 + N_LAYERS * W_LSTRIDE        # 832: (D, V_PAD) vocab head
W_ROWS = W_HEAD + D_MODEL                       # 864

# f32 "vector" blob, width 128
V_POS = 0                                       # (ROWS, D) batch-tiled positional table
V_MASK = V_POS + ROWS                           # (SEQ, SEQ) additive causal bias
V_LAYER0 = V_MASK + SEQ                         # 24
# per-layer rows: 0 ln1w | 1 ln1b | 2+h bq_h | 4+h bk_h | 6+h bv_h | 8 bo
#                 | 9 ln2w | 10 ln2b | 11 b1 | 12 b2 | 13-15 pad
V_LSTRIDE = 16
V_FINAL = V_LAYER0 + N_LAYERS * V_LSTRIDE       # 56: 0 lnfw | 1 lnfb | 2 bv_head
V_ROWS = V_FINAL + 8                            # 64


# ------------------------------ kernel helpers --------------------------------
def _layernorm(x, w, b):
    mu = jnp.mean(x, axis=-1, keepdims=True)
    var = jnp.mean((x - mu) ** 2, axis=-1, keepdims=True)
    return (x - mu) * jax.lax.rsqrt(var + LN_EPS) * w + b


def _gelu(x):  # matches the module's tanh-approximation GELU exactly
    return x * 0.5 * (1.0 + jnp.tanh(GELU_C * (x + 0.044715 * x * x * x)))


def _softmax_last(x):
    m = jnp.max(x, axis=-1, keepdims=True)
    e = jnp.exp(x - m)
    return e * pl.reciprocal(jnp.sum(e, axis=-1, keepdims=True), approx=True)


# --------------------------- fused transformer kernel -------------------------
def transformer_kernel(tok_ref, wb_ref, vb_ref, o_ref, *,
                       n_layers, n_head, batch, seq):
    f32, bf16 = jnp.float32, jnp.bfloat16
    d, hd, ff = D_MODEL, HD, D_FF
    rows = batch * seq

    def wmat(off, nrows, ncols):        # bf16 MXU weight block (lane offset 0)
        return wb_ref[off:off + nrows, 0:ncols]

    def vrow(off, ncols):               # single f32 vector row, shape (1, ncols)
        return vb_ref[off:off + 1, 0:ncols]

    # ---- embedding lookup as a one-hot matmul + pre-tiled positional table ----
    tok = tok_ref[...]                                              # (rows, 1) int32
    ids = jax.lax.broadcasted_iota(jnp.int32, (rows, N_VOCAB), 1)
    onehot = (tok == ids).astype(f32).astype(bf16)                  # (rows, V)
    x = jnp.dot(onehot, wmat(W_VOCAB, N_VOCAB, d), preferred_element_type=f32)
    x = x + vb_ref[V_POS:V_POS + rows, 0:d]                         # (rows, D) f32
    # TODO(synk): embedding dropout (p=0.1) omitted — eval-mode identity.

    # additive causal bias (0 / -1e30), hoisted & broadcast once for all layers
    mask = jnp.broadcast_to(vb_ref[V_MASK:V_MASK + seq, 0:seq][None],
                            (batch, seq, seq))

    for l in range(n_layers):
        wl = W_LAYER0 + l * W_LSTRIDE
        vl = V_LAYER0 + l * V_LSTRIDE

        # ---- module wiring: x = layer_norm1(x); x = x + attention(x) ----
        x = _layernorm(x, vrow(vl + 0, d), vrow(vl + 1, d))
        xb = x.astype(bf16)
        attn = jnp.zeros((rows, d), f32)
        for h in range(n_head):
            # per-head projections: weights pre-split per head at pack time, so
            # every load/result is lane-offset-0; 1/sqrt(hd) pre-folded into Wq/bq.
            q = jnp.dot(xb, wmat(wl + W_Q + h * d, d, hd),
                        preferred_element_type=f32) + vrow(vl + 2 + h, hd)
            k = jnp.dot(xb, wmat(wl + W_K + h * d, d, hd),
                        preferred_element_type=f32) + vrow(vl + 4 + h, hd)
            v = jnp.dot(xb, wmat(wl + W_V + h * d, d, hd),
                        preferred_element_type=f32) + vrow(vl + 6 + h, hd)
            q3 = q.reshape(batch, seq, hd).astype(bf16)
            k3 = k.reshape(batch, seq, hd).astype(bf16)
            v3 = v.reshape(batch, seq, hd).astype(bf16)
            att = jnp.einsum('bqd,bkd->bqk', q3, k3,
                             preferred_element_type=f32) + mask
            att = _softmax_last(att)
            # TODO(synk): attention dropout (p=0.1) omitted — eval-mode identity.
            o3 = jnp.einsum('bqk,bkd->bqd', att.astype(bf16), v3,
                            preferred_element_type=f32)
            # concat(heads) @ Wo  ==  sum_h head_h @ Wo[h*hd:(h+1)*hd, :]
            # (row blocks of Wo are sublane-aligned -> no lane-axis concat)
            attn = attn + jnp.dot(o3.reshape(rows, hd).astype(bf16),
                                  wmat(wl + W_O + h * hd, hd, d),
                                  preferred_element_type=f32)
        # TODO(synk): residual dropout (p=0.1) omitted — eval-mode identity.
        x = x + attn + vrow(vl + 8, d)

        # ---- x = layer_norm2(x); x = x + mlp(x) ----
        x = _layernorm(x, vrow(vl + 9, d), vrow(vl + 10, d))
        m = jnp.dot(x.astype(bf16), wmat(wl + W_1, d, ff),
                    preferred_element_type=f32) + vrow(vl + 11, ff)
        m = _gelu(m)
        m = jnp.dot(m.astype(bf16), wmat(wl + W_2, ff, d),
                    preferred_element_type=f32) + vrow(vl + 12, d)
        # TODO(synk): MLP dropout (p=0.1) omitted — eval-mode identity.
        x = x + m

    # ---- final layernorm + lane-padded (128-wide, unmasked-vst) vocab head ----
    x = _layernorm(x, vrow(V_FINAL + 0, d), vrow(V_FINAL + 1, d))
    o_ref[...] = jnp.dot(x.astype(bf16), wmat(W_HEAD, d, V_PAD),
                         preferred_element_type=f32) + vrow(V_FINAL + 2, V_PAD)


# ------------------------------- wrapper ---------------------------------------
def _vmem():
    return pl.BlockSpec(memory_space=pltpu.MemorySpace.VMEM)


@jax.jit
def transformer_forward(tokens, packed):
    B, C = tokens.shape
    tok = tokens.reshape(B * C, 1).astype(jnp.int32)
    logits_pad = pl.pallas_call(
        functools.partial(transformer_kernel, n_layers=N_LAYERS, n_head=N_HEAD,
                          batch=B, seq=C),
        out_shape=jax.ShapeDtypeStruct((B * C, V_PAD), jnp.float32),
        in_specs=[_vmem(), _vmem(), _vmem()],
        out_specs=_vmem(),
        # grid=(): single TensorCore, zero pipeline overhead — the right call at
        # B*C=16 rows.  TODO(synk): if batch/seq grow, add a 'parallel' batch
        # grid axis (dimension_semantics) so v7x's second TensorCore is used.
    )(tok, packed["wblob"], packed["vblob"])
    return logits_pad[:, :N_VOCAB].reshape(B, C, N_VOCAB)


# ----------------------------- parameter init ----------------------------------
def init_params(key):
    keys = iter(jax.random.split(key, 16))
    std = 0.02
    res_std = 0.02 / math.sqrt(2 * N_LAYERS)
    L, D, FF, V = N_LAYERS, D_MODEL, D_FF, N_VOCAB

    def normal(shape, s):
        return (s * jax.random.normal(next(keys), shape)).astype(jnp.float32)

    return {
        "vocab_embed": normal((V, D), std),
        "pos_embed": normal((CONTEXT_SIZE, D), std),
        # per-layer params stacked on a leading axis; linear weights stored (in, out)
        "ln1w": jnp.ones((L, D), jnp.float32), "ln1b": jnp.zeros((L, D), jnp.float32),
        "wqkv": normal((L, D, 3 * D), std), "bqkv": jnp.zeros((L, 3 * D), jnp.float32),
        "wo": normal((L, D, D), res_std), "bo": jnp.zeros((L, D), jnp.float32),
        "ln2w": jnp.ones((L, D), jnp.float32), "ln2b": jnp.zeros((L, D), jnp.float32),
        "w1": normal((L, D, FF), std), "b1": jnp.zeros((L, FF), jnp.float32),
        "w2": normal((L, FF, D), res_std), "b2": jnp.zeros((L, D), jnp.float32),
        "lnfw": jnp.ones((D,), jnp.float32), "lnfb": jnp.zeros((D,), jnp.float32),
        "wv": normal((D, V), std), "bv": jnp.zeros((V,), jnp.float32),
    }


def pack_params(p):
    """One-time packing of the 19 small tensors into 2 fused VMEM blobs."""
    D, hd = D_MODEL, HD
    scale = 1.0 / math.sqrt(hd)

    wb = jnp.zeros((W_ROWS, BLOB_W), jnp.float32)   # -> bf16 MXU-weight blob
    vb = jnp.zeros((V_ROWS, BLOB_W), jnp.float32)   # f32 vector blob

    def put(buf, off, block):
        r, c = block.shape
        return buf.at[off:off + r, :c].set(block.astype(jnp.float32))

    wb = put(wb, W_VOCAB, p["vocab_embed"])
    vb = put(vb, V_POS, jnp.tile(p["pos_embed"][:SEQ], (BATCH, 1)))

    rr = jnp.arange(SEQ)[:, None]
    cc = jnp.arange(SEQ)[None, :]
    vb = put(vb, V_MASK, jnp.where(rr >= cc, 0.0, NEG_INF).astype(jnp.float32))

    for l in range(N_LAYERS):
        wl = W_LAYER0 + l * W_LSTRIDE
        vl = V_LAYER0 + l * V_LSTRIDE
        wq = p["wqkv"][l][:, 0:D]
        wk = p["wqkv"][l][:, D:2 * D]
        wv_ = p["wqkv"][l][:, 2 * D:3 * D]
        bq = p["bqkv"][l][0:D]
        bk = p["bqkv"][l][D:2 * D]
        bv_ = p["bqkv"][l][2 * D:3 * D]
        for h in range(N_HEAD):
            cs = slice(h * hd, (h + 1) * hd)
            wb = put(wb, wl + W_Q + h * D, wq[:, cs] * scale)   # fold 1/sqrt(hd)
            wb = put(wb, wl + W_K + h * D, wk[:, cs])
            wb = put(wb, wl + W_V + h * D, wv_[:, cs])
            vb = put(vb, vl + 2 + h, (bq[cs] * scale)[None, :])
            vb = put(vb, vl + 4 + h, bk[cs][None, :])
            vb = put(vb, vl + 6 + h, bv_[cs][None, :])
        wb = put(wb, wl + W_O, p["wo"][l])
        wb = put(wb, wl + W_1, p["w1"][l])
        wb = put(wb, wl + W_2, p["w2"][l])
        vb = put(vb, vl + 0, p["ln1w"][l][None, :])
        vb = put(vb, vl + 1, p["ln1b"][l][None, :])
        vb = put(vb, vl + 8, p["bo"][l][None, :])
        vb = put(vb, vl + 9, p["ln2w"][l][None, :])
        vb = put(vb, vl + 10, p["ln2b"][l][None, :])
        vb = put(vb, vl + 11, p["b1"][l][None, :])
        vb = put(vb, vl + 12, p["b2"][l][None, :])

    vb = put(vb, V_FINAL + 0, p["lnfw"][None, :])
    vb = put(vb, V_FINAL + 1, p["lnfb"][None, :])
    wb = put(wb, W_HEAD, p["wv"])            # lanes 64..127 stay 0 -> free padding
    vb = put(vb, V_FINAL + 2, p["bv"][None, :])

    return {"wblob": wb.astype(jnp.bfloat16), "vblob": vb}


if __name__ == "__main__":
    key = jax.random.PRNGKey(0)
    pkey, tkey = jax.random.split(key)
    params = init_params(pkey)
    packed = pack_params(params)          # one-time packing into 2 fused buffers
    tokens = jax.random.randint(tkey, (BATCH, SEQ), 0, N_VOCAB, dtype=jnp.int32)

    logits = transformer_forward(tokens, packed)
    jax.block_until_ready(logits)
    assert logits.shape == (BATCH, SEQ, N_VOCAB)
    assert logits.dtype == jnp.float32
    assert bool(jnp.all(jnp.isfinite(logits)))
    print("KERNEL_OK")
</pallas_src>

<mosaic_0001>
module attributes {stable_mosaic.version = 11 : i64} {
  func.func @transformer_kernel(%arg0: memref<16x1xi32, #tpu.memory_space<vmem>>, %arg1: memref<864x128xbf16, #tpu.memory_space<vmem>>, %arg2: memref<64x128xf32, #tpu.memory_space<vmem>>, %arg3: memref<16x128xf32, #tpu.memory_space<vmem>>) attributes {dimension_semantics = [], scalar_prefetch = 0 : i64, scratch_operands = 0 : i64, tpu.core_type = #tpu.core_type<tc>} {
    %c0 = arith.constant 0 : index
    %c0_0 = arith.constant 0 : index
    %0 = vector.load %arg0[%c0, %c0_0] : memref<16x1xi32, #tpu.memory_space<vmem>>, vector<16x1xi32>
    %1 = tpu.iota {dimensions = array<i32: 1>} : vector<16x64xi32>
    %2 = vector.broadcast %0 : vector<16x1xi32> to vector<16x64xi32>
    %3 = arith.cmpi eq, %2, %1 : vector<16x64xi32>
    %4 = arith.extui %3 : vector<16x64xi1> to vector<16x64xi32>
    %5 = arith.sitofp %4 : vector<16x64xi32> to vector<16x64xf32>
    %6 = arith.truncf %5 : vector<16x64xf32> to vector<16x64xbf16>
    %c0_1 = arith.constant 0 : index
    %c0_2 = arith.constant 0 : index
    %7 = vector.load %arg1[%c0_1, %c0_2] : memref<864x128xbf16, #tpu.memory_space<vmem>>, vector<64x32xbf16>
    %cst = arith.constant dense<0.000000e+00> : vector<16x32xf32>
    %8 = tpu.matmul %6, %7, %cst {dimension_numbers = #tpu.dot_dimension_numbers<[1], [0], [0], [1], [0, 0, 1, 1], [], []>} : vector<16x64xbf16>, vector<64x32xbf16>, vector<16x32xf32> -> vector<16x32xf32>
    %c0_3 = arith.constant 0 : index
    %c0_4 = arith.constant 0 : index
    %9 = vector.load %arg2[%c0_3, %c0_4] : memref<64x128xf32, #tpu.memory_space<vmem>>, vector<16x32xf32>
    %10 = arith.addf %8, %9 : vector<16x32xf32>
    %c16 = arith.constant 16 : index
    %c0_5 = arith.constant 0 : index
    %11 = vector.load %arg2[%c16, %c0_5] : memref<64x128xf32, #tpu.memory_space<vmem>>, vector<8x8xf32>
    %12 = vector.shape_cast %11 : vector<8x8xf32> to vector<1x8x8xf32>
    %13 = vector.shape_cast %12 : vector<1x8x8xf32> to vector<1x8x8xf32>
    %14 = vector.broadcast %13 : vector<1x8x8xf32> to vector<2x8x8xf32>
    %c24 = arith.constant 24 : index
    %c0_6 = arith.constant 0 : index
    %15 = vector.load %arg2[%c24, %c0_6] : memref<64x128xf32, #tpu.memory_space<vmem>>, vector<1x32xf32>
    %c25 = arith.constant 25 : index
    %c0_7 = arith.constant 0 : index
    %16 = vector.load %arg2[%c25, %c0_7] : memref<64x128xf32, #tpu.memory_space<vmem>>, vector<1x32xf32>
    %cst_8 = arith.constant dense<0.000000e+00> : vector<16xf32>
    %17 = vector.multi_reduction <add>, %10, %cst_8 [1] : vector<16x32xf32> to vector<16xf32>
    %18 = vector.shape_cast %17 : vector<16xf32> to vector<16x1xf32>
    %cst_9 = arith.constant 3.200000e+01 : f32
    %19 = vector.broadcast %cst_9 : f32 to vector<16x1xf32>
    %20 = arith.divf %18, %19 : vector<16x1xf32>
    %21 = vector.broadcast %20 : vector<16x1xf32> to vector<16x32xf32>
    %22 = arith.subf %10, %21 : vector<16x32xf32>
    %23 = arith.mulf %22, %22 : vector<16x32xf32>
    %cst_10 = arith.constant dense<0.000000e+00> : vector<16xf32>
    %24 = vector.multi_reduction <add>, %23, %cst_10 [1] : vector<16x32xf32> to vector<16xf32>
    %25 = vector.shape_cast %24 : vector<16xf32> to vector<16x1xf32>
    %cst_11 = arith.constant 3.200000e+01 : f32
    %26 = vector.broadcast %cst_11 : f32 to vector<16x1xf32>
    %27 = arith.divf %25, %26 : vector<16x1xf32>
    %28 = vector.broadcast %20 : vector<16x1xf32> to vector<16x32xf32>
    %29 = arith.subf %10, %28 : vector<16x32xf32>
    %cst_12 = arith.constant 9.99999974E-6 : f32
    %30 = vector.broadcast %cst_12 : f32 to vector<16x1xf32>
    %31 = arith.addf %27, %30 : vector<16x1xf32>
    %32 = math.rsqrt %31 : vector<16x1xf32>
    %33 = vector.broadcast %32 : vector<16x1xf32> to vector<16x32xf32>
    %34 = arith.mulf %29, %33 : vector<16x32xf32>
    %35 = vector.broadcast %15 : vector<1x32xf32> to vector<16x32xf32>
    %36 = arith.mulf %34, %35 : vector<16x32xf32>
    %37 = vector.broadcast %16 : vector<1x32xf32> to vector<16x32xf32>
    %38 = arith.addf %36, %37 : vector<16x32xf32>
    %39 = arith.truncf %38 : vector<16x32xf32> to vector<16x32xbf16>
    %cst_13 = arith.constant 0.000000e+00 : f32
    %40 = vector.broadcast %cst_13 : f32 to vector<16x32xf32>
    %c64 = arith.constant 64 : index
    %c0_14 = arith.constant 0 : index
    %41 = vector.load %arg1[%c64, %c0_14] : memref<864x128xbf16, #tpu.memory_space<vmem>>, vector<32x16xbf16>
    %cst_15 = arith.constant dense<0.000000e+00> : vector<16x16xf32>
    %42 = tpu.matmul %39, %41, %cst_15 {dimension_numbers = #tpu.dot_dimension_numbers<[1], [0], [0], [1], [0, 0, 1, 1], [], []>} : vector<16x32xbf16>, vector<32x16xbf16>, vector<16x16xf32> -> vector<16x16xf32>
    %c26 = arith.constant 26 : index
    %c0_16 = arith.constant 0 : index
    %43 = vector.load %arg2[%c26, %c0_16] : memref<64x128xf32, #tpu.memory_space<vmem>>, vector<1x16xf32>
    %44 = vector.broadcast %43 : vector<1x16xf32> to vector<16x16xf32>
    %45 = arith.addf %42, %44 : vector<16x16xf32>
    %c128 = arith.constant 128 : index
    %c0_17 = arith.constant 0 : index
    %46 = vector.load %arg1[%c128, %c0_17] : memref<864x128xbf16, #tpu.memory_space<vmem>>, vector<32x16xbf16>
    %cst_18 = arith.constant dense<0.000000e+00> : vector<16x16xf32>
    %47 = tpu.matmul %39, %46, %cst_18 {dimension_numbers = #tpu.dot_dimension_numbers<[1], [0], [0], [1], [0, 0, 1, 1], [], []>} : vector<16x32xbf16>, vector<32x16xbf16>, vector<16x16xf32> -> vector<16x16xf32>
    %c28 = arith.constant 28 : index
    %c0_19 = arith.constant 0 : index
    %48 = vector.load %arg2[%c28, %c0_19] : memref<64x128xf32, #tpu.memory_space<vmem>>, vector<1x16xf32>
    %49 = vector.broadcast %48 : vector<1x16xf32> to vector<16x16xf32>
    %50 = arith.addf %47, %49 : vector<16x16xf32>
    %c192 = arith.constant 192 : index
    %c0_20 = arith.constant 0 : index
    %51 = vector.load %arg1[%c192, %c0_20] : memref<864x128xbf16, #tpu.memory_space<vmem>>, vector<32x16xbf16>
    %cst_21 = arith.constant dense<0.000000e+00> : vector<16x16xf32>
    %52 = tpu.matmul %39, %51, %cst_21 {dimension_numbers = #tpu.dot_dimension_numbers<[1], [0], [0], [1], [0, 0, 1, 1], [], []>} : vector<16x32xbf16>, vector<32x16xbf16>, vector<16x16xf32> -> vector<16x16xf32>
    %c30 = arith.constant 30 : index
    %c0_22 = arith.constant 0 : index
    %53 = vector.load %arg2[%c30, %c0_22] : memref<64x128xf32, #tpu.memory_space<vmem>>, vector<1x16xf32>
    %54 = vector.broadcast %53 : vector<1x16xf32> to vector<16x16xf32>
    %55 = arith.addf %52, %54 : vector<16x16xf32>
    %56 = vector.shape_cast %45 : vector<16x16xf32> to vector<2x8x16xf32>
    %57 = arith.truncf %56 : vector<2x8x16xf32> to vector<2x8x16xbf16>
    %58 = vector.shape_cast %50 : vector<16x16xf32> to vector<2x8x16xf32>
    %59 = arith.truncf %58 : vector<2x8x16xf32> to vector<2x8x16xbf16>
    %60 = vector.shape_cast %55 : vector<16x16xf32> to vector<2x8x16xf32>
    %61 = arith.truncf %60 : vector<2x8x16xf32> to vector<2x8x16xbf16>
    "tpu.trace_start"() <{level = 10 : i32, message = "bqd,bkd->bqk"}> : () -> ()
    %cst_23 = arith.constant dense<0.000000e+00> : vector<2x8x8xf32>
    %62 = tpu.matmul %57, %59, %cst_23 {dimension_numbers = #tpu.dot_dimension_numbers<[2], [2], [1], [1], [0, 0, 0, 1, 1, 1], [0], [0]>} : vector<2x8x16xbf16>, vector<2x8x16xbf16>, vector<2x8x8xf32> -> vector<2x8x8xf32>
    "tpu.trace_stop"() : () -> ()
    %63 = arith.addf %62, %14 : vector<2x8x8xf32>
    %cst_24 = arith.constant dense<0xFF800000> : vector<2x8xf32>
    %64 = vector.multi_reduction <maximumf>, %63, %cst_24 [2] : vector<2x8x8xf32> to vector<2x8xf32>
    %65 = vector.shape_cast %64 : vector<2x8xf32> to vector<2x8x1xf32>
    %66 = vector.broadcast %65 : vector<2x8x1xf32> to vector<2x8x8xf32>
    %67 = arith.subf %63, %66 : vector<2x8x8xf32>
    %68 = math.exp %67 : vector<2x8x8xf32>
    %cst_25 = arith.constant dense<0.000000e+00> : vector<2x8xf32>
    %69 = vector.multi_reduction <add>, %68, %cst_25 [2] : vector<2x8x8xf32> to vector<2x8xf32>
    %70 = vector.shape_cast %69 : vector<2x8xf32> to vector<2x8x1xf32>
    %71 = tpu.reciprocal %70 {approx = true} : vector<2x8x1xf32> -> vector<2x8x1xf32>
    %72 = vector.broadcast %71 : vector<2x8x1xf32> to vector<2x8x8xf32>
    %73 = arith.mulf %68, %72 : vector<2x8x8xf32>
    %74 = arith.truncf %73 : vector<2x8x8xf32> to vector<2x8x8xbf16>
    "tpu.trace_start"() <{level = 10 : i32, message = "bqk,bkd->bqd"}> : () -> ()
    %cst_26 = arith.constant dense<0.000000e+00> : vector<2x8x16xf32>
    %75 = tpu.matmul %74, %61, %cst_26 {dimension_numbers = #tpu.dot_dimension_numbers<[2], [1], [1], [2], [0, 0, 0, 1, 1, 2], [0], [0]>} : vector<2x8x8xbf16>, vector<2x8x16xbf16>, vector<2x8x16xf32> -> vector<2x8x16xf32>
    "tpu.trace_stop"() : () -> ()
    %76 = vector.shape_cast %75 : vector<2x8x16xf32> to vector<16x16xf32>
    %77 = arith.truncf %76 : vector<16x16xf32> to vector<16x16xbf16>
    %c256 = arith.constant 256 : index
    %c0_27 = arith.constant 0 : index
    %78 = vector.load %arg1[%c256, %c0_27] : memref<864x128xbf16, #tpu.memory_space<vmem>>, vector<16x32xbf16>
    %cst_28 = arith.constant dense<0.000000e+00> : vector<16x32xf32>
    %79 = tpu.matmul %77, %78, %cst_28 {dimension_numbers = #tpu.dot_dimension_numbers<[1], [0], [0], [1], [0, 0, 1, 1], [], []>} : vector<16x16xbf16>, vector<16x32xbf16>, vector<16x32xf32> -> vector<16x32xf32>
    %80 = arith.addf %40, %79 : vector<16x32xf32>
    %c96 = arith.constant 96 : index
    %c0_29 = arith.constant 0 : index
    %81 = vector.load %arg1[%c96, %c0_29] : memref<864x128xbf16, #tpu.memory_space<vmem>>, vector<32x16xbf16>
    %cst_30 = arith.constant dense<0.000000e+00> : vector<16x16xf32>
    %82 = tpu.matmul %39, %81, %cst_30 {dimension_numbers = #tpu.dot_dimension_numbers<[1], [0], [0], [1], [0, 0, 1, 1], [], []>} : vector<16x32xbf16>, vector<32x16xbf16>, vector<16x16xf32> -> vector<16x16xf32>
    %c27 = arith.constant 27 : index
    %c0_31 = arith.constant 0 : index
    %83 = vector.load %arg2[%c27, %c0_31] : memref<64x128xf32, #tpu.memory_space<vmem>>, vector<1x16xf32>
    %84 = vector.broadcast %83 : vector<1x16xf32> to vector<16x16xf32>
    %85 = arith.addf %82, %84 : vector<16x16xf32>
    %c160 = arith.constant 160 : index
    %c0_32 = arith.constant 0 : index
    %86 = vector.load %arg1[%c160, %c0_32] : memref<864x128xbf16, #tpu.memory_space<vmem>>, vector<32x16xbf16>
    %cst_33 = arith.constant dense<0.000000e+00> : vector<16x16xf32>
    %87 = tpu.matmul %39, %86, %cst_33 {dimension_numbers = #tpu.dot_dimension_numbers<[1], [0], [0], [1], [0, 0, 1, 1], [], []>} : vector<16x32xbf16>, vector<32x16xbf16>, vector<16x16xf32> -> vector<16x16xf32>
    %c29 = arith.constant 29 : index
    %c0_34 = arith.constant 0 : index
    %88 = vector.load %arg2[%c29, %c0_34] : memref<64x128xf32, #tpu.memory_space<vmem>>, vector<1x16xf32>
    %89 = vector.broadcast %88 : vector<1x16xf32> to vector<16x16xf32>
    %90 = arith.addf %87, %89 : vector<16x16xf32>
    %c224 = arith.constant 224 : index
    %c0_35 = arith.constant 0 : index
    %91 = vector.load %arg1[%c224, %c0_35] : memref<864x128xbf16, #tpu.memory_space<vmem>>, vector<32x16xbf16>
    %cst_36 = arith.constant dense<0.000000e+00> : vector<16x16xf32>
    %92 = tpu.matmul %39, %91, %cst_36 {dimension_numbers = #tpu.dot_dimension_numbers<[1], [0], [0], [1], [0, 0, 1, 1], [], []>} : vector<16x32xbf16>, vector<32x16xbf16>, vector<16x16xf32> -> vector<16x16xf32>
    %c31 = arith.constant 31 : index
    %c0_37 = arith.constant 0 : index
    %93 = vector.load %arg2[%c31, %c0_37] : memref<64x128xf32, #tpu.memory_space<vmem>>, vector<1x16xf32>
    %94 = vector.broadcast %93 : vector<1x16xf32> to vector<16x16xf32>
    %95 = arith.addf %92, %94 : vector<16x16xf32>
    %96 = vector.shape_cast %85 : vector<16x16xf32> to vector<2x8x16xf32>
    %97 = arith.truncf %96 : vector<2x8x16xf32> to vector<2x8x16xbf16>
    %98 = vector.shape_cast %90 : vector<16x16xf32> to vector<2x8x16xf32>
    %99 = arith.truncf %98 : vector<2x8x16xf32> to vector<2x8x16xbf16>
    %100 = vector.shape_cast %95 : vector<16x16xf32> to vector<2x8x16xf32>
    %101 = arith.truncf %100 : vector<2x8x16xf32> to vector<2x8x16xbf16>
    "tpu.trace_start"() <{level = 10 : i32, message = "bqd,bkd->bqk"}> : () -> ()
    %cst_38 = arith.constant dense<0.000000e+00> : vector<2x8x8xf32>
    %102 = tpu.matmul %97, %99, %cst_38 {dimension_numbers = #tpu.dot_dimension_numbers<[2], [2], [1], [1], [0, 0, 0, 1, 1, 1], [0], [0]>} : vector<2x8x16xbf16>, vector<2x8x16xbf16>, vector<2x8x8xf32> -> vector<2x8x8xf32>
    "tpu.trace_stop"() : () -> ()
    %103 = arith.addf %102, %14 : vector<2x8x8xf32>
    %cst_39 = arith.constant dense<0xFF800000> : vector<2x8xf32>
    %104 = vector.multi_reduction <maximumf>, %103, %cst_39 [2] : vector<2x8x8xf32> to vector<2x8xf32>
    %105 = vector.shape_cast %104 : vector<2x8xf32> to vector<2x8x1xf32>
    %106 = vector.broadcast %105 : vector<2x8x1xf32> to vector<2x8x8xf32>
    %107 = arith.subf %103, %106 : vector<2x8x8xf32>
    %108 = math.exp %107 : vector<2x8x8xf32>
    %cst_40 = arith.constant dense<0.000000e+00> : vector<2x8xf32>
    %109 = vector.multi_reduction <add>, %108, %cst_40 [2] : vector<2x8x8xf32> to vector<2x8xf32>
    %110 = vector.shape_cast %109 : vector<2x8xf32> to vector<2x8x1xf32>
    %111 = tpu.reciprocal %110 {approx = true} : vector<2x8x1xf32> -> vector<2x8x1xf32>
    %112 = vector.broadcast %111 : vector<2x8x1xf32> to vector<2x8x8xf32>
    %113 = arith.mulf %108, %112 : vector<2x8x8xf32>
    %114 = arith.truncf %113 : vector<2x8x8xf32> to vector<2x8x8xbf16>
    "tpu.trace_start"() <{level = 10 : i32, message = "bqk,bkd->bqd"}> : () -> ()
    %cst_41 = arith.constant dense<0.000000e+00> : vector<2x8x16xf32>
    %115 = tpu.matmul %114, %101, %cst_41 {dimension_numbers = #tpu.dot_dimension_numbers<[2], [1], [1], [2], [0, 0, 0, 1, 1, 2], [0], [0]>} : vector<2x8x8xbf16>, vector<2x8x16xbf16>, vector<2x8x16xf32> -> vector<2x8x16xf32>
    "tpu.trace_stop"() : () -> ()
    %116 = vector.shape_cast %115 : vector<2x8x16xf32> to vector<16x16xf32>
    %117 = arith.truncf %116 : vector<16x16xf32> to vector<16x16xbf16>
    %c272 = arith.constant 272 : index
    %c0_42 = arith.constant 0 : index
    %118 = vector.load %arg1[%c272, %c0_42] : memref<864x128xbf16, #tpu.memory_space<vmem>>, vector<16x32xbf16>
    %cst_43 = arith.constant dense<0.000000e+00> : vector<16x32xf32>
    %119 = tpu.matmul %117, %118, %cst_43 {dimension_numbers = #tpu.dot_dimension_numbers<[1], [0], [0], [1], [0, 0, 1, 1], [], []>} : vector<16x16xbf16>, vector<16x32xbf16>, vector<16x32xf32> -> vector<16x32xf32>
    %120 = arith.addf %80, %119 : vector<16x32xf32>
    %121 = arith.addf %38, %120 : vector<16x32xf32>
    %c32 = arith.constant 32 : index
    %c0_44 = arith.constant 0 : index
    %122 = vector.load %arg2[%c32, %c0_44] : memref<64x128xf32, #tpu.memory_space<vmem>>, vector<1x32xf32>
    %123 = vector.broadcast %122 : vector<1x32xf32> to vector<16x32xf32>
    %124 = arith.addf %121, %123 : vector<16x32xf32>
    %c33 = arith.constant 33 : index
    %c0_45 = arith.constant 0 : index
    %125 = vector.load %arg2[%c33, %c0_45] : memref<64x128xf32, #tpu.memory_space<vmem>>, vector<1x32xf32>
    %c34 = arith.constant 34 : index
    %c0_46 = arith.constant 0 : index
    %126 = vector.load %arg2[%c34, %c0_46] : memref<64x128xf32, #tpu.memory_space<vmem>>, vector<1x32xf32>
    %cst_47 = arith.constant dense<0.000000e+00> : vector<16xf32>
    %127 = vector.multi_reduction <add>, %124, %cst_47 [1] : vector<16x32xf32> to vector<16xf32>
    %128 = vector.shape_cast %127 : vector<16xf32> to vector<16x1xf32>
    %cst_48 = arith.constant 3.200000e+01 : f32
    %129 = vector.broadcast %cst_48 : f32 to vector<16x1xf32>
    %130 = arith.divf %128, %129 : vector<16x1xf32>
    %131 = vector.broadcast %130 : vector<16x1xf32> to vector<16x32xf32>
    %132 = arith.subf %124, %131 : vector<16x32xf32>
    %133 = arith.mulf %132, %132 : vector<16x32xf32>
    %cst_49 = arith.constant dense<0.000000e+00> : vector<16xf32>
    %134 = vector.multi_reduction <add>, %133, %cst_49 [1] : vector<16x32xf32> to vector<16xf32>
    %135 = vector.shape_cast %134 : vector<16xf32> to vector<16x1xf32>
    %cst_50 = arith.constant 3.200000e+01 : f32
    %136 = vector.broadcast %cst_50 : f32 to vector<16x1xf32>
    %137 = arith.divf %135, %136 : vector<16x1xf32>
    %138 = vector.broadcast %130 : vector<16x1xf32> to vector<16x32xf32>
    %139 = arith.subf %124, %138 : vector<16x32xf32>
    %cst_51 = arith.constant 9.99999974E-6 : f32
    %140 = vector.broadcast %cst_51 : f32 to vector<16x1xf32>
    %141 = arith.addf %137, %140 : vector<16x1xf32>
    %142 = math.rsqrt %141 : vector<16x1xf32>
    %143 = vector.broadcast %142 : vector<16x1xf32> to vector<16x32xf32>
    %144 = arith.mulf %139, %143 : vector<16x32xf32>
    %145 = vector.broadcast %125 : vector<1x32xf32> to vector<16x32xf32>
    %146 = arith.mulf %144, %145 : vector<16x32xf32>
    %147 = vector.broadcast %126 : vector<1x32xf32> to vector<16x32xf32>
    %148 = arith.addf %146, %147 : vector<16x32xf32>
    %149 = arith.truncf %148 : vector<16x32xf32> to vector<16x32xbf16>
    %c288 = arith.constant 288 : index
    %c0_52 = arith.constant 0 : index
    %150 = vector.load %arg1[%c288, %c0_52] : memref<864x128xbf16, #tpu.memory_space<vmem>>, vector<32x128xbf16>
    %cst_53 = arith.constant dense<0.000000e+00> : vector<16x128xf32>
    %151 = tpu.matmul %149, %150, %cst_53 {dimension_numbers = #tpu.dot_dimension_numbers<[1], [0], [0], [1], [0, 0, 1, 1], [], []>} : vector<16x32xbf16>, vector<32x128xbf16>, vector<16x128xf32> -> vector<16x128xf32>
    %c35 = arith.constant 35 : index
    %c0_54 = arith.constant 0 : index
    %152 = vector.load %arg2[%c35, %c0_54] : memref<64x128xf32, #tpu.memory_space<vmem>>, vector<1x128xf32>
    %153 = vector.broadcast %152 : vector<1x128xf32> to vector<16x128xf32>
    %154 = arith.addf %151, %153 : vector<16x128xf32>
    %cst_55 = arith.constant 5.000000e-01 : f32
    %155 = vector.broadcast %cst_55 : f32 to vector<16x128xf32>
    %156 = arith.mulf %154, %155 : vector<16x128xf32>
    %cst_56 = arith.constant 4.471500e-02 : f32
    %157 = vector.broadcast %cst_56 : f32 to vector<16x128xf32>
    %158 = arith.mulf %157, %154 : vector<16x128xf32>
    %159 = arith.mulf %158, %154 : vector<16x128xf32>
    %160 = arith.mulf %159, %154 : vector<16x128xf32>
    %161 = arith.addf %154, %160 : vector<16x128xf32>
    %cst_57 = arith.constant 0.797884583 : f32
    %162 = vector.broadcast %cst_57 : f32 to vector<16x128xf32>
    %163 = arith.mulf %162, %161 : vector<16x128xf32>
    %164 = math.tanh %163 : vector<16x128xf32>
    %cst_58 = arith.constant 1.000000e+00 : f32
    %165 = vector.broadcast %cst_58 : f32 to vector<16x128xf32>
    %166 = arith.addf %165, %164 : vector<16x128xf32>
    %167 = arith.mulf %156, %166 : vector<16x128xf32>
    %168 = arith.truncf %167 : vector<16x128xf32> to vector<16x128xbf16>
    %c320 = arith.constant 320 : index
    %c0_59 = arith.constant 0 : index
    %169 = vector.load %arg1[%c320, %c0_59] : memref<864x128xbf16, #tpu.memory_space<vmem>>, vector<128x32xbf16>
    %cst_60 = arith.constant dense<0.000000e+00> : vector<16x32xf32>
    %170 = tpu.matmul %168, %169, %cst_60 {dimension_numbers = #tpu.dot_dimension_numbers<[1], [0], [0], [1], [0, 0, 1, 1], [], []>} : vector<16x128xbf16>, vector<128x32xbf16>, vector<16x32xf32> -> vector<16x32xf32>
    %c36 = arith.constant 36 : index
    %c0_61 = arith.constant 0 : index
    %171 = vector.load %arg2[%c36, %c0_61] : memref<64x128xf32, #tpu.memory_space<vmem>>, vector<1x32xf32>
    %172 = vector.broadcast %171 : vector<1x32xf32> to vector<16x32xf32>
    %173 = arith.addf %170, %172 : vector<16x32xf32>
    %174 = arith.addf %148, %173 : vector<16x32xf32>
    %c40 = arith.constant 40 : index
    %c0_62 = arith.constant 0 : index
    %175 = vector.load %arg2[%c40, %c0_62] : memref<64x128xf32, #tpu.memory_space<vmem>>, vector<1x32xf32>
    %c41 = arith.constant 41 : index
    %c0_63 = arith.constant 0 : index
    %176 = vector.load %arg2[%c41, %c0_63] : memref<64x128xf32, #tpu.memory_space<vmem>>, vector<1x32xf32>
    %cst_64 = arith.constant dense<0.000000e+00> : vector<16xf32>
    %177 = vector.multi_reduction <add>, %174, %cst_64 [1] : vector<16x32xf32> to vector<16xf32>
    %178 = vector.shape_cast %177 : vector<16xf32> to vector<16x1xf32>
    %cst_65 = arith.constant 3.200000e+01 : f32
    %179 = vector.broadcast %cst_65 : f32 to vector<16x1xf32>
    %180 = arith.divf %178, %179 : vector<16x1xf32>
    %181 = vector.broadcast %180 : vector<16x1xf32> to vector<16x32xf32>
    %182 = arith.subf %174, %181 : vector<16x32xf32>
    %183 = arith.mulf %182, %182 : vector<16x32xf32>
    %cst_66 = arith.constant dense<0.000000e+00> : vector<16xf32>
    %184 = vector.multi_reduction <add>, %183, %cst_66 [1] : vector<16x32xf32> to vector<16xf32>
    %185 = vector.shape_cast %184 : vector<16xf32> to vector<16x1xf32>
    %cst_67 = arith.constant 3.200000e+01 : f32
    %186 = vector.broadcast %cst_67 : f32 to vector<16x1xf32>
    %187 = arith.divf %185, %186 : vector<16x1xf32>
    %188 = vector.broadcast %180 : vector<16x1xf32> to vector<16x32xf32>
    %189 = arith.subf %174, %188 : vector<16x32xf32>
    %cst_68 = arith.constant 9.99999974E-6 : f32
    %190 = vector.broadcast %cst_68 : f32 to vector<16x1xf32>
    %191 = arith.addf %187, %190 : vector<16x1xf32>
    %192 = math.rsqrt %191 : vector<16x1xf32>
    %193 = vector.broadcast %192 : vector<16x1xf32> to vector<16x32xf32>
    %194 = arith.mulf %189, %193 : vector<16x32xf32>
    %195 = vector.broadcast %175 : vector<1x32xf32> to vector<16x32xf32>
    %196 = arith.mulf %194, %195 : vector<16x32xf32>
    %197 = vector.broadcast %176 : vector<1x32xf32> to vector<16x32xf32>
    %198 = arith.addf %196, %197 : vector<16x32xf32>
    %199 = arith.truncf %198 : vector<16x32xf32> to vector<16x32xbf16>
    %cst_69 = arith.constant 0.000000e+00 : f32
    %200 = vector.broadcast %cst_69 : f32 to vector<16x32xf32>
    %c448 = arith.constant 448 : index
    %c0_70 = arith.constant 0 : index
    %201 = vector.load %arg1[%c448, %c0_70] : memref<864x128xbf16, #tpu.memory_space<vmem>>, vector<32x16xbf16>
    %cst_71 = arith.constant dense<0.000000e+00> : vector<16x16xf32>
    %202 = tpu.matmul %199, %201, %cst_71 {dimension_numbers = #tpu.dot_dimension_numbers<[1], [0], [0], [1], [0, 0, 1, 1], [], []>} : vector<16x32xbf16>, vector<32x16xbf16>, vector<16x16xf32> -> vector<16x16xf32>
    %c42 = arith.constant 42 : index
    %c0_72 = arith.constant 0 : index
    %203 = vector.load %arg2[%c42, %c0_72] : memref<64x128xf32, #tpu.memory_space<vmem>>, vector<1x16xf32>
    %204 = vector.broadcast %203 : vector<1x16xf32> to vector<16x16xf32>
    %205 = arith.addf %202, %204 : vector<16x16xf32>
    %c512 = arith.constant 512 : index
    %c0_73 = arith.constant 0 : index
    %206 = vector.load %arg1[%c512, %c0_73] : memref<864x128xbf16, #tpu.memory_space<vmem>>, vector<32x16xbf16>
    %cst_74 = arith.constant dense<0.000000e+00> : vector<16x16xf32>
    %207 = tpu.matmul %199, %206, %cst_74 {dimension_numbers = #tpu.dot_dimension_numbers<[1], [0], [0], [1], [0, 0, 1, 1], [], []>} : vector<16x32xbf16>, vector<32x16xbf16>, vector<16x16xf32> -> vector<16x16xf32>
    %c44 = arith.constant 44 : index
    %c0_75 = arith.constant 0 : index
    %208 = vector.load %arg2[%c44, %c0_75] : memref<64x128xf32, #tpu.memory_space<vmem>>, vector<1x16xf32>
    %209 = vector.broadcast %208 : vector<1x16xf32> to vector<16x16xf32>
    %210 = arith.addf %207, %209 : vector<16x16xf32>
    %c576 = arith.constant 576 : index
    %c0_76 = arith.constant 0 : index
    %211 = vector.load %arg1[%c576, %c0_76] : memref<864x128xbf16, #tpu.memory_space<vmem>>, vector<32x16xbf16>
    %cst_77 = arith.constant dense<0.000000e+00> : vector<16x16xf32>
    %212 = tpu.matmul %199, %211, %cst_77 {dimension_numbers = #tpu.dot_dimension_numbers<[1], [0], [0], [1], [0, 0, 1, 1], [], []>} : vector<16x32xbf16>, vector<32x16xbf16>, vector<16x16xf32> -> vector<16x16xf32>
    %c46 = arith.constant 46 : index
    %c0_78 = arith.constant 0 : index
    %213 = vector.load %arg2[%c46, %c0_78] : memref<64x128xf32, #tpu.memory_space<vmem>>, vector<1x16xf32>
    %214 = vector.broadcast %213 : vector<1x16xf32> to vector<16x16xf32>
    %215 = arith.addf %212, %214 : vector<16x16xf32>
    %216 = vector.shape_cast %205 : vector<16x16xf32> to vector<2x8x16xf32>
    %217 = arith.truncf %216 : vector<2x8x16xf32> to vector<2x8x16xbf16>
    %218 = vector.shape_cast %210 : vector<16x16xf32> to vector<2x8x16xf32>
    %219 = arith.truncf %218 : vector<2x8x16xf32> to vector<2x8x16xbf16>
    %220 = vector.shape_cast %215 : vector<16x16xf32> to vector<2x8x16xf32>
    %221 = arith.truncf %220 : vector<2x8x16xf32> to vector<2x8x16xbf16>
    "tpu.trace_start"() <{level = 10 : i32, message = "bqd,bkd->bqk"}> : () -> ()
    %cst_79 = arith.constant dense<0.000000e+00> : vector<2x8x8xf32>
    %222 = tpu.matmul %217, %219, %cst_79 {dimension_numbers = #tpu.dot_dimension_numbers<[2], [2], [1], [1], [0, 0, 0, 1, 1, 1], [0], [0]>} : vector<2x8x16xbf16>, vector<2x8x16xbf16>, vector<2x8x8xf32> -> vector<2x8x8xf32>
    "tpu.trace_stop"() : () -> ()
    %223 = arith.addf %222, %14 : vector<2x8x8xf32>
    %cst_80 = arith.constant dense<0xFF800000> : vector<2x8xf32>
    %224 = vector.multi_reduction <maximumf>, %223, %cst_80 [2] : vector<2x8x8xf32> to vector<2x8xf32>
    %225 = vector.shape_cast %224 : vector<2x8xf32> to vector<2x8x1xf32>
    %226 = vector.broadcast %225 : vector<2x8x1xf32> to vector<2x8x8xf32>
    %227 = arith.subf %223, %226 : vector<2x8x8xf32>
    %228 = math.exp %227 : vector<2x8x8xf32>
    %cst_81 = arith.constant dense<0.000000e+00> : vector<2x8xf32>
    %229 = vector.multi_reduction <add>, %228, %cst_81 [2] : vector<2x8x8xf32> to vector<2x8xf32>
    %230 = vector.shape_cast %229 : vector<2x8xf32> to vector<2x8x1xf32>
    %231 = tpu.reciprocal %230 {approx = true} : vector<2x8x1xf32> -> vector<2x8x1xf32>
    %232 = vector.broadcast %231 : vector<2x8x1xf32> to vector<2x8x8xf32>
    %233 = arith.mulf %228, %232 : vector<2x8x8xf32>
    %234 = arith.truncf %233 : vector<2x8x8xf32> to vector<2x8x8xbf16>
    "tpu.trace_start"() <{level = 10 : i32, message = "bqk,bkd->bqd"}> : () -> ()
    %cst_82 = arith.constant dense<0.000000e+00> : vector<2x8x16xf32>
    %235 = tpu.matmul %234, %221, %cst_82 {dimension_numbers = #tpu.dot_dimension_numbers<[2], [1], [1], [2], [0, 0, 0, 1, 1, 2], [0], [0]>} : vector<2x8x8xbf16>, vector<2x8x16xbf16>, vector<2x8x16xf32> -> vector<2x8x16xf32>
    "tpu.trace_stop"() : () -> ()
    %236 = vector.shape_cast %235 : vector<2x8x16xf32> to vector<16x16xf32>
    %237 = arith.truncf %236 : vector<16x16xf32> to vector<16x16xbf16>
    %c640 = arith.constant 640 : index
    %c0_83 = arith.constant 0 : index
    %238 = vector.load %arg1[%c640, %c0_83] : memref<864x128xbf16, #tpu.memory_space<vmem>>, vector<16x32xbf16>
    %cst_84 = arith.constant dense<0.000000e+00> : vector<16x32xf32>
    %239 = tpu.matmul %237, %238, %cst_84 {dimension_numbers = #tpu.dot_dimension_numbers<[1], [0], [0], [1], [0, 0, 1, 1], [], []>} : vector<16x16xbf16>, vector<16x32xbf16>, vector<16x32xf32> -> vector<16x32xf32>
    %240 = arith.addf %200, %239 : vector<16x32xf32>
    %c480 = arith.constant 480 : index
    %c0_85 = arith.constant 0 : index
    %241 = vector.load %arg1[%c480, %c0_85] : memref<864x128xbf16, #tpu.memory_space<vmem>>, vector<32x16xbf16>
    %cst_86 = arith.constant dense<0.000000e+00> : vector<16x16xf32>
    %242 = tpu.matmul %199, %241, %cst_86 {dimension_numbers = #tpu.dot_dimension_numbers<[1], [0], [0], [1], [0, 0, 1, 1], [], []>} : vector<16x32xbf16>, vector<32x16xbf16>, vector<16x16xf32> -> vector<16x16xf32>
    %c43 = arith.constant 43 : index
    %c0_87 = arith.constant 0 : index
    %243 = vector.load %arg2[%c43, %c0_87] : memref<64x128xf32, #tpu.memory_space<vmem>>, vector<1x16xf32>
    %244 = vector.broadcast %243 : vector<1x16xf32> to vector<16x16xf32>
    %245 = arith.addf %242, %244 : vector<16x16xf32>
    %c544 = arith.constant 544 : index
    %c0_88 = arith.constant 0 : index
    %246 = vector.load %arg1[%c544, %c0_88] : memref<864x128xbf16, #tpu.memory_space<vmem>>, vector<32x16xbf16>
    %cst_89 = arith.constant dense<0.000000e+00> : vector<16x16xf32>
    %247 = tpu.matmul %199, %246, %cst_89 {dimension_numbers = #tpu.dot_dimension_numbers<[1], [0], [0], [1], [0, 0, 1, 1], [], []>} : vector<16x32xbf16>, vector<32x16xbf16>, vector<16x16xf32> -> vector<16x16xf32>
    %c45 = arith.constant 45 : index
    %c0_90 = arith.constant 0 : index
    %248 = vector.load %arg2[%c45, %c0_90] : memref<64x128xf32, #tpu.memory_space<vmem>>, vector<1x16xf32>
    %249 = vector.broadcast %248 : vector<1x16xf32> to vector<16x16xf32>
    %250 = arith.addf %247, %249 : vector<16x16xf32>
    %c608 = arith.constant 608 : index
    %c0_91 = arith.constant 0 : index
    %251 = vector.load %arg1[%c608, %c0_91] : memref<864x128xbf16, #tpu.memory_space<vmem>>, vector<32x16xbf16>
    %cst_92 = arith.constant dense<0.000000e+00> : vector<16x16xf32>
    %252 = tpu.matmul %199, %251, %cst_92 {dimension_numbers = #tpu.dot_dimension_numbers<[1], [0], [0], [1], [0, 0, 1, 1], [], []>} : vector<16x32xbf16>, vector<32x16xbf16>, vector<16x16xf32> -> vector<16x16xf32>
    %c47 = arith.constant 47 : index
    %c0_93 = arith.constant 0 : index
    %253 = vector.load %arg2[%c47, %c0_93] : memref<64x128xf32, #tpu.memory_space<vmem>>, vector<1x16xf32>
    %254 = vector.broadcast %253 : vector<1x16xf32> to vector<16x16xf32>
    %255 = arith.addf %252, %254 : vector<16x16xf32>
    %256 = vector.shape_cast %245 : vector<16x16xf32> to vector<2x8x16xf32>
    %257 = arith.truncf %256 : vector<2x8x16xf32> to vector<2x8x16xbf16>
    %258 = vector.shape_cast %250 : vector<16x16xf32> to vector<2x8x16xf32>
    %259 = arith.truncf %258 : vector<2x8x16xf32> to vector<2x8x16xbf16>
    %260 = vector.shape_cast %255 : vector<16x16xf32> to vector<2x8x16xf32>
    %261 = arith.truncf %260 : vector<2x8x16xf32> to vector<2x8x16xbf16>
    "tpu.trace_start"() <{level = 10 : i32, message = "bqd,bkd->bqk"}> : () -> ()
    %cst_94 = arith.constant dense<0.000000e+00> : vector<2x8x8xf32>
    %262 = tpu.matmul %257, %259, %cst_94 {dimension_numbers = #tpu.dot_dimension_numbers<[2], [2], [1], [1], [0, 0, 0, 1, 1, 1], [0], [0]>} : vector<2x8x16xbf16>, vector<2x8x16xbf16>, vector<2x8x8xf32> -> vector<2x8x8xf32>
    "tpu.trace_stop"() : () -> ()
    %263 = arith.addf %262, %14 : vector<2x8x8xf32>
    %cst_95 = arith.constant dense<0xFF800000> : vector<2x8xf32>
    %264 = vector.multi_reduction <maximumf>, %263, %cst_95 [2] : vector<2x8x8xf32> to vector<2x8xf32>
    %265 = vector.shape_cast %264 : vector<2x8xf32> to vector<2x8x1xf32>
    %266 = vector.broadcast %265 : vector<2x8x1xf32> to vector<2x8x8xf32>
    %267 = arith.subf %263, %266 : vector<2x8x8xf32>
    %268 = math.exp %267 : vector<2x8x8xf32>
    %cst_96 = arith.constant dense<0.000000e+00> : vector<2x8xf32>
    %269 = vector.multi_reduction <add>, %268, %cst_96 [2] : vector<2x8x8xf32> to vector<2x8xf32>
    %270 = vector.shape_cast %269 : vector<2x8xf32> to vector<2x8x1xf32>
    %271 = tpu.reciprocal %270 {approx = true} : vector<2x8x1xf32> -> vector<2x8x1xf32>
    %272 = vector.broadcast %271 : vector<2x8x1xf32> to vector<2x8x8xf32>
    %273 = arith.mulf %268, %272 : vector<2x8x8xf32>
    %274 = arith.truncf %273 : vector<2x8x8xf32> to vector<2x8x8xbf16>
    "tpu.trace_start"() <{level = 10 : i32, message = "bqk,bkd->bqd"}> : () -> ()
    %cst_97 = arith.constant dense<0.000000e+00> : vector<2x8x16xf32>
    %275 = tpu.matmul %274, %261, %cst_97 {dimension_numbers = #tpu.dot_dimension_numbers<[2], [1], [1], [2], [0, 0, 0, 1, 1, 2], [0], [0]>} : vector<2x8x8xbf16>, vector<2x8x16xbf16>, vector<2x8x16xf32> -> vector<2x8x16xf32>
    "tpu.trace_stop"() : () -> ()
    %276 = vector.shape_cast %275 : vector<2x8x16xf32> to vector<16x16xf32>
    %277 = arith.truncf %276 : vector<16x16xf32> to vector<16x16xbf16>
    %c656 = arith.constant 656 : index
    %c0_98 = arith.constant 0 : index
    %278 = vector.load %arg1[%c656, %c0_98] : memref<864x128xbf16, #tpu.memory_space<vmem>>, vector<16x32xbf16>
    %cst_99 = arith.constant dense<0.000000e+00> : vector<16x32xf32>
    %279 = tpu.matmul %277, %278, %cst_99 {dimension_numbers = #tpu.dot_dimension_numbers<[1], [0], [0], [1], [0, 0, 1, 1], [], []>} : vector<16x16xbf16>, vector<16x32xbf16>, vector<16x32xf32> -> vector<16x32xf32>
    %280 = arith.addf %240, %279 : vector<16x32xf32>
    %281 = arith.addf %198, %280 : vector<16x32xf32>
    %c48 = arith.constant 48 : index
    %c0_100 = arith.constant 0 : index
    %282 = vector.load %arg2[%c48, %c0_100] : memref<64x128xf32, #tpu.memory_space<vmem>>, vector<1x32xf32>
    %283 = vector.broadcast %282 : vector<1x32xf32> to vector<16x32xf32>
    %284 = arith.addf %281, %283 : vector<16x32xf32>
    %c49 = arith.constant 49 : index
    %c0_101 = arith.constant 0 : index
    %285 = vector.load %arg2[%c49, %c0_101] : memref<64x128xf32, #tpu.memory_space<vmem>>, vector<1x32xf32>
    %c50 = arith.constant 50 : index
    %c0_102 = arith.constant 0 : index
    %286 = vector.load %arg2[%c50, %c0_102] : memref<64x128xf32, #tpu.memory_space<vmem>>, vector<1x32xf32>
    %cst_103 = arith.constant dense<0.000000e+00> : vector<16xf32>
    %287 = vector.multi_reduction <add>, %284, %cst_103 [1] : vector<16x32xf32> to vector<16xf32>
    %288 = vector.shape_cast %287 : vector<16xf32> to vector<16x1xf32>
    %cst_104 = arith.constant 3.200000e+01 : f32
    %289 = vector.broadcast %cst_104 : f32 to vector<16x1xf32>
    %290 = arith.divf %288, %289 : vector<16x1xf32>
    %291 = vector.broadcast %290 : vector<16x1xf32> to vector<16x32xf32>
    %292 = arith.subf %284, %291 : vector<16x32xf32>
    %293 = arith.mulf %292, %292 : vector<16x32xf32>
    %cst_105 = arith.constant dense<0.000000e+00> : vector<16xf32>
    %294 = vector.multi_reduction <add>, %293, %cst_105 [1] : vector<16x32xf32> to vector<16xf32>
    %295 = vector.shape_cast %294 : vector<16xf32> to vector<16x1xf32>
    %cst_106 = arith.constant 3.200000e+01 : f32
    %296 = vector.broadcast %cst_106 : f32 to vector<16x1xf32>
    %297 = arith.divf %295, %296 : vector<16x1xf32>
    %298 = vector.broadcast %290 : vector<16x1xf32> to vector<16x32xf32>
    %299 = arith.subf %284, %298 : vector<16x32xf32>
    %cst_107 = arith.constant 9.99999974E-6 : f32
    %300 = vector.broadcast %cst_107 : f32 to vector<16x1xf32>
    %301 = arith.addf %297, %300 : vector<16x1xf32>
    %302 = math.rsqrt %301 : vector<16x1xf32>
    %303 = vector.broadcast %302 : vector<16x1xf32> to vector<16x32xf32>
    %304 = arith.mulf %299, %303 : vector<16x32xf32>
    %305 = vector.broadcast %285 : vector<1x32xf32> to vector<16x32xf32>
    %306 = arith.mulf %304, %305 : vector<16x32xf32>
    %307 = vector.broadcast %286 : vector<1x32xf32> to vector<16x32xf32>
    %308 = arith.addf %306, %307 : vector<16x32xf32>
    %309 = arith.truncf %308 : vector<16x32xf32> to vector<16x32xbf16>
    %c672 = arith.constant 672 : index
    %c0_108 = arith.constant 0 : index
    %310 = vector.load %arg1[%c672, %c0_108] : memref<864x128xbf16, #tpu.memory_space<vmem>>, vector<32x128xbf16>
    %cst_109 = arith.constant dense<0.000000e+00> : vector<16x128xf32>
    %311 = tpu.matmul %309, %310, %cst_109 {dimension_numbers = #tpu.dot_dimension_numbers<[1], [0], [0], [1], [0, 0, 1, 1], [], []>} : vector<16x32xbf16>, vector<32x128xbf16>, vector<16x128xf32> -> vector<16x128xf32>
    %c51 = arith.constant 51 : index
    %c0_110 = arith.constant 0 : index
    %312 = vector.load %arg2[%c51, %c0_110] : memref<64x128xf32, #tpu.memory_space<vmem>>, vector<1x128xf32>
    %313 = vector.broadcast %312 : vector<1x128xf32> to vector<16x128xf32>
    %314 = arith.addf %311, %313 : vector<16x128xf32>
    %cst_111 = arith.constant 5.000000e-01 : f32
    %315 = vector.broadcast %cst_111 : f32 to vector<16x128xf32>
    %316 = arith.mulf %314, %315 : vector<16x128xf32>
    %cst_112 = arith.constant 4.471500e-02 : f32
    %317 = vector.broadcast %cst_112 : f32 to vector<16x128xf32>
    %318 = arith.mulf %317, %314 : vector<16x128xf32>
    %319 = arith.mulf %318, %314 : vector<16x128xf32>
    %320 = arith.mulf %319, %314 : vector<16x128xf32>
    %321 = arith.addf %314, %320 : vector<16x128xf32>
    %cst_113 = arith.constant 0.797884583 : f32
    %322 = vector.broadcast %cst_113 : f32 to vector<16x128xf32>
    %323 = arith.mulf %322, %321 : vector<16x128xf32>
    %324 = math.tanh %323 : vector<16x128xf32>
    %cst_114 = arith.constant 1.000000e+00 : f32
    %325 = vector.broadcast %cst_114 : f32 to vector<16x128xf32>
    %326 = arith.addf %325, %324 : vector<16x128xf32>
    %327 = arith.mulf %316, %326 : vector<16x128xf32>
    %328 = arith.truncf %327 : vector<16x128xf32> to vector<16x128xbf16>
    %c704 = arith.constant 704 : index
    %c0_115 = arith.constant 0 : index
    %329 = vector.load %arg1[%c704, %c0_115] : memref<864x128xbf16, #tpu.memory_space<vmem>>, vector<128x32xbf16>
    %cst_116 = arith.constant dense<0.000000e+00> : vector<16x32xf32>
    %330 = tpu.matmul %328, %329, %cst_116 {dimension_numbers = #tpu.dot_dimension_numbers<[1], [0], [0], [1], [0, 0, 1, 1], [], []>} : vector<16x128xbf16>, vector<128x32xbf16>, vector<16x32xf32> -> vector<16x32xf32>
    %c52 = arith.constant 52 : index
    %c0_117 = arith.constant 0 : index
    %331 = vector.load %arg2[%c52, %c0_117] : memref<64x128xf32, #tpu.memory_space<vmem>>, vector<1x32xf32>
    %332 = vector.broadcast %331 : vector<1x32xf32> to vector<16x32xf32>
    %333 = arith.addf %330, %332 : vector<16x32xf32>
    %334 = arith.addf %308, %333 : vector<16x32xf32>
    %c56 = arith.constant 56 : index
    %c0_118 = arith.constant 0 : index
    %335 = vector.load %arg2[%c56, %c0_118] : memref<64x128xf32, #tpu.memory_space<vmem>>, vector<1x32xf32>
    %c57 = arith.constant 57 : index
    %c0_119 = arith.constant 0 : index
    %336 = vector.load %arg2[%c57, %c0_119] : memref<64x128xf32, #tpu.memory_space<vmem>>, vector<1x32xf32>
    %cst_120 = arith.constant dense<0.000000e+00> : vector<16xf32>
    %337 = vector.multi_reduction <add>, %334, %cst_120 [1] : vector<16x32xf32> to vector<16xf32>
    %338 = vector.shape_cast %337 : vector<16xf32> to vector<16x1xf32>
    %cst_121 = arith.constant 3.200000e+01 : f32
    %339 = vector.broadcast %cst_121 : f32 to vector<16x1xf32>
    %340 = arith.divf %338, %339 : vector<16x1xf32>
    %341 = vector.broadcast %340 : vector<16x1xf32> to vector<16x32xf32>
    %342 = arith.subf %334, %341 : vector<16x32xf32>
    %343 = arith.mulf %342, %342 : vector<16x32xf32>
    %cst_122 = arith.constant dense<0.000000e+00> : vector<16xf32>
    %344 = vector.multi_reduction <add>, %343, %cst_122 [1] : vector<16x32xf32> to vector<16xf32>
    %345 = vector.shape_cast %344 : vector<16xf32> to vector<16x1xf32>
    %cst_123 = arith.constant 3.200000e+01 : f32
    %346 = vector.broadcast %cst_123 : f32 to vector<16x1xf32>
    %347 = arith.divf %345, %346 : vector<16x1xf32>
    %348 = vector.broadcast %340 : vector<16x1xf32> to vector<16x32xf32>
    %349 = arith.subf %334, %348 : vector<16x32xf32>
    %cst_124 = arith.constant 9.99999974E-6 : f32
    %350 = vector.broadcast %cst_124 : f32 to vector<16x1xf32>
    %351 = arith.addf %347, %350 : vector<16x1xf32>
    %352 = math.rsqrt %351 : vector<16x1xf32>
    %353 = vector.broadcast %352 : vector<16x1xf32> to vector<16x32xf32>
    %354 = arith.mulf %349, %353 : vector<16x32xf32>
    %355 = vector.broadcast %335 : vector<1x32xf32> to vector<16x32xf32>
    %356 = arith.mulf %354, %355 : vector<16x32xf32>
    %357 = vector.broadcast %336 : vector<1x32xf32> to vector<16x32xf32>
    %358 = arith.addf %356, %357 : vector<16x32xf32>
    %359 = arith.truncf %358 : vector<16x32xf32> to vector<16x32xbf16>
    %c832 = arith.constant 832 : index
    %c0_125 = arith.constant 0 : index
    %360 = vector.load %arg1[%c832, %c0_125] : memref<864x128xbf16, #tpu.memory_space<vmem>>, vector<32x128xbf16>
    %cst_126 = arith.constant dense<0.000000e+00> : vector<16x128xf32>
    %361 = tpu.matmul %359, %360, %cst_126 {dimension_numbers = #tpu.dot_dimension_numbers<[1], [0], [0], [1], [0, 0, 1, 1], [], []>} : vector<16x32xbf16>, vector<32x128xbf16>, vector<16x128xf32> -> vector<16x128xf32>
    %c58 = arith.constant 58 : index
    %c0_127 = arith.constant 0 : index
    %362 = vector.load %arg2[%c58, %c0_127] : memref<64x128xf32, #tpu.memory_space<vmem>>, vector<1x128xf32>
    %363 = vector.broadcast %362 : vector<1x128xf32> to vector<16x128xf32>
    %364 = arith.addf %361, %363 : vector<16x128xf32>
    %c0_128 = arith.constant 0 : index
    %c0_129 = arith.constant 0 : index
    %365 = vector.load %arg3[%c0_128, %c0_129] : memref<16x128xf32, #tpu.memory_space<vmem>>, vector<16x128xf32>
    tpu.vector_store %arg3[%c0_128, %c0_129], %364 {strides = array<i32>} : memref<16x128xf32, #tpu.memory_space<vmem>>, vector<16x128xf32>,
    return
  }
}

</mosaic_0001>

<llo_original>
// kernel: transformer_forward.1
$region0: #{transformer_forward.1}
  #allocation0 [shape = 'u32[]', space=smem, size = 0x4, offset = 0x4, fixed_abs, tag = 'smem constant byte address 0x4 - core index']
  #allocation1 [shape = 'u32[144,128]{1,0:T(1,128)}', space=vmem, size = 0x12000, scoped, tag = 'internal scratch']
  %s0 = inlined_call_operand.vmem [shape: s32[16,1], index: 0, kind: input, shape index: {}]
  %s1 = inlined_call_operand.hbm [shape: bf16[864,128], index: 1, kind: input, shape index: {}]
  %s2 = inlined_call_operand.hbm [shape: f32[64,128], index: 2, kind: input, shape index: {}]
  %s3 = inlined_call_operand.vmem [shape: f32[16,128], index: 3, kind: output, shape index: {}]
  %s4 = sld [smem:[#allocation0]]
  $region30: #{transformer_forward.1} parent=0
    _
  %s6 = ssub.s32 1, %s4
  %s7 = scalar_select 0, %s6, %s4
  $region1: #{transformer_forward.1} parent=0
    #allocation2 [shape = 'u8[221184]{0}', space=vmem, size = 0x36000, scoped, tag = 'input window, operand 1, single buffered']
    #allocation3 [shape = 's32[1]{0}', space=sflag, size = 0x4, scoped, tag = 'scoped memory for transformer_forward.1']
    #allocation4 [shape = 'u8[32768]{0}', space=vmem, size = 0x8000, scoped, tag = 'input window, operand 2, single buffered']
    #allocation5 [shape = 's32[1]{0}', space=sflag, size = 0x4, scoped, tag = 'scoped memory for transformer_forward.1']
    %8 = vsyncpa [#allocation3], 0
    %9 = vsyncpa [#allocation5], 0
    // Predicated region
    $region2: #{transformer_forward.1} parent=1 // pred_check
      _
    $region3: #{transformer_forward.1} parent=1 // pred_check_branch
      %11 = sbr.rel (0) target = $region5
    $region4: #{transformer_forward.1} parent=1 // pred_region
      _
    $region5: #{transformer_forward.1} parent=1 // pred_fallthru
      _
    // Predicated region
    $region6: #{transformer_forward.1} parent=1 // pred_check
      _
    $region7: #{transformer_forward.1} parent=1 // pred_check_branch
      %13 = sbr.rel (0) target = $region9
    $region8: #{transformer_forward.1} parent=1 // pred_region
      %s15 = ssub.s32 6912, 6912
      %16 = vsyncadd [#allocation3], %s15
      %s17 = sshll.u32 [#allocation2], 4
      %s18 = int_to_ptr.vmem [resolvable:$true] %s17
      %23 = dma.hbm_to_vmem [thread:$0]  %s1, 6912, %s18, [#allocation3], 64, 64, 4
    $region9: #{transformer_forward.1} parent=1 // pred_fallthru
      _
    // Predicated region
    $region10: #{transformer_forward.1} parent=1 // pred_check
      _
    $region11: #{transformer_forward.1} parent=1 // pred_check_branch
      %25 = sbr.rel (0) target = $region13
    $region12: #{transformer_forward.1} parent=1 // pred_region
      %s27 = ssub.s32 1024, 1024
      %28 = vsyncadd [#allocation5], %s27
      %s29 = sshll.u32 [#allocation4], 4
      %s30 = int_to_ptr.vmem [resolvable:$true] %s29
      %35 = dma.hbm_to_vmem [thread:$0]  %s2, 1024, %s30, [#allocation5], 128, 128, 8
    $region13: #{transformer_forward.1} parent=1 // pred_fallthru
      _
    // Predicated region
    $region14: #{transformer_forward.1} parent=1 // pred_check
      _
    $region15: #{transformer_forward.1} parent=1 // pred_check_branch
      %37 = sbr.rel (0) target = $region17
    $region16: #{transformer_forward.1} parent=1 // pred_region
      %38 = dma.done [#allocation3], 6912
    $region17: #{transformer_forward.1} parent=1 // pred_fallthru
      _
    // Predicated region
    $region18: #{transformer_forward.1} parent=1 // pred_check
      _
    $region19: #{transformer_forward.1} parent=1 // pred_check_branch
      %40 = sbr.rel (0) target = $region21
    $region20: #{transformer_forward.1} parent=1 // pred_region
      %41 = dma.done [#allocation5], 1024
    $region21: #{transformer_forward.1} parent=1 // pred_fallthru
      _
    %v43 = vld [vmem:[%s0] sm:$0xff]
    %v44 = vld [vmem:[%s0 + $0x8] sm:$0xff]
    %v45 = vlaneseq
    %v46 = vand.u32 %v45, 127
    %47 = vset.pattern.permute.xlu0 0
    %48 = vperm.xlu0 %47, %v43
    %v49 = vpop.permute.xlu0 %48
    %50 = vset.pattern.permute.xlu0 0
    %51 = vperm.xlu0 %50, %v44
    %v52 = vpop.permute.xlu0 %51
    %vm53 = vcmp.eq.s32.totalorder %v49, %v46
    %vm54 = vcmp.eq.s32.totalorder %v52, %v46
    %v55 = vsel %vm53, 1, 0
    %v56 = vsel %vm54, 1, 0
    %v57 = vcvt.s32.f32 %v55
    %v58 = vcvt.s32.f32 %v56
    %v59 = vpack.c.bf16 %v58, %v57
    %v60 = vld [vmem:[#allocation2] sm:$0xf]
    %v61 = vld [vmem:[#allocation2 + $0x4] sm:$0xf]
    %v62 = vld [vmem:[#allocation2 + $0x8] sm:$0xf]
    %v63 = vld [vmem:[#allocation2 + $0xc] sm:$0xf]
    %v64 = vld [vmem:[#allocation2 + $0x10] sm:$0xf]
    %v65 = vld [vmem:[#allocation2 + $0x14] sm:$0xf]
    %v66 = vld [vmem:[#allocation2 + $0x18] sm:$0xf]
    %v67 = vld [vmem:[#allocation2 + $0x1c] sm:$0xf]
    %v68 = vld [vmem:[#allocation4] sm:$0xff]
    %v69 = vld [vmem:[#allocation4 + $0x8] sm:$0xff]
    %v78 = vunpack.c.l.b16 %v60
    %v79 = vunpack.c.l.b16 %v61
    %v80 = vunpack.c.l.b16 %v62
    %v81 = vunpack.c.l.b16 %v63
    %v82 = vunpack.c.l.b16 %v64
    %v83 = vunpack.c.l.b16 %v65
    %v84 = vunpack.c.l.b16 %v66
    %v85 = vunpack.c.l.b16 %v67
    %v86 = vpack.c.b16 %v79, %v78
    %v87 = vpack.c.b16 %v81, %v80
    %v88 = vpack.c.b16 %v83, %v82
    %v89 = vpack.c.b16 %v85, %v84
    %vm94 = vcmask 523264
    %v96 = vsel %vm94, %v59, 0
    %98 = vmatprep.subr.bf16.mxu0 0
    %99 = vmatpush1.bf16.msra.mxu0 0
    %100 = vmatprep.subr.bf16.mxu0 0
    %101 = vmatpush1.bf16.msra.mxu0 0
    %102 = vmatprep.subr.bf16.mxu0 0
    %103 = vmatpush1.bf16.msra.mxu0 0
    %104 = vmatprep.subr.bf16.mxu0 0
    %105 = vmatpush1.bf16.msra.mxu0 0
    %106 = vmatprep.subr.bf16.mxu0 0
    %107 = vmatpush1.bf16.msra.mxu0 %v89
    %108 = vmatprep.subr.bf16.mxu0 0
    %109 = vmatpush1.bf16.msra.mxu0 %v88
    %110 = vmatprep.subr.bf16.mxu0 0
    %111 = vmatpush1.bf16.msra.mxu0 %v87
    %112 = vmatprep.subr.bf16.mxu0 0
    %113 = vmatpush1.bf16.msra.mxu0 %v86
    %114 = vmatprep.subr.bf16.mxu0 0
    %115 = vmatpush2.bf16.msra.mxu0 0
    %116 = vmatprep.subr.bf16.mxu0 0
    %117 = vmatpush2.bf16.msra.mxu0 0
    %118 = vmatprep.subr.bf16.mxu0 0
    %119 = vmatpush2.bf16.msra.mxu0 0
    %120 = vmatprep.subr.bf16.mxu0 0
    %121 = vmatpush2.bf16.msra.mxu0 0
    %122 = vmatprep.subr.bf16.mxu0 0
    %123 = vmatpush2.bf16.msra.mxu0 0
    %124 = vmatprep.subr.bf16.mxu0 0
    %125 = vmatpush2.bf16.msra.mxu0 0
    %126 = vmatprep.subr.bf16.mxu0 0
    %127 = vmatpush2.bf16.msra.mxu0 0
    %128 = vmatprep.subr.bf16.mxu0 0
    %129 = vmatpush2.bf16.msra.mxu0 0
    %130 = vmatprep.mubr.bf16.mxu0 0
    %131 = vmatmul.mubr.bf16.gmra.mxu0 %v96
    %v132 = vpop.f32.mrf.mxu0
    %v133 = vadd.f32 %v68, %v132
    %v134 = vpop.f32.mrf.mxu0
    %v135 = vpop.f32.mrf.mxu0
    %v136 = vadd.f32 %v69, %v135
    %v137 = vpop.f32.mrf.mxu0
    %138 = vdwg.mxu0
    %v139 = vld [vmem:[#allocation4 + $0x10] sm:$0xff]
    %v140 = vld [vmem:[#allocation4 + $0x18] sm:$0x1]
    %v141 = vld [vmem:[#allocation4 + $0x19] sm:$0x1]
    %vm142 = vcmask 261120
    %v143 = vsel %vm142, %v133, 0.0
    %144 = vadd.xlane.f32.xlu0 %v143
    %v145 = vpop.xlane.xlu0 %144
    %v146 = vsel %vm142, %v136, 0.0
    %147 = vadd.xlane.f32.xlu0 %v146
    %v148 = vpop.xlane.xlu0 %147
    %v149 = vrcp.pop 32.0
    %v150 = vmul.f32 %v145, %v149
    %v151 = vmul.f32 %v148, %v149
    %v152 = vsub.f32 %v133, %v150
    %v153 = vsub.f32 %v136, %v151
    %v154 = vmul.f32 %v152, %v152
    %v155 = vmul.f32 %v153, %v153
    %v156 = vsel %vm142, %v154, 0.0
    %157 = vadd.xlane.f32.xlu0 %v156
    %v158 = vpop.xlane.xlu0 %157
    %v159 = vsel %vm142, %v155, 0.0
    %160 = vadd.xlane.f32.xlu0 %v159
    %v161 = vpop.xlane.xlu0 %160
    %v162 = vmul.f32 %v158, %v149
    %v163 = vmul.f32 %v161, %v149
    %v164 = vadd.f32 %v162, 1e-05
    %v165 = vadd.f32 %v163, 1e-05
    %v166 = vrsqrt.pop %v164
    %v167 = vrsqrt.pop %v165
    %v168 = vmul.f32 %v152, %v166
    %v169 = vmul.f32 %v153, %v167
    %v170 = vlaneseq
    %v171 = vshrl.u32 %v170, 7
    %v172 = vsub.s32 0, %v171
    %v173 = vrot.slane %v140, %v172
    %v174 = vmul.f32 %v168, %v173
    %v175 = vmul.f32 %v169, %v173
    %v176 = vlaneseq
    %v177 = vshrl.u32 %v176, 7
    %v178 = vsub.s32 0, %v177
    %v179 = vrot.slane %v141, %v178
    %v180 = vadd.f32 %v174, %v179
    %v181 = vadd.f32 %v175, %v179
    %v182 = vpack.c.bf16 %v181, %v180
    %v183 = vld [vmem:[#allocation2 + $0x20] sm:$0xf]
    %v184 = vld [vmem:[#allocation2 + $0x24] sm:$0xf]
    %v185 = vld [vmem:[#allocation2 + $0x28] sm:$0xf]
    %v186 = vld [vmem:[#allocation2 + $0x2c] sm:$0xf]
    %v187 = vld [vmem:[#allocation4 + $0x1a] sm:$0x1]
    %v188 = vlaneseq
    %v189 = vshrl.u32 %v188, 7
    %v190 = vsub.s32 0, %v189
    %v191 = vrot.slane %v187, %v190
    %v196 = vunpack.c.l.b16 %v183
    %v197 = vunpack.c.l.b16 %v184
    %v198 = vunpack.c.l.b16 %v185
    %v199 = vunpack.c.l.b16 %v186
    %v200 = vpack.c.b16 %v197, %v196
    %v201 = vpack.c.b16 %v199, %v198
    %v205 = vsel %vm142, %v182, 0
    %207 = vmatprep.subr.bf16.mxu0 0
    %208 = vmatpush1.bf16.msra.mxu0 0
    %209 = vmatprep.subr.bf16.mxu0 0
    %210 = vmatpush1.bf16.msra.mxu0 0
    %211 = vmatprep.subr.bf16.mxu0 0
    %212 = vmatpush1.bf16.msra.mxu0 0
    %213 = vmatprep.subr.bf16.mxu0 0
    %214 = vmatpush1.bf16.msra.mxu0 0
    %215 = vmatprep.subr.bf16.mxu0 0
    %216 = vmatpush1.bf16.msra.mxu0 0
    %217 = vmatprep.subr.bf16.mxu0 0
    %218 = vmatpush1.bf16.msra.mxu0 0
    %219 = vmatprep.subr.bf16.mxu0 0
    %220 = vmatpush1.bf16.msra.mxu0 %v201
    %221 = vmatprep.subr.bf16.mxu0 0
    %222 = vmatpush1.bf16.msra.mxu0 %v200
    %223 = vmatprep.subr.bf16.mxu0 0
    %224 = vmatpush2.bf16.msra.mxu0 0
    %225 = vmatprep.subr.bf16.mxu0 0
    %226 = vmatpush2.bf16.msra.mxu0 0
    %227 = vmatprep.subr.bf16.mxu0 0
    %228 = vmatpush2.bf16.msra.mxu0 0
    %229 = vmatprep.subr.bf16.mxu0 0
    %230 = vmatpush2.bf16.msra.mxu0 0
    %231 = vmatprep.subr.bf16.mxu0 0
    %232 = vmatpush2.bf16.msra.mxu0 0
    %233 = vmatprep.subr.bf16.mxu0 0
    %234 = vmatpush2.bf16.msra.mxu0 0
    %235 = vmatprep.subr.bf16.mxu0 0
    %236 = vmatpush2.bf16.msra.mxu0 0
    %237 = vmatprep.subr.bf16.mxu0 0
    %238 = vmatpush2.bf16.msra.mxu0 0
    %239 = vmatprep.mubr.bf16.mxu0 0
    %240 = vmatmul.mubr.bf16.gmra.mxu0 %v205
    %v241 = vpop.f32.mrf.mxu0
    %v242 = vadd.f32 %v191, %v241
    %v243 = vpop.f32.mrf.mxu0
    %v244 = vpop.f32.mrf.mxu0
    %v245 = vadd.f32 %v191, %v244
    %v246 = vpop.f32.mrf.mxu0
    %247 = vdwg.mxu0
    %v248 = vld [vmem:[#allocation2 + $0x40] sm:$0xf]
    %v249 = vld [vmem:[#allocation2 + $0x44] sm:$0xf]
    %v250 = vld [vmem:[#allocation2 + $0x48] sm:$0xf]
    %v251 = vld [vmem:[#allocation2 + $0x4c] sm:$0xf]
    %v252 = vld [vmem:[#allocation4 + $0x1c] sm:$0x1]
    %v253 = vlaneseq
    %v254 = vshrl.u32 %v253, 7
    %v255 = vsub.s32 0, %v254
    %v256 = vrot.slane %v252, %v255
    %v261 = vunpack.c.l.b16 %v248
    %v262 = vunpack.c.l.b16 %v249
    %v263 = vunpack.c.l.b16 %v250
    %v264 = vunpack.c.l.b16 %v251
    %v265 = vpack.c.b16 %v262, %v261
    %v266 = vpack.c.b16 %v264, %v263
    %269 = vmatprep.subr.bf16.mxu0 0
    %270 = vmatpush1.bf16.msra.mxu0 0
    %271 = vmatprep.subr.bf16.mxu0 0
    %272 = vmatpush1.bf16.msra.mxu0 0
    %273 = vmatprep.subr.bf16.mxu0 0
    %274 = vmatpush1.bf16.msra.mxu0 0
    %275 = vmatprep.subr.bf16.mxu0 0
    %276 = vmatpush1.bf16.msra.mxu0 0
    %277 = vmatprep.subr.bf16.mxu0 0
    %278 = vmatpush1.bf16.msra.mxu0 0
    %279 = vmatprep.subr.bf16.mxu0 0
    %280 = vmatpush1.bf16.msra.mxu0 0
    %281 = vmatprep.subr.bf16.mxu0 0
    %282 = vmatpush1.bf16.msra.mxu0 %v266
    %283 = vmatprep.subr.bf16.mxu0 0
    %284 = vmatpush1.bf16.msra.mxu0 %v265
    %285 = vmatprep.subr.bf16.mxu0 0
    %286 = vmatpush2.bf16.msra.mxu0 0
    %287 = vmatprep.subr.bf16.mxu0 0
    %288 = vmatpush2.bf16.msra.mxu0 0
    %289 = vmatprep.subr.bf16.mxu0 0
    %290 = vmatpush2.bf16.msra.mxu0 0
    %291 = vmatprep.subr.bf16.mxu0 0
    %292 = vmatpush2.bf16.msra.mxu0 0
    %293 = vmatprep.subr.bf16.mxu0 0
    %294 = vmatpush2.bf16.msra.mxu0 0
    %295 = vmatprep.subr.bf16.mxu0 0
    %296 = vmatpush2.bf16.msra.mxu0 0
    %297 = vmatprep.subr.bf16.mxu0 0
    %298 = vmatpush2.bf16.msra.mxu0 0
    %299 = vmatprep.subr.bf16.mxu0 0
    %300 = vmatpush2.bf16.msra.mxu0 0
    %301 = vmatprep.mubr.bf16.mxu0 0
    %302 = vmatmul.mubr.bf16.gmra.mxu0 %v205
    %v303 = vpop.f32.mrf.mxu0
    %v304 = vadd.f32 %v256, %v303
    %v305 = vpop.f32.mrf.mxu0
    %v306 = vpop.f32.mrf.mxu0
    %v307 = vadd.f32 %v256, %v306
    %v308 = vpop.f32.mrf.mxu0
    %309 = vdwg.mxu0
    %v310 = vld [vmem:[#allocation2 + $0x60] sm:$0xf]
    %v311 = vld [vmem:[#allocation2 + $0x64] sm:$0xf]
    %v312 = vld [vmem:[#allocation2 + $0x68] sm:$0xf]
    %v313 = vld [vmem:[#allocation2 + $0x6c] sm:$0xf]
    %v314 = vld [vmem:[#allocation4 + $0x1e] sm:$0x1]
    %v315 = vlaneseq
    %v316 = vshrl.u32 %v315, 7
    %v317 = vsub.s32 0, %v316
    %v318 = vrot.slane %v314, %v317
    %v323 = vunpack.c.l.b16 %v310
    %v324 = vunpack.c.l.b16 %v311
    %v325 = vunpack.c.l.b16 %v312
    %v326 = vunpack.c.l.b16 %v313
    %v327 = vpack.c.b16 %v324, %v323
    %v328 = vpack.c.b16 %v326, %v325
    %331 = vmatprep.subr.bf16.mxu0 0
    %332 = vmatpush1.bf16.msra.mxu0 0
    %333 = vmatprep.subr.bf16.mxu0 0
    %334 = vmatpush1.bf16.msra.mxu0 0
    %335 = vmatprep.subr.bf16.mxu0 0
    %336 = vmatpush1.bf16.msra.mxu0 0
    %337 = vmatprep.subr.bf16.mxu0 0
    %338 = vmatpush1.bf16.msra.mxu0 0
    %339 = vmatprep.subr.bf16.mxu0 0
    %340 = vmatpush1.bf16.msra.mxu0 0
    %341 = vmatprep.subr.bf16.mxu0 0
    %342 = vmatpush1.bf16.msra.mxu0 0
    %343 = vmatprep.subr.bf16.mxu0 0
    %344 = vmatpush1.bf16.msra.mxu0 %v328
    %345 = vmatprep.subr.bf16.mxu0 0
    %346 = vmatpush1.bf16.msra.mxu0 %v327
    %347 = vmatprep.subr.bf16.mxu0 0
    %348 = vmatpush2.bf16.msra.mxu0 0
    %349 = vmatprep.subr.bf16.mxu0 0
    %350 = vmatpush2.bf16.msra.mxu0 0
    %351 = vmatprep.subr.bf16.mxu0 0
    %352 = vmatpush2.bf16.msra.mxu0 0
    %353 = vmatprep.subr.bf16.mxu0 0
    %354 = vmatpush2.bf16.msra.mxu0 0
    %355 = vmatprep.subr.bf16.mxu0 0
    %356 = vmatpush2.bf16.msra.mxu0 0
    %357 = vmatprep.subr.bf16.mxu0 0
    %358 = vmatpush2.bf16.msra.mxu0 0
    %359 = vmatprep.subr.bf16.mxu0 0
    %360 = vmatpush2.bf16.msra.mxu0 0
    %361 = vmatprep.subr.bf16.mxu0 0
    %362 = vmatpush2.bf16.msra.mxu0 0
    %363 = vmatprep.mubr.bf16.mxu0 0
    %364 = vmatmul.mubr.bf16.gmra.mxu0 %v205
    %v365 = vpop.f32.mrf.mxu0
    %v366 = vadd.f32 %v318, %v365
    %v367 = vpop.f32.mrf.mxu0
    %v368 = vpop.f32.mrf.mxu0
    %v369 = vadd.f32 %v318, %v368
    %v370 = vpop.f32.mrf.mxu0
    %371 = vdwg.mxu0
    %v372 = vpack.c.bf16 %v242, %v242
    %v373 = vpack.c.bf16 %v245, %v245
    %v374 = vpack.c.bf16 %v304, %v304
    %v375 = vpack.c.bf16 %v307, %v307
    %v376 = vpack.c.bf16 %v366, %v366
    %v377 = vpack.c.bf16 %v369, %v369
    %vm378 = vcmask 130048
    %v380 = vsel %vm378, %v372, 0
    %v383 = vsel %vm378, %v374, 0
    %385 = vmatprep.subr.bf16.mxu0 0
    %386 = vmatpush1.bf16.xpose.msra.mxu0 0
    %387 = vmatprep.subr.bf16.mxu0 0
    %388 = vmatpush1.bf16.xpose.msra.mxu0 0
    %389 = vmatprep.subr.bf16.mxu0 0
    %390 = vmatpush1.bf16.xpose.msra.mxu0 0
    %391 = vmatprep.subr.bf16.mxu0 0
    %392 = vmatpush1.bf16.xpose.msra.mxu0 0
    %393 = vmatprep.subr.bf16.mxu0 0
    %394 = vmatpush1.bf16.xpose.msra.mxu0 0
    %395 = vmatprep.subr.bf16.mxu0 0
    %396 = vmatpush1.bf16.xpose.msra.mxu0 0
    %397 = vmatprep.subr.bf16.mxu0 0
    %398 = vmatpush1.bf16.xpose.msra.mxu0 0
    %399 = vmatprep.subr.bf16.mxu0 0
    %400 = vmatpush1.bf16.xpose.msra.mxu0 %v383
    %401 = vmatprep.subr.bf16.mxu0 0
    %402 = vmatpush2.bf16.xpose.msra.mxu0 0
    %403 = vmatprep.subr.bf16.mxu0 0
    %404 = vmatpush2.bf16.xpose.msra.mxu0 0
    %405 = vmatprep.subr.bf16.mxu0 0
    %406 = vmatpush2.bf16.xpose.msra.mxu0 0
    %407 = vmatprep.subr.bf16.mxu0 0
    %408 = vmatpush2.bf16.xpose.msra.mxu0 0
    %409 = vmatprep.subr.bf16.mxu0 0
    %410 = vmatpush2.bf16.xpose.msra.mxu0 0
    %411 = vmatprep.subr.bf16.mxu0 0
    %412 = vmatpush2.bf16.xpose.msra.mxu0 0
    %413 = vmatprep.subr.bf16.mxu0 0
    %414 = vmatpush2.bf16.xpose.msra.mxu0 0
    %415 = vmatprep.subr.bf16.mxu0 0
    %416 = vmatpush2.bf16.xpose.msra.mxu0 0
    %417 = vmatprep.mubr.bf16.mxu0 0
    %418 = vmatmul.mubr.bf16.gmra.mxu0 %v380
    %v419 = vpop.f32.mrf.mxu0
    %v420 = vadd.f32 %v139, %v419
    %v421 = vpop.f32.mrf.mxu0
    %v422 = vpop.f32.mrf.mxu0
    %v423 = vpop.f32.mrf.mxu0
    %424 = vdwg.mxu0
    %v426 = vsel %vm378, %v373, 0
    %v429 = vsel %vm378, %v375, 0
    %431 = vmatprep.subr.bf16.mxu0 0
    %432 = vmatpush1.bf16.xpose.msra.mxu0 0
    %433 = vmatprep.subr.bf16.mxu0 0
    %434 = vmatpush1.bf16.xpose.msra.mxu0 0
    %435 = vmatprep.subr.bf16.mxu0 0
    %436 = vmatpush1.bf16.xpose.msra.mxu0 0
    %437 = vmatprep.subr.bf16.mxu0 0
    %438 = vmatpush1.bf16.xpose.msra.mxu0 0
    %439 = vmatprep.subr.bf16.mxu0 0
    %440 = vmatpush1.bf16.xpose.msra.mxu0 0
    %441 = vmatprep.subr.bf16.mxu0 0
    %442 = vmatpush1.bf16.xpose.msra.mxu0 0
    %443 = vmatprep.subr.bf16.mxu0 0
    %444 = vmatpush1.bf16.xpose.msra.mxu0 0
    %445 = vmatprep.subr.bf16.mxu0 0
    %446 = vmatpush1.bf16.xpose.msra.mxu0 %v429
    %447 = vmatprep.subr.bf16.mxu0 0
    %448 = vmatpush2.bf16.xpose.msra.mxu0 0
    %449 = vmatprep.subr.bf16.mxu0 0
    %450 = vmatpush2.bf16.xpose.msra.mxu0 0
    %451 = vmatprep.subr.bf16.mxu0 0
    %452 = vmatpush2.bf16.xpose.msra.mxu0 0
    %453 = vmatprep.subr.bf16.mxu0 0
    %454 = vmatpush2.bf16.xpose.msra.mxu0 0
    %455 = vmatprep.subr.bf16.mxu0 0
    %456 = vmatpush2.bf16.xpose.msra.mxu0 0
    %457 = vmatprep.subr.bf16.mxu0 0
    %458 = vmatpush2.bf16.xpose.msra.mxu0 0
    %459 = vmatprep.subr.bf16.mxu0 0
    %460 = vmatpush2.bf16.xpose.msra.mxu0 0
    %461 = vmatprep.subr.bf16.mxu0 0
    %462 = vmatpush2.bf16.xpose.msra.mxu0 0
    %463 = vmatprep.mubr.bf16.mxu0 0
    %464 = vmatmul.mubr.bf16.gmra.mxu0 %v426
    %v465 = vpop.f32.mrf.mxu0
    %v466 = vadd.f32 %v139, %v465
    %v467 = vpop.f32.mrf.mxu0
    %v468 = vpop.f32.mrf.mxu0
    %v469 = vpop.f32.mrf.mxu0
    %470 = vdwg.mxu0
    %vm471 = vcmask 64512
    %v472 = vsel %vm471, %v420, -inf
    %473 = vmax.xlane.f32.xlu0 %v472
    %v474 = vpop.xlane.xlu0 %473
    %v475 = vsel %vm471, %v466, -inf
    %476 = vmax.xlane.f32.xlu0 %v475
    %v477 = vpop.xlane.xlu0 %476
    %v478 = vsub.f32 %v420, %v474
    %v479 = vsub.f32 %v466, %v477
    %v480 = vmul.f32 %v478, 1.442695
    %v481 = vpow.pop %v480
    %v482 = vmul.f32 %v479, 1.442695
    %v483 = vpow.pop %v482
    %v484 = vsel %vm471, %v481, 0.0
    %485 = vadd.xlane.f32.xlu0 %v484
    %v486 = vpop.xlane.xlu0 %485
    %v487 = vsel %vm471, %v483, 0.0
    %488 = vadd.xlane.f32.xlu0 %v487
    %v489 = vpop.xlane.xlu0 %488
    %v490 = vrcp.pop %v486
    %v491 = vrcp.pop %v489
    %v492 = vmul.f32 %v481, %v490
    %v493 = vmul.f32 %v483, %v491
    %v494 = vpack.c.bf16 %v492, %v492
    %v495 = vpack.c.bf16 %v493, %v493
    %v497 = vsel %vm471, %v494, 0
    %vm499 = vcmask 1043456
    %v501 = vsel %vm499, %v376, 0
    %503 = vmatprep.subr.bf16.mxu0 0
    %504 = vmatpush1.bf16.msra.mxu0 0
    %505 = vmatprep.subr.bf16.mxu0 0
    %506 = vmatpush1.bf16.msra.mxu0 0
    %507 = vmatprep.subr.bf16.mxu0 0
    %508 = vmatpush1.bf16.msra.mxu0 0
    %509 = vmatprep.subr.bf16.mxu0 0
    %510 = vmatpush1.bf16.msra.mxu0 0
    %511 = vmatprep.subr.bf16.mxu0 0
    %512 = vmatpush1.bf16.msra.mxu0 0
    %513 = vmatprep.subr.bf16.mxu0 0
    %514 = vmatpush1.bf16.msra.mxu0 0
    %515 = vmatprep.subr.bf16.mxu0 0
    %516 = vmatpush1.bf16.msra.mxu0 0
    %517 = vmatprep.subr.bf16.mxu0 0
    %518 = vmatpush1.bf16.msra.mxu0 %v501
    %519 = vmatprep.subr.bf16.mxu0 0
    %520 = vmatpush2.bf16.msra.mxu0 0
    %521 = vmatprep.subr.bf16.mxu0 0
    %522 = vmatpush2.bf16.msra.mxu0 0
    %523 = vmatprep.subr.bf16.mxu0 0
    %524 = vmatpush2.bf16.msra.mxu0 0
    %525 = vmatprep.subr.bf16.mxu0 0
    %526 = vmatpush2.bf16.msra.mxu0 0
    %527 = vmatprep.subr.bf16.mxu0 0
    %528 = vmatpush2.bf16.msra.mxu0 0
    %529 = vmatprep.subr.bf16.mxu0 0
    %530 = vmatpush2.bf16.msra.mxu0 0
    %531 = vmatprep.subr.bf16.mxu0 0
    %532 = vmatpush2.bf16.msra.mxu0 0
    %533 = vmatprep.subr.bf16.mxu0 0
    %534 = vmatpush2.bf16.msra.mxu0 0
    %535 = vmatprep.mubr.bf16.mxu0 0
    %536 = vmatmul.mubr.bf16.gmra.mxu0 %v497
    %v537 = vpop.f32.mrf.mxu0
    %v538 = vadd.f32 0.0, %v537
    %v539 = vpop.f32.mrf.mxu0
    %v540 = vpop.f32.mrf.mxu0
    %v541 = vpop.f32.mrf.mxu0
    %542 = vdwg.mxu0
    %v544 = vsel %vm471, %v495, 0
    %v547 = vsel %vm499, %v377, 0
    %549 = vmatprep.subr.bf16.mxu0 0
    %550 = vmatpush1.bf16.msra.mxu0 0
    %551 = vmatprep.subr.bf16.mxu0 0
    %552 = vmatpush1.bf16.msra.mxu0 0
    %553 = vmatprep.subr.bf16.mxu0 0
    %554 = vmatpush1.bf16.msra.mxu0 0
    %555 = vmatprep.subr.bf16.mxu0 0
    %556 = vmatpush1.bf16.msra.mxu0 0
    %557 = vmatprep.subr.bf16.mxu0 0
    %558 = vmatpush1.bf16.msra.mxu0 0
    %559 = vmatprep.subr.bf16.mxu0 0
    %560 = vmatpush1.bf16.msra.mxu0 0
    %561 = vmatprep.subr.bf16.mxu0 0
    %562 = vmatpush1.bf16.msra.mxu0 0
    %563 = vmatprep.subr.bf16.mxu0 0
    %564 = vmatpush1.bf16.msra.mxu0 %v547
    %565 = vmatprep.subr.bf16.mxu0 0
    %566 = vmatpush2.bf16.msra.mxu0 0
    %567 = vmatprep.subr.bf16.mxu0 0
    %568 = vmatpush2.bf16.msra.mxu0 0
    %569 = vmatprep.subr.bf16.mxu0 0
    %570 = vmatpush2.bf16.msra.mxu0 0
    %571 = vmatprep.subr.bf16.mxu0 0
    %572 = vmatpush2.bf16.msra.mxu0 0
    %573 = vmatprep.subr.bf16.mxu0 0
    %574 = vmatpush2.bf16.msra.mxu0 0
    %575 = vmatprep.subr.bf16.mxu0 0
    %576 = vmatpush2.bf16.msra.mxu0 0
    %577 = vmatprep.subr.bf16.mxu0 0
    %578 = vmatpush2.bf16.msra.mxu0 0
    %579 = vmatprep.subr.bf16.mxu0 0
    %580 = vmatpush2.bf16.msra.mxu0 0
    %581 = vmatprep.mubr.bf16.mxu0 0
    %582 = vmatmul.mubr.bf16.gmra.mxu0 %v544
    %v583 = vpop.f32.mrf.mxu0
    %v584 = vadd.f32 0.0, %v583
    %v585 = vpop.f32.mrf.mxu0
    %v586 = vpop.f32.mrf.mxu0
    %v587 = vpop.f32.mrf.mxu0
    %588 = vdwg.mxu0
    %v589 = vpack.c.bf16 %v584, %v538
    %v590 = vld [vmem:[#allocation2 + $0x80] sm:$0xf]
    %v591 = vld [vmem:[#allocation2 + $0x84] sm:$0xf]
    %v592 = vld [vmem:[#allocation2 + $0x30] sm:$0xf]
    %v593 = vld [vmem:[#allocation2 + $0x34] sm:$0xf]
    %v594 = vld [vmem:[#allocation2 + $0x38] sm:$0xf]
    %v595 = vld [vmem:[#allocation2 + $0x3c] sm:$0xf]
    %v596 = vld [vmem:[#allocation4 + $0x1b] sm:$0x1]
    %v597 = vlaneseq
    %v598 = vshrl.u32 %v597, 7
    %v599 = vsub.s32 0, %v598
    %v600 = vrot.slane %v596, %v599
    %v605 = vunpack.c.l.b16 %v592
    %v606 = vunpack.c.l.b16 %v593
    %v607 = vunpack.c.l.b16 %v594
    %v608 = vunpack.c.l.b16 %v595
    %v609 = vpack.c.b16 %v606, %v605
    %v610 = vpack.c.b16 %v608, %v607
    %613 = vmatprep.subr.bf16.mxu0 0
    %614 = vmatpush1.bf16.msra.mxu0 0
    %615 = vmatprep.subr.bf16.mxu0 0
    %616 = vmatpush1.bf16.msra.mxu0 0
    %617 = vmatprep.subr.bf16.mxu0 0
    %618 = vmatpush1.bf16.msra.mxu0 0
    %619 = vmatprep.subr.bf16.mxu0 0
    %620 = vmatpush1.bf16.msra.mxu0 0
    %621 = vmatprep.subr.bf16.mxu0 0
    %622 = vmatpush1.bf16.msra.mxu0 0
    %623 = vmatprep.subr.bf16.mxu0 0
    %624 = vmatpush1.bf16.msra.mxu0 0
    %625 = vmatprep.subr.bf16.mxu0 0
    %626 = vmatpush1.bf16.msra.mxu0 %v610
    %627 = vmatprep.subr.bf16.mxu0 0
    %628 = vmatpush1.bf16.msra.mxu0 %v609
    %629 = vmatprep.subr.bf16.mxu0 0
    %630 = vmatpush2.bf16.msra.mxu0 0
    %631 = vmatprep.subr.bf16.mxu0 0
    %632 = vmatpush2.bf16.msra.mxu0 0
    %633 = vmatprep.subr.bf16.mxu0 0
    %634 = vmatpush2.bf16.msra.mxu0 0
    %635 = vmatprep.subr.bf16.mxu0 0
    %636 = vmatpush2.bf16.msra.mxu0 0
    %637 = vmatprep.subr.bf16.mxu0 0
    %638 = vmatpush2.bf16.msra.mxu0 0
    %639 = vmatprep.subr.bf16.mxu0 0
    %640 = vmatpush2.bf16.msra.mxu0 0
    %641 = vmatprep.subr.bf16.mxu0 0
    %642 = vmatpush2.bf16.msra.mxu0 0
    %643 = vmatprep.subr.bf16.mxu0 0
    %644 = vmatpush2.bf16.msra.mxu0 0
    %645 = vmatprep.mubr.bf16.mxu0 0
    %646 = vmatmul.mubr.bf16.gmra.mxu0 %v205
    %v647 = vpop.f32.mrf.mxu0
    %v648 = vadd.f32 %v600, %v647
    %v649 = vpop.f32.mrf.mxu0
    %v650 = vpop.f32.mrf.mxu0
    %v651 = vadd.f32 %v600, %v650
    %v652 = vpop.f32.mrf.mxu0
    %653 = vdwg.mxu0
    %v654 = vld [vmem:[#allocation2 + $0x50] sm:$0xf]
    %v655 = vld [vmem:[#allocation2 + $0x54] sm:$0xf]
    %v656 = vld [vmem:[#allocation2 + $0x58] sm:$0xf]
    %v657 = vld [vmem:[#allocation2 + $0x5c] sm:$0xf]
    %v658 = vld [vmem:[#allocation4 + $0x1d] sm:$0x1]
    %v659 = vlaneseq
    %v660 = vshrl.u32 %v659, 7
    %v661 = vsub.s32 0, %v660
    %v662 = vrot.slane %v658, %v661
    %v667 = vunpack.c.l.b16 %v654
    %v668 = vunpack.c.l.b16 %v655
    %v669 = vunpack.c.l.b16 %v656
    %v670 = vunpack.c.l.b16 %v657
    %v671 = vpack.c.b16 %v668, %v667
    %v672 = vpack.c.b16 %v670, %v669
    %675 = vmatprep.subr.bf16.mxu0 0
    %676 = vmatpush1.bf16.msra.mxu0 0
    %677 = vmatprep.subr.bf16.mxu0 0
    %678 = vmatpush1.bf16.msra.mxu0 0
    %679 = vmatprep.subr.bf16.mxu0 0
    %680 = vmatpush1.bf16.msra.mxu0 0
    %681 = vmatprep.subr.bf16.mxu0 0
    %682 = vmatpush1.bf16.msra.mxu0 0
    %683 = vmatprep.subr.bf16.mxu0 0
    %684 = vmatpush1.bf16.msra.mxu0 0
    %685 = vmatprep.subr.bf16.mxu0 0
    %686 = vmatpush1.bf16.msra.mxu0 0
    %687 = vmatprep.subr.bf16.mxu0 0
    %688 = vmatpush1.bf16.msra.mxu0 %v672
    %689 = vmatprep.subr.bf16.mxu0 0
    %690 = vmatpush1.bf16.msra.mxu0 %v671
    %691 = vmatprep.subr.bf16.mxu0 0
    %692 = vmatpush2.bf16.msra.mxu0 0
    %693 = vmatprep.subr.bf16.mxu0 0
    %694 = vmatpush2.bf16.msra.mxu0 0
    %695 = vmatprep.subr.bf16.mxu0 0
    %696 = vmatpush2.bf16.msra.mxu0 0
    %697 = vmatprep.subr.bf16.mxu0 0
    %698 = vmatpush2.bf16.msra.mxu0 0
    %699 = vmatprep.subr.bf16.mxu0 0
    %700 = vmatpush2.bf16.msra.mxu0 0
    %701 = vmatprep.subr.bf16.mxu0 0
    %702 = vmatpush2.bf16.msra.mxu0 0
    %703 = vmatprep.subr.bf16.mxu0 0
    %704 = vmatpush2.bf16.msra.mxu0 0
    %705 = vmatprep.subr.bf16.mxu0 0
    %706 = vmatpush2.bf16.msra.mxu0 0
    %707 = vmatprep.mubr.bf16.mxu0 0
    %708 = vmatmul.mubr.bf16.gmra.mxu0 %v205
    %v709 = vpop.f32.mrf.mxu0
    %v710 = vadd.f32 %v662, %v709
    %v711 = vpop.f32.mrf.mxu0
    %v712 = vpop.f32.mrf.mxu0
    %v713 = vadd.f32 %v662, %v712
    %v714 = vpop.f32.mrf.mxu0
    %715 = vdwg.mxu0
    %v716 = vld [vmem:[#allocation2 + $0x70] sm:$0xf]
    %v717 = vld [vmem:[#allocation2 + $0x74] sm:$0xf]
    %v718 = vld [vmem:[#allocation2 + $0x78] sm:$0xf]
    %v719 = vld [vmem:[#allocation2 + $0x7c] sm:$0xf]
    %v720 = vld [vmem:[#allocation4 + $0x1f] sm:$0x1]
    %v721 = vlaneseq
    %v722 = vshrl.u32 %v721, 7
    %v723 = vsub.s32 0, %v722
    %v724 = vrot.slane %v720, %v723
    %v729 = vunpack.c.l.b16 %v716
    %v730 = vunpack.c.l.b16 %v717
    %v731 = vunpack.c.l.b16 %v718
    %v732 = vunpack.c.l.b16 %v719
    %v733 = vpack.c.b16 %v730, %v729
    %v734 = vpack.c.b16 %v732, %v731
    %737 = vmatprep.subr.bf16.mxu0 0
    %738 = vmatpush1.bf16.msra.mxu0 0
    %739 = vmatprep.subr.bf16.mxu0 0
    %740 = vmatpush1.bf16.msra.mxu0 0
    %741 = vmatprep.subr.bf16.mxu0 0
    %742 = vmatpush1.bf16.msra.mxu0 0
    %743 = vmatprep.subr.bf16.mxu0 0
    %744 = vmatpush1.bf16.msra.mxu0 0
    %745 = vmatprep.subr.bf16.mxu0 0
    %746 = vmatpush1.bf16.msra.mxu0 0
    %747 = vmatprep.subr.bf16.mxu0 0
    %748 = vmatpush1.bf16.msra.mxu0 0
    %749 = vmatprep.subr.bf16.mxu0 0
    %750 = vmatpush1.bf16.msra.mxu0 %v734
    %751 = vmatprep.subr.bf16.mxu0 0
    %752 = vmatpush1.bf16.msra.mxu0 %v733
    %753 = vmatprep.subr.bf16.mxu0 0
    %754 = vmatpush2.bf16.msra.mxu0 0
    %755 = vmatprep.subr.bf16.mxu0 0
    %756 = vmatpush2.bf16.msra.mxu0 0
    %757 = vmatprep.subr.bf16.mxu0 0
    %758 = vmatpush2.bf16.msra.mxu0 0
    %759 = vmatprep.subr.bf16.mxu0 0
    %760 = vmatpush2.bf16.msra.mxu0 0
    %761 = vmatprep.subr.bf16.mxu0 0
    %762 = vmatpush2.bf16.msra.mxu0 0
    %763 = vmatprep.subr.bf16.mxu0 0
    %764 = vmatpush2.bf16.msra.mxu0 0
    %765 = vmatprep.subr.bf16.mxu0 0
    %766 = vmatpush2.bf16.msra.mxu0 0
    %767 = vmatprep.subr.bf16.mxu0 0
    %768 = vmatpush2.bf16.msra.mxu0 0
    %769 = vmatprep.mubr.bf16.mxu0 0
    %770 = vmatmul.mubr.bf16.gmra.mxu0 %v205
    %v771 = vpop.f32.mrf.mxu0
    %v772 = vadd.f32 %v724, %v771
    %v773 = vpop.f32.mrf.mxu0
    %v774 = vpop.f32.mrf.mxu0
    %v775 = vadd.f32 %v724, %v774
    %v776 = vpop.f32.mrf.mxu0
    %777 = vdwg.mxu0
    %v778 = vpack.c.bf16 %v648, %v648
    %v779 = vpack.c.bf16 %v651, %v651
    %v780 = vpack.c.bf16 %v710, %v710
    %v781 = vpack.c.bf16 %v713, %v713
    %v782 = vpack.c.bf16 %v772, %v772
    %v783 = vpack.c.bf16 %v775, %v775
    %v785 = vsel %vm378, %v778, 0
    %v788 = vsel %vm378, %v780, 0
    %790 = vmatprep.subr.bf16.mxu0 0
    %791 = vmatpush1.bf16.xpose.msra.mxu0 0
    %792 = vmatprep.subr.bf16.mxu0 0
    %793 = vmatpush1.bf16.xpose.msra.mxu0 0
    %794 = vmatprep.subr.bf16.mxu0 0
    %795 = vmatpush1.bf16.xpose.msra.mxu0 0
    %796 = vmatprep.subr.bf16.mxu0 0
    %797 = vmatpush1.bf16.xpose.msra.mxu0 0
    %798 = vmatprep.subr.bf16.mxu0 0
    %799 = vmatpush1.bf16.xpose.msra.mxu0 0
    %800 = vmatprep.subr.bf16.mxu0 0
    %801 = vmatpush1.bf16.xpose.msra.mxu0 0
    %802 = vmatprep.subr.bf16.mxu0 0
    %803 = vmatpush1.bf16.xpose.msra.mxu0 0
    %804 = vmatprep.subr.bf16.mxu0 0
    %805 = vmatpush1.bf16.xpose.msra.mxu0 %v788
    %806 = vmatprep.subr.bf16.mxu0 0
    %807 = vmatpush2.bf16.xpose.msra.mxu0 0
    %808 = vmatprep.subr.bf16.mxu0 0
    %809 = vmatpush2.bf16.xpose.msra.mxu0 0
    %810 = vmatprep.subr.bf16.mxu0 0
    %811 = vmatpush2.bf16.xpose.msra.mxu0 0
    %812 = vmatprep.subr.bf16.mxu0 0
    %813 = vmatpush2.bf16.xpose.msra.mxu0 0
    %814 = vmatprep.subr.bf16.mxu0 0
    %815 = vmatpush2.bf16.xpose.msra.mxu0 0
    %816 = vmatprep.subr.bf16.mxu0 0
    %817 = vmatpush2.bf16.xpose.msra.mxu0 0
    %818 = vmatprep.subr.bf16.mxu0 0
    %819 = vmatpush2.bf16.xpose.msra.mxu0 0
    %820 = vmatprep.subr.bf16.mxu0 0
    %821 = vmatpush2.bf16.xpose.msra.mxu0 0
    %822 = vmatprep.mubr.bf16.mxu0 0
    %823 = vmatmul.mubr.bf16.gmra.mxu0 %v785
    %v824 = vpop.f32.mrf.mxu0
    %v825 = vadd.f32 %v139, %v824
    %v826 = vpop.f32.mrf.mxu0
    %v827 = vpop.f32.mrf.mxu0
    %v828 = vpop.f32.mrf.mxu0
    %829 = vdwg.mxu0
    %v831 = vsel %vm378, %v779, 0
    %v834 = vsel %vm378, %v781, 0
    %836 = vmatprep.subr.bf16.mxu0 0
    %837 = vmatpush1.bf16.xpose.msra.mxu0 0
    %838 = vmatprep.subr.bf16.mxu0 0
    %839 = vmatpush1.bf16.xpose.msra.mxu0 0
    %840 = vmatprep.subr.bf16.mxu0 0
    %841 = vmatpush1.bf16.xpose.msra.mxu0 0
    %842 = vmatprep.subr.bf16.mxu0 0
    %843 = vmatpush1.bf16.xpose.msra.mxu0 0
    %844 = vmatprep.subr.bf16.mxu0 0
    %845 = vmatpush1.bf16.xpose.msra.mxu0 0
    %846 = vmatprep.subr.bf16.mxu0 0
    %847 = vmatpush1.bf16.xpose.msra.mxu0 0
    %848 = vmatprep.subr.bf16.mxu0 0
    %849 = vmatpush1.bf16.xpose.msra.mxu0 0
    %850 = vmatprep.subr.bf16.mxu0 0
    %851 = vmatpush1.bf16.xpose.msra.mxu0 %v834
    %852 = vmatprep.subr.bf16.mxu0 0
    %853 = vmatpush2.bf16.xpose.msra.mxu0 0
    %854 = vmatprep.subr.bf16.mxu0 0
    %855 = vmatpush2.bf16.xpose.msra.mxu0 0
    %856 = vmatprep.subr.bf16.mxu0 0
    %857 = vmatpush2.bf16.xpose.msra.mxu0 0
    %858 = vmatprep.subr.bf16.mxu0 0
    %859 = vmatpush2.bf16.xpose.msra.mxu0 0
    %860 = vmatprep.subr.bf16.mxu0 0
    %861 = vmatpush2.bf16.xpose.msra.mxu0 0
    %862 = vmatprep.subr.bf16.mxu0 0
    %863 = vmatpush2.bf16.xpose.msra.mxu0 0
    %864 = vmatprep.subr.bf16.mxu0 0
    %865 = vmatpush2.bf16.xpose.msra.mxu0 0
    %866 = vmatprep.subr.bf16.mxu0 0
    %867 = vmatpush2.bf16.xpose.msra.mxu0 0
    %868 = vmatprep.mubr.bf16.mxu0 0
    %869 = vmatmul.mubr.bf16.gmra.mxu0 %v831
    %v870 = vpop.f32.mrf.mxu0
    %v871 = vadd.f32 %v139, %v870
    %v872 = vpop.f32.mrf.mxu0
    %v873 = vpop.f32.mrf.mxu0
    %v874 = vpop.f32.mrf.mxu0
    %875 = vdwg.mxu0
    %v876 = vsel %vm471, %v825, -inf
    %877 = vmax.xlane.f32.xlu0 %v876
    %v878 = vpop.xlane.xlu0 %877
    %v879 = vsel %vm471, %v871, -inf
    %880 = vmax.xlane.f32.xlu0 %v879
    %v881 = vpop.xlane.xlu0 %880
    %v882 = vsub.f32 %v825, %v878
    %v883 = vsub.f32 %v871, %v881
    %v884 = vmul.f32 %v882, 1.442695
    %v885 = vpow.pop %v884
    %v886 = vmul.f32 %v883, 1.442695
    %v887 = vpow.pop %v886
    %v888 = vsel %vm471, %v885, 0.0
    %889 = vadd.xlane.f32.xlu0 %v888
    %v890 = vpop.xlane.xlu0 %889
    %v891 = vsel %vm471, %v887, 0.0
    %892 = vadd.xlane.f32.xlu0 %v891
    %v893 = vpop.xlane.xlu0 %892
    %v894 = vrcp.pop %v890
    %v895 = vrcp.pop %v893
    %v896 = vmul.f32 %v885, %v894
    %v897 = vmul.f32 %v887, %v895
    %v898 = vpack.c.bf16 %v896, %v896
    %v899 = vpack.c.bf16 %v897, %v897
    %v901 = vsel %vm471, %v898, 0
    %v904 = vsel %vm499, %v782, 0
    %906 = vmatprep.subr.bf16.mxu0 0
    %907 = vmatpush1.bf16.msra.mxu0 0
    %908 = vmatprep.subr.bf16.mxu0 0
    %909 = vmatpush1.bf16.msra.mxu0 0
    %910 = vmatprep.subr.bf16.mxu0 0
    %911 = vmatpush1.bf16.msra.mxu0 0
    %912 = vmatprep.subr.bf16.mxu0 0
    %913 = vmatpush1.bf16.msra.mxu0 0
    %914 = vmatprep.subr.bf16.mxu0 0
    %915 = vmatpush1.bf16.msra.mxu0 0
    %916 = vmatprep.subr.bf16.mxu0 0
    %917 = vmatpush1.bf16.msra.mxu0 0
    %918 = vmatprep.subr.bf16.mxu0 0
    %919 = vmatpush1.bf16.msra.mxu0 0
    %920 = vmatprep.subr.bf16.mxu0 0
    %921 = vmatpush1.bf16.msra.mxu0 %v904
    %922 = vmatprep.subr.bf16.mxu0 0
    %923 = vmatpush2.bf16.msra.mxu0 0
    %924 = vmatprep.subr.bf16.mxu0 0
    %925 = vmatpush2.bf16.msra.mxu0 0
    %926 = vmatprep.subr.bf16.mxu0 0
    %927 = vmatpush2.bf16.msra.mxu0 0
    %928 = vmatprep.subr.bf16.mxu0 0
    %929 = vmatpush2.bf16.msra.mxu0 0
    %930 = vmatprep.subr.bf16.mxu0 0
    %931 = vmatpush2.bf16.msra.mxu0 0
    %932 = vmatprep.subr.bf16.mxu0 0
    %933 = vmatpush2.bf16.msra.mxu0 0
    %934 = vmatprep.subr.bf16.mxu0 0
    %935 = vmatpush2.bf16.msra.mxu0 0
    %936 = vmatprep.subr.bf16.mxu0 0
    %937 = vmatpush2.bf16.msra.mxu0 0
    %938 = vmatprep.mubr.bf16.mxu0 0
    %939 = vmatmul.mubr.bf16.gmra.mxu0 %v901
    %v940 = vpop.f32.mrf.mxu0
    %v941 = vadd.f32 0.0, %v940
    %v942 = vpop.f32.mrf.mxu0
    %v943 = vpop.f32.mrf.mxu0
    %v944 = vpop.f32.mrf.mxu0
    %945 = vdwg.mxu0
    %v947 = vsel %vm471, %v899, 0
    %v950 = vsel %vm499, %v783, 0
    %952 = vmatprep.subr.bf16.mxu0 0
    %953 = vmatpush1.bf16.msra.mxu0 0
    %954 = vmatprep.subr.bf16.mxu0 0
    %955 = vmatpush1.bf16.msra.mxu0 0
    %956 = vmatprep.subr.bf16.mxu0 0
    %957 = vmatpush1.bf16.msra.mxu0 0
    %958 = vmatprep.subr.bf16.mxu0 0
    %959 = vmatpush1.bf16.msra.mxu0 0
    %960 = vmatprep.subr.bf16.mxu0 0
    %961 = vmatpush1.bf16.msra.mxu0 0
    %962 = vmatprep.subr.bf16.mxu0 0
    %963 = vmatpush1.bf16.msra.mxu0 0
    %964 = vmatprep.subr.bf16.mxu0 0
    %965 = vmatpush1.bf16.msra.mxu0 0
    %966 = vmatprep.subr.bf16.mxu0 0
    %967 = vmatpush1.bf16.msra.mxu0 %v950
    %968 = vmatprep.subr.bf16.mxu0 0
    %969 = vmatpush2.bf16.msra.mxu0 0
    %970 = vmatprep.subr.bf16.mxu0 0
    %971 = vmatpush2.bf16.msra.mxu0 0
    %972 = vmatprep.subr.bf16.mxu0 0
    %973 = vmatpush2.bf16.msra.mxu0 0
    %974 = vmatprep.subr.bf16.mxu0 0
    %975 = vmatpush2.bf16.msra.mxu0 0
    %976 = vmatprep.subr.bf16.mxu0 0
    %977 = vmatpush2.bf16.msra.mxu0 0
    %978 = vmatprep.subr.bf16.mxu0 0
    %979 = vmatpush2.bf16.msra.mxu0 0
    %980 = vmatprep.subr.bf16.mxu0 0
    %981 = vmatpush2.bf16.msra.mxu0 0
    %982 = vmatprep.subr.bf16.mxu0 0
    %983 = vmatpush2.bf16.msra.mxu0 0
    %984 = vmatprep.mubr.bf16.mxu0 0
    %985 = vmatmul.mubr.bf16.gmra.mxu0 %v947
    %v986 = vpop.f32.mrf.mxu0
    %v987 = vadd.f32 0.0, %v986
    %v988 = vpop.f32.mrf.mxu0
    %v989 = vpop.f32.mrf.mxu0
    %v990 = vpop.f32.mrf.mxu0
    %991 = vdwg.mxu0
    %v992 = vpack.c.bf16 %v987, %v941
    %v993 = vld [vmem:[#allocation2 + $0x88] sm:$0xf]
    %v994 = vld [vmem:[#allocation2 + $0x8c] sm:$0xf]
    %v997 = vunpack.c.l.b16 %v993
    %v998 = vunpack.c.l.b16 %v994
    %v999 = vpack.c.b16 %v998, %v997
    %v1002 = vsel %vm378, %v992, 0
    %1004 = vmatprep.subr.bf16.mxu0 0
    %1005 = vmatpush1.bf16.msra.mxu0 0
    %1006 = vmatprep.subr.bf16.mxu0 0
    %1007 = vmatpush1.bf16.msra.mxu0 0
    %1008 = vmatprep.subr.bf16.mxu0 0
    %1009 = vmatpush1.bf16.msra.mxu0 0
    %1010 = vmatprep.subr.bf16.mxu0 0
    %1011 = vmatpush1.bf16.msra.mxu0 0
    %1012 = vmatprep.subr.bf16.mxu0 0
    %1013 = vmatpush1.bf16.msra.mxu0 0
    %1014 = vmatprep.subr.bf16.mxu0 0
    %1015 = vmatpush1.bf16.msra.mxu0 0
    %1016 = vmatprep.subr.bf16.mxu0 0
    %1017 = vmatpush1.bf16.msra.mxu0 0
    %1018 = vmatprep.subr.bf16.mxu0 0
    %1019 = vmatpush1.bf16.msra.mxu0 %v999
    %1020 = vmatprep.subr.bf16.mxu0 0
    %1021 = vmatpush2.bf16.msra.mxu0 0
    %1022 = vmatprep.subr.bf16.mxu0 0
    %1023 = vmatpush2.bf16.msra.mxu0 0
    %1024 = vmatprep.subr.bf16.mxu0 0
    %1025 = vmatpush2.bf16.msra.mxu0 0
    %1026 = vmatprep.subr.bf16.mxu0 0
    %1027 = vmatpush2.bf16.msra.mxu0 0
    %1028 = vmatprep.subr.bf16.mxu0 0
    %1029 = vmatpush2.bf16.msra.mxu0 0
    %1030 = vmatprep.subr.bf16.mxu0 0
    %1031 = vmatpush2.bf16.msra.mxu0 0
    %1032 = vmatprep.subr.bf16.mxu0 0
    %1033 = vmatpush2.bf16.msra.mxu0 0
    %1034 = vmatprep.subr.bf16.mxu0 0
    %1035 = vmatpush2.bf16.msra.mxu0 0
    %1036 = vmatprep.mubr.bf16.mxu0 0
    %1037 = vmatmul.mubr.bf16.gmra.mxu0 %v1002
    %v1038 = vpop.f32.mrf.mxu0
    %v1039 = vadd.f32 0.0, %v1038
    %v1040 = vpop.f32.mrf.mxu0
    %v1041 = vpop.f32.mrf.mxu0
    %v1042 = vadd.f32 0.0, %v1041
    %v1043 = vpop.f32.mrf.mxu0
    %1044 = vdwg.mxu0
    %v1047 = vunpack.c.l.b16 %v590
    %v1048 = vunpack.c.l.b16 %v591
    %v1049 = vpack.c.b16 %v1048, %v1047
    %v1052 = vsel %vm378, %v589, 0
    %1054 = vmatprep.subr.bf16.mxu0 0
    %1055 = vmatpush1.bf16.msra.mxu0 0
    %1056 = vmatprep.subr.bf16.mxu0 0
    %1057 = vmatpush1.bf16.msra.mxu0 0
    %1058 = vmatprep.subr.bf16.mxu0 0
    %1059 = vmatpush1.bf16.msra.mxu0 0
    %1060 = vmatprep.subr.bf16.mxu0 0
    %1061 = vmatpush1.bf16.msra.mxu0 0
    %1062 = vmatprep.subr.bf16.mxu0 0
    %1063 = vmatpush1.bf16.msra.mxu0 0
    %1064 = vmatprep.subr.bf16.mxu0 0
    %1065 = vmatpush1.bf16.msra.mxu0 0
    %1066 = vmatprep.subr.bf16.mxu0 0
    %1067 = vmatpush1.bf16.msra.mxu0 0
    %1068 = vmatprep.subr.bf16.mxu0 0
    %1069 = vmatpush1.bf16.msra.mxu0 %v1049
    %1070 = vmatprep.subr.bf16.mxu0 0
    %1071 = vmatpush2.bf16.msra.mxu0 0
    %1072 = vmatprep.subr.bf16.mxu0 0
    %1073 = vmatpush2.bf16.msra.mxu0 0
    %1074 = vmatprep.subr.bf16.mxu0 0
    %1075 = vmatpush2.bf16.msra.mxu0 0
    %1076 = vmatprep.subr.bf16.mxu0 0
    %1077 = vmatpush2.bf16.msra.mxu0 0
    %1078 = vmatprep.subr.bf16.mxu0 0
    %1079 = vmatpush2.bf16.msra.mxu0 0
    %1080 = vmatprep.subr.bf16.mxu0 0
    %1081 = vmatpush2.bf16.msra.mxu0 0
    %1082 = vmatprep.subr.bf16.mxu0 0
    %1083 = vmatpush2.bf16.msra.mxu0 0
    %1084 = vmatprep.subr.bf16.mxu0 0
    %1085 = vmatpush2.bf16.msra.mxu0 0
    %1086 = vmatprep.mubr.bf16.mxu0 0
    %1087 = vmatmul.mubr.bf16.gmra.mxu0 %v1052
    %v1088 = vpop.f32.mrf.mxu0
    %v1089 = vadd.f32 %v1039, %v1088
    %v1090 = vpop.f32.mrf.mxu0
    %v1091 = vpop.f32.mrf.mxu0
    %v1092 = vadd.f32 %v1042, %v1091
    %v1093 = vpop.f32.mrf.mxu0
    %1094 = vdwg.mxu0
    %v1095 = vadd.f32 %v180, %v1089
    %v1096 = vadd.f32 %v181, %v1092
    %v1097 = vld [vmem:[#allocation4 + $0x20] sm:$0x1]
    %v1098 = vlaneseq
    %v1099 = vshrl.u32 %v1098, 7
    %v1100 = vsub.s32 0, %v1099
    %v1101 = vrot.slane %v1097, %v1100
    %v1102 = vadd.f32 %v1095, %v1101
    %v1103 = vadd.f32 %v1096, %v1101
    %v1104 = vld [vmem:[#allocation4 + $0x21] sm:$0x1]
    %v1105 = vld [vmem:[#allocation4 + $0x22] sm:$0x1]
    %v1106 = vsel %vm142, %v1102, 0.0
    %1107 = vadd.xlane.f32.xlu0 %v1106
    %v1108 = vpop.xlane.xlu0 %1107
    %v1109 = vsel %vm142, %v1103, 0.0
    %1110 = vadd.xlane.f32.xlu0 %v1109
    %v1111 = vpop.xlane.xlu0 %1110
    %v1112 = vmul.f32 %v1108, %v149
    %v1113 = vmul.f32 %v1111, %v149
    %v1114 = vsub.f32 %v1102, %v1112
    %v1115 = vsub.f32 %v1103, %v1113
    %v1116 = vmul.f32 %v1114, %v1114
    %v1117 = vmul.f32 %v1115, %v1115
    %v1118 = vsel %vm142, %v1116, 0.0
    %1119 = vadd.xlane.f32.xlu0 %v1118
    %v1120 = vpop.xlane.xlu0 %1119
    %v1121 = vsel %vm142, %v1117, 0.0
    %1122 = vadd.xlane.f32.xlu0 %v1121
    %v1123 = vpop.xlane.xlu0 %1122
    %v1124 = vmul.f32 %v1120, %v149
    %v1125 = vmul.f32 %v1123, %v149
    %v1126 = vadd.f32 %v1124, 1e-05
    %v1127 = vadd.f32 %v1125, 1e-05
    %v1128 = vrsqrt.pop %v1126
    %v1129 = vrsqrt.pop %v1127
    %v1130 = vmul.f32 %v1114, %v1128
    %v1131 = vmul.f32 %v1115, %v1129
    %v1132 = vlaneseq
    %v1133 = vshrl.u32 %v1132, 7
    %v1134 = vsub.s32 0, %v1133
    %v1135 = vrot.slane %v1104, %v1134
    %v1136 = vmul.f32 %v1130, %v1135
    %v1137 = vmul.f32 %v1131, %v1135
    %v1138 = vlaneseq
    %v1139 = vshrl.u32 %v1138, 7
    %v1140 = vsub.s32 0, %v1139
    %v1141 = vrot.slane %v1105, %v1140
    %v1142 = vadd.f32 %v1136, %v1141
    %v1143 = vadd.f32 %v1137, %v1141
    %v1144 = vpack.c.bf16 %v1143, %v1142
    %v1145 = vld [vmem:[#allocation2 + $0x90] sm:$0xf]
    %v1146 = vld [vmem:[#allocation2 + $0x94] sm:$0xf]
    %v1147 = vld [vmem:[#allocation2 + $0x98] sm:$0xf]
    %v1148 = vld [vmem:[#allocation2 + $0x9c] sm:$0xf]
    %v1149 = vld [vmem:[#allocation4 + $0x23] sm:$0x1]
    %v1150 = vlaneseq
    %v1151 = vshrl.u32 %v1150, 7
    %v1152 = vsub.s32 0, %v1151
    %v1153 = vrot.slane %v1149, %v1152
    %v1158 = vunpack.c.l.b16 %v1145
    %v1159 = vunpack.c.l.b16 %v1146
    %v1160 = vunpack.c.l.b16 %v1147
    %v1161 = vunpack.c.l.b16 %v1148
    %v1162 = vpack.c.b16 %v1159, %v1158
    %v1163 = vpack.c.b16 %v1161, %v1160
    %v1167 = vsel %vm142, %v1144, 0
    %1169 = vmatprep.subr.bf16.mxu0 0
    %1170 = vmatpush1.bf16.msra.mxu0 0
    %1171 = vmatprep.subr.bf16.mxu0 0
    %1172 = vmatpush1.bf16.msra.mxu0 0
    %1173 = vmatprep.subr.bf16.mxu0 0
    %1174 = vmatpush1.bf16.msra.mxu0 0
    %1175 = vmatprep.subr.bf16.mxu0 0
    %1176 = vmatpush1.bf16.msra.mxu0 0
    %1177 = vmatprep.subr.bf16.mxu0 0
    %1178 = vmatpush1.bf16.msra.mxu0 0
    %1179 = vmatprep.subr.bf16.mxu0 0
    %1180 = vmatpush1.bf16.msra.mxu0 0
    %1181 = vmatprep.subr.bf16.mxu0 0
    %1182 = vmatpush1.bf16.msra.mxu0 %v1163
    %1183 = vmatprep.subr.bf16.mxu0 0
    %1184 = vmatpush1.bf16.msra.mxu0 %v1162
    %1185 = vmatprep.subr.bf16.mxu0 0
    %1186 = vmatpush2.bf16.msra.mxu0 0
    %1187 = vmatprep.subr.bf16.mxu0 0
    %1188 = vmatpush2.bf16.msra.mxu0 0
    %1189 = vmatprep.subr.bf16.mxu0 0
    %1190 = vmatpush2.bf16.msra.mxu0 0
    %1191 = vmatprep.subr.bf16.mxu0 0
    %1192 = vmatpush2.bf16.msra.mxu0 0
    %1193 = vmatprep.subr.bf16.mxu0 0
    %1194 = vmatpush2.bf16.msra.mxu0 0
    %1195 = vmatprep.subr.bf16.mxu0 0
    %1196 = vmatpush2.bf16.msra.mxu0 0
    %1197 = vmatprep.subr.bf16.mxu0 0
    %1198 = vmatpush2.bf16.msra.mxu0 0
    %1199 = vmatprep.subr.bf16.mxu0 0
    %1200 = vmatpush2.bf16.msra.mxu0 0
    %1201 = vmatprep.mubr.bf16.mxu0 0
    %1202 = vmatmul.mubr.bf16.gmra.mxu0 %v1167
    %v1203 = vpop.f32.mrf.mxu0
    %v1204 = vadd.f32 %v1153, %v1203
    %v1205 = vpop.f32.mrf.mxu0
    %v1206 = vpop.f32.mrf.mxu0
    %v1207 = vadd.f32 %v1153, %v1206
    %v1208 = vpop.f32.mrf.mxu0
    %1209 = vdwg.mxu0
    %v1210 = vmul.f32 %v1204, 0.5
    %v1211 = vmul.f32 %v1207, 0.5
    %v1212 = vmul.f32 %v1204, 0.044715
    %v1213 = vmul.f32 %v1207, 0.044715
    %v1214 = vmul.f32 %v1212, %v1204
    %v1215 = vmul.f32 %v1213, %v1207
    %v1216 = vmul.f32 %v1214, %v1204
    %v1217 = vmul.f32 %v1215, %v1207
    %v1218 = vadd.f32 %v1204, %v1216
    %v1219 = vadd.f32 %v1207, %v1217
    %v1220 = vmul.f32 %v1218, 0.7978846
    %v1221 = vmul.f32 %v1219, 0.7978846
    %v1222 = vtanh.pop %v1220
    %v1223 = vtanh.pop %v1221
    %v1224 = vadd.f32 %v1222, 1.0
    %v1225 = vadd.f32 %v1223, 1.0
    %v1226 = vmul.f32 %v1210, %v1224
    %v1227 = vmul.f32 %v1211, %v1225
    %v1228 = vpack.c.bf16 %v1227, %v1226
    %v1229 = vld [vmem:[#allocation2 + $0xa0] sm:$0xf]
    %v1230 = vld [vmem:[#allocation2 + $0xa4] sm:$0xf]
    %v1231 = vld [vmem:[#allocation2 + $0xa8] sm:$0xf]
    %v1232 = vld [vmem:[#allocation2 + $0xac] sm:$0xf]
    %v1233 = vld [vmem:[#allocation2 + $0xb0] sm:$0xf]
    %v1234 = vld [vmem:[#allocation2 + $0xb4] sm:$0xf]
    %v1235 = vld [vmem:[#allocation2 + $0xb8] sm:$0xf]
    %v1236 = vld [vmem:[#allocation2 + $0xbc] sm:$0xf]
    %v1237 = vld [vmem:[#allocation2 + $0xc0] sm:$0xf]
    %v1238 = vld [vmem:[#allocation2 + $0xc4] sm:$0xf]
    %v1239 = vld [vmem:[#allocation2 + $0xc8] sm:$0xf]
    %v1240 = vld [vmem:[#allocation2 + $0xcc] sm:$0xf]
    %v1241 = vld [vmem:[#allocation2 + $0xd0] sm:$0xf]
    %v1242 = vld [vmem:[#allocation2 + $0xd4] sm:$0xf]
    %v1243 = vld [vmem:[#allocation2 + $0xd8] sm:$0xf]
    %v1244 = vld [vmem:[#allocation2 + $0xdc] sm:$0xf]
    %v1245 = vld [vmem:[#allocation4 + $0x24] sm:$0x1]
    %v1246 = vlaneseq
    %v1247 = vshrl.u32 %v1246, 7
    %v1248 = vsub.s32 0, %v1247
    %v1249 = vrot.slane %v1245, %v1248
    %v1266 = vunpack.c.l.b16 %v1229
    %v1267 = vunpack.c.l.b16 %v1230
    %v1268 = vunpack.c.l.b16 %v1231
    %v1269 = vunpack.c.l.b16 %v1232
    %v1270 = vunpack.c.l.b16 %v1233
    %v1271 = vunpack.c.l.b16 %v1234
    %v1272 = vunpack.c.l.b16 %v1235
    %v1273 = vunpack.c.l.b16 %v1236
    %v1274 = vunpack.c.l.b16 %v1237
    %v1275 = vunpack.c.l.b16 %v1238
    %v1276 = vunpack.c.l.b16 %v1239
    %v1277 = vunpack.c.l.b16 %v1240
    %v1278 = vunpack.c.l.b16 %v1241
    %v1279 = vunpack.c.l.b16 %v1242
    %v1280 = vunpack.c.l.b16 %v1243
    %v1281 = vunpack.c.l.b16 %v1244
    %v1282 = vpack.c.b16 %v1267, %v1266
    %v1283 = vpack.c.b16 %v1269, %v1268
    %v1284 = vpack.c.b16 %v1271, %v1270
    %v1285 = vpack.c.b16 %v1273, %v1272
    %v1286 = vpack.c.b16 %v1275, %v1274
    %v1287 = vpack.c.b16 %v1277, %v1276
    %v1288 = vpack.c.b16 %v1279, %v1278
    %v1289 = vpack.c.b16 %v1281, %v1280
    %1298 = vmatprep.subr.bf16.mxu0 0
    %1299 = vmatpush1.bf16.msra.mxu0 %v1289
    %1300 = vmatprep.subr.bf16.mxu0 0
    %1301 = vmatpush1.bf16.msra.mxu0 %v1288
    %1302 = vmatprep.subr.bf16.mxu0 0
    %1303 = vmatpush1.bf16.msra.mxu0 %v1287
    %1304 = vmatprep.subr.bf16.mxu0 0
    %1305 = vmatpush1.bf16.msra.mxu0 %v1286
    %1306 = vmatprep.subr.bf16.mxu0 0
    %1307 = vmatpush1.bf16.msra.mxu0 %v1285
    %1308 = vmatprep.subr.bf16.mxu0 0
    %1309 = vmatpush1.bf16.msra.mxu0 %v1284
    %1310 = vmatprep.subr.bf16.mxu0 0
    %1311 = vmatpush1.bf16.msra.mxu0 %v1283
    %1312 = vmatprep.subr.bf16.mxu0 0
    %1313 = vmatpush1.bf16.msra.mxu0 %v1282
    %1314 = vmatprep.subr.bf16.mxu0 0
    %1315 = vmatpush2.bf16.msra.mxu0 0
    %1316 = vmatprep.subr.bf16.mxu0 0
    %1317 = vmatpush2.bf16.msra.mxu0 0
    %1318 = vmatprep.subr.bf16.mxu0 0
    %1319 = vmatpush2.bf16.msra.mxu0 0
    %1320 = vmatprep.subr.bf16.mxu0 0
    %1321 = vmatpush2.bf16.msra.mxu0 0
    %1322 = vmatprep.subr.bf16.mxu0 0
    %1323 = vmatpush2.bf16.msra.mxu0 0
    %1324 = vmatprep.subr.bf16.mxu0 0
    %1325 = vmatpush2.bf16.msra.mxu0 0
    %1326 = vmatprep.subr.bf16.mxu0 0
    %1327 = vmatpush2.bf16.msra.mxu0 0
    %1328 = vmatprep.subr.bf16.mxu0 0
    %1329 = vmatpush2.bf16.msra.mxu0 0
    %1330 = vmatprep.mubr.bf16.mxu0 0
    %1331 = vmatmul.mubr.bf16.gmra.mxu0 %v1228
    %v1332 = vpop.f32.mrf.mxu0
    %v1333 = vadd.f32 %v1249, %v1332
    %v1334 = vpop.f32.mrf.mxu0
    %v1335 = vpop.f32.mrf.mxu0
    %v1336 = vadd.f32 %v1249, %v1335
    %v1337 = vpop.f32.mrf.mxu0
    %1338 = vdwg.mxu0
    %v1339 = vadd.f32 %v1142, %v1333
    %v1340 = vadd.f32 %v1143, %v1336
    %v1341 = vld [vmem:[#allocation4 + $0x28] sm:$0x1]
    %v1342 = vld [vmem:[#allocation4 + $0x29] sm:$0x1]
    %v1343 = vsel %vm142, %v1339, 0.0
    %1344 = vadd.xlane.f32.xlu0 %v1343
    %v1345 = vpop.xlane.xlu0 %1344
    %v1346 = vsel %vm142, %v1340, 0.0
    %1347 = vadd.xlane.f32.xlu0 %v1346
    %v1348 = vpop.xlane.xlu0 %1347
    %v1349 = vmul.f32 %v1345, %v149
    %v1350 = vmul.f32 %v1348, %v149
    %v1351 = vsub.f32 %v1339, %v1349
    %v1352 = vsub.f32 %v1340, %v1350
    %v1353 = vmul.f32 %v1351, %v1351
    %v1354 = vmul.f32 %v1352, %v1352
    %v1355 = vsel %vm142, %v1353, 0.0
    %1356 = vadd.xlane.f32.xlu0 %v1355
    %v1357 = vpop.xlane.xlu0 %1356
    %v1358 = vsel %vm142, %v1354, 0.0
    %1359 = vadd.xlane.f32.xlu0 %v1358
    %v1360 = vpop.xlane.xlu0 %1359
    %v1361 = vmul.f32 %v1357, %v149
    %v1362 = vmul.f32 %v1360, %v149
    %v1363 = vadd.f32 %v1361, 1e-05
    %v1364 = vadd.f32 %v1362, 1e-05
    %v1365 = vrsqrt.pop %v1363
    %v1366 = vrsqrt.pop %v1364
    %v1367 = vmul.f32 %v1351, %v1365
    %v1368 = vmul.f32 %v1352, %v1366
    %v1369 = vlaneseq
    %v1370 = vshrl.u32 %v1369, 7
    %v1371 = vsub.s32 0, %v1370
    %v1372 = vrot.slane %v1341, %v1371
    %v1373 = vmul.f32 %v1367, %v1372
    %v1374 = vmul.f32 %v1368, %v1372
    %v1375 = vlaneseq
    %v1376 = vshrl.u32 %v1375, 7
    %v1377 = vsub.s32 0, %v1376
    %v1378 = vrot.slane %v1342, %v1377
    %v1379 = vadd.f32 %v1373, %v1378
    %v1380 = vadd.f32 %v1374, %v1378
    %v1381 = vpack.c.bf16 %v1380, %v1379
    %v1382 = vld [vmem:[#allocation2 + $0xe0] sm:$0xf]
    %v1383 = vld [vmem:[#allocation2 + $0xe4] sm:$0xf]
    %v1384 = vld [vmem:[#allocation2 + $0xe8] sm:$0xf]
    %v1385 = vld [vmem:[#allocation2 + $0xec] sm:$0xf]
    %v1386 = vld [vmem:[#allocation4 + $0x2a] sm:$0x1]
    %v1387 = vlaneseq
    %v1388 = vshrl.u32 %v1387, 7
    %v1389 = vsub.s32 0, %v1388
    %v1390 = vrot.slane %v1386, %v1389
    %v1395 = vunpack.c.l.b16 %v1382
    %v1396 = vunpack.c.l.b16 %v1383
    %v1397 = vunpack.c.l.b16 %v1384
    %v1398 = vunpack.c.l.b16 %v1385
    %v1399 = vpack.c.b16 %v1396, %v1395
    %v1400 = vpack.c.b16 %v1398, %v1397
    %v1404 = vsel %vm142, %v1381, 0
    %1406 = vmatprep.subr.bf16.mxu0 0
    %1407 = vmatpush1.bf16.msra.mxu0 0
    %1408 = vmatprep.subr.bf16.mxu0 0
    %1409 = vmatpush1.bf16.msra.mxu0 0
    %1410 = vmatprep.subr.bf16.mxu0 0
    %1411 = vmatpush1.bf16.msra.mxu0 0
    %1412 = vmatprep.subr.bf16.mxu0 0
    %1413 = vmatpush1.bf16.msra.mxu0 0
    %1414 = vmatprep.subr.bf16.mxu0 0
    %1415 = vmatpush1.bf16.msra.mxu0 0
    %1416 = vmatprep.subr.bf16.mxu0 0
    %1417 = vmatpush1.bf16.msra.mxu0 0
    %1418 = vmatprep.subr.bf16.mxu0 0
    %1419 = vmatpush1.bf16.msra.mxu0 %v1400
    %1420 = vmatprep.subr.bf16.mxu0 0
    %1421 = vmatpush1.bf16.msra.mxu0 %v1399
    %1422 = vmatprep.subr.bf16.mxu0 0
    %1423 = vmatpush2.bf16.msra.mxu0 0
    %1424 = vmatprep.subr.bf16.mxu0 0
    %1425 = vmatpush2.bf16.msra.mxu0 0
    %1426 = vmatprep.subr.bf16.mxu0 0
    %1427 = vmatpush2.bf16.msra.mxu0 0
    %1428 = vmatprep.subr.bf16.mxu0 0
    %1429 = vmatpush2.bf16.msra.mxu0 0
    %1430 = vmatprep.subr.bf16.mxu0 0
    %1431 = vmatpush2.bf16.msra.mxu0 0
    %1432 = vmatprep.subr.bf16.mxu0 0
    %1433 = vmatpush2.bf16.msra.mxu0 0
    %1434 = vmatprep.subr.bf16.mxu0 0
    %1435 = vmatpush2.bf16.msra.mxu0 0
    %1436 = vmatprep.subr.bf16.mxu0 0
    %1437 = vmatpush2.bf16.msra.mxu0 0
    %1438 = vmatprep.mubr.bf16.mxu0 0
    %1439 = vmatmul.mubr.bf16.gmra.mxu0 %v1404
    %v1440 = vpop.f32.mrf.mxu0
    %v1441 = vadd.f32 %v1390, %v1440
    %v1442 = vpop.f32.mrf.mxu0
    %v1443 = vpop.f32.mrf.mxu0
    %v1444 = vadd.f32 %v1390, %v1443
    %v1445 = vpop.f32.mrf.mxu0
    %1446 = vdwg.mxu0
    %v1447 = vld [vmem:[#allocation2 + $0x100] sm:$0xf]
    %v1448 = vld [vmem:[#allocation2 + $0x104] sm:$0xf]
    %v1449 = vld [vmem:[#allocation2 + $0x108] sm:$0xf]
    %v1450 = vld [vmem:[#allocation2 + $0x10c] sm:$0xf]
    %v1451 = vld [vmem:[#allocation4 + $0x2c] sm:$0x1]
    %v1452 = vlaneseq
    %v1453 = vshrl.u32 %v1452, 7
    %v1454 = vsub.s32 0, %v1453
    %v1455 = vrot.slane %v1451, %v1454
    %v1460 = vunpack.c.l.b16 %v1447
    %v1461 = vunpack.c.l.b16 %v1448
    %v1462 = vunpack.c.l.b16 %v1449
    %v1463 = vunpack.c.l.b16 %v1450
    %v1464 = vpack.c.b16 %v1461, %v1460
    %v1465 = vpack.c.b16 %v1463, %v1462
    %1468 = vmatprep.subr.bf16.mxu0 0
    %1469 = vmatpush1.bf16.msra.mxu0 0
    %1470 = vmatprep.subr.bf16.mxu0 0
    %1471 = vmatpush1.bf16.msra.mxu0 0
    %1472 = vmatprep.subr.bf16.mxu0 0
    %1473 = vmatpush1.bf16.msra.mxu0 0
    %1474 = vmatprep.subr.bf16.mxu0 0
    %1475 = vmatpush1.bf16.msra.mxu0 0
    %1476 = vmatprep.subr.bf16.mxu0 0
    %1477 = vmatpush1.bf16.msra.mxu0 0
    %1478 = vmatprep.subr.bf16.mxu0 0
    %1479 = vmatpush1.bf16.msra.mxu0 0
    %1480 = vmatprep.subr.bf16.mxu0 0
    %1481 = vmatpush1.bf16.msra.mxu0 %v1465
    %1482 = vmatprep.subr.bf16.mxu0 0
    %1483 = vmatpush1.bf16.msra.mxu0 %v1464
    %1484 = vmatprep.subr.bf16.mxu0 0
    %1485 = vmatpush2.bf16.msra.mxu0 0
    %1486 = vmatprep.subr.bf16.mxu0 0
    %1487 = vmatpush2.bf16.msra.mxu0 0
    %1488 = vmatprep.subr.bf16.mxu0 0
    %1489 = vmatpush2.bf16.msra.mxu0 0
    %1490 = vmatprep.subr.bf16.mxu0 0
    %1491 = vmatpush2.bf16.msra.mxu0 0
    %1492 = vmatprep.subr.bf16.mxu0 0
    %1493 = vmatpush2.bf16.msra.mxu0 0
    %1494 = vmatprep.subr.bf16.mxu0 0
    %1495 = vmatpush2.bf16.msra.mxu0 0
    %1496 = vmatprep.subr.bf16.mxu0 0
    %1497 = vmatpush2.bf16.msra.mxu0 0
    %1498 = vmatprep.subr.bf16.mxu0 0
    %1499 = vmatpush2.bf16.msra.mxu0 0
    %1500 = vmatprep.mubr.bf16.mxu0 0
    %1501 = vmatmul.mubr.bf16.gmra.mxu0 %v1404
    %v1502 = vpop.f32.mrf.mxu0
    %v1503 = vadd.f32 %v1455, %v1502
    %v1504 = vpop.f32.mrf.mxu0
    %v1505 = vpop.f32.mrf.mxu0
    %v1506 = vadd.f32 %v1455, %v1505
    %v1507 = vpop.f32.mrf.mxu0
    %1508 = vdwg.mxu0
    %v1509 = vld [vmem:[#allocation2 + $0x120] sm:$0xf]
    %v1510 = vld [vmem:[#allocation2 + $0x124] sm:$0xf]
    %v1511 = vld [vmem:[#allocation2 + $0x128] sm:$0xf]
    %v1512 = vld [vmem:[#allocation2 + $0x12c] sm:$0xf]
    %v1513 = vld [vmem:[#allocation4 + $0x2e] sm:$0x1]
    %v1514 = vlaneseq
    %v1515 = vshrl.u32 %v1514, 7
    %v1516 = vsub.s32 0, %v1515
    %v1517 = vrot.slane %v1513, %v1516
    %v1522 = vunpack.c.l.b16 %v1509
    %v1523 = vunpack.c.l.b16 %v1510
    %v1524 = vunpack.c.l.b16 %v1511
    %v1525 = vunpack.c.l.b16 %v1512
    %v1526 = vpack.c.b16 %v1523, %v1522
    %v1527 = vpack.c.b16 %v1525, %v1524
    %1530 = vmatprep.subr.bf16.mxu0 0
    %1531 = vmatpush1.bf16.msra.mxu0 0
    %1532 = vmatprep.subr.bf16.mxu0 0
    %1533 = vmatpush1.bf16.msra.mxu0 0
    %1534 = vmatprep.subr.bf16.mxu0 0
    %1535 = vmatpush1.bf16.msra.mxu0 0
    %1536 = vmatprep.subr.bf16.mxu0 0
    %1537 = vmatpush1.bf16.msra.mxu0 0
    %1538 = vmatprep.subr.bf16.mxu0 0
    %1539 = vmatpush1.bf16.msra.mxu0 0
    %1540 = vmatprep.subr.bf16.mxu0 0
    %1541 = vmatpush1.bf16.msra.mxu0 0
    %1542 = vmatprep.subr.bf16.mxu0 0
    %1543 = vmatpush1.bf16.msra.mxu0 %v1527
    %1544 = vmatprep.subr.bf16.mxu0 0
    %1545 = vmatpush1.bf16.msra.mxu0 %v1526
    %1546 = vmatprep.subr.bf16.mxu0 0
    %1547 = vmatpush2.bf16.msra.mxu0 0
    %1548 = vmatprep.subr.bf16.mxu0 0
    %1549 = vmatpush2.bf16.msra.mxu0 0
    %1550 = vmatprep.subr.bf16.mxu0 0
    %1551 = vmatpush2.bf16.msra.mxu0 0
    %1552 = vmatprep.subr.bf16.mxu0 0
    %1553 = vmatpush2.bf16.msra.mxu0 0
    %1554 = vmatprep.subr.bf16.mxu0 0
    %1555 = vmatpush2.bf16.msra.mxu0 0
    %1556 = vmatprep.subr.bf16.mxu0 0
    %1557 = vmatpush2.bf16.msra.mxu0 0
    %1558 = vmatprep.subr.bf16.mxu0 0
    %1559 = vmatpush2.bf16.msra.mxu0 0
    %1560 = vmatprep.subr.bf16.mxu0 0
    %1561 = vmatpush2.bf16.msra.mxu0 0
    %1562 = vmatprep.mubr.bf16.mxu0 0
    %1563 = vmatmul.mubr.bf16.gmra.mxu0 %v1404
    %v1564 = vpop.f32.mrf.mxu0
    %v1565 = vadd.f32 %v1517, %v1564
    %v1566 = vpop.f32.mrf.mxu0
    %v1567 = vpop.f32.mrf.mxu0
    %v1568 = vadd.f32 %v1517, %v1567
    %v1569 = vpop.f32.mrf.mxu0
    %1570 = vdwg.mxu0
    %v1571 = vpack.c.bf16 %v1441, %v1441
    %v1572 = vpack.c.bf16 %v1444, %v1444
    %v1573 = vpack.c.bf16 %v1503, %v1503
    %v1574 = vpack.c.bf16 %v1506, %v1506
    %v1575 = vpack.c.bf16 %v1565, %v1565
    %v1576 = vpack.c.bf16 %v1568, %v1568
    %v1578 = vsel %vm378, %v1571, 0
    %v1581 = vsel %vm378, %v1573, 0
    %1583 = vmatprep.subr.bf16.mxu0 0
    %1584 = vmatpush1.bf16.xpose.msra.mxu0 0
    %1585 = vmatprep.subr.bf16.mxu0 0
    %1586 = vmatpush1.bf16.xpose.msra.mxu0 0
    %1587 = vmatprep.subr.bf16.mxu0 0
    %1588 = vmatpush1.bf16.xpose.msra.mxu0 0
    %1589 = vmatprep.subr.bf16.mxu0 0
    %1590 = vmatpush1.bf16.xpose.msra.mxu0 0
    %1591 = vmatprep.subr.bf16.mxu0 0
    %1592 = vmatpush1.bf16.xpose.msra.mxu0 0
    %1593 = vmatprep.subr.bf16.mxu0 0
    %1594 = vmatpush1.bf16.xpose.msra.mxu0 0
    %1595 = vmatprep.subr.bf16.mxu0 0
    %1596 = vmatpush1.bf16.xpose.msra.mxu0 0
    %1597 = vmatprep.subr.bf16.mxu0 0
    %1598 = vmatpush1.bf16.xpose.msra.mxu0 %v1581
    %1599 = vmatprep.subr.bf16.mxu0 0
    %1600 = vmatpush2.bf16.xpose.msra.mxu0 0
    %1601 = vmatprep.subr.bf16.mxu0 0
    %1602 = vmatpush2.bf16.xpose.msra.mxu0 0
    %1603 = vmatprep.subr.bf16.mxu0 0
    %1604 = vmatpush2.bf16.xpose.msra.mxu0 0
    %1605 = vmatprep.subr.bf16.mxu0 0
    %1606 = vmatpush2.bf16.xpose.msra.mxu0 0
    %1607 = vmatprep.subr.bf16.mxu0 0
    %1608 = vmatpush2.bf16.xpose.msra.mxu0 0
    %1609 = vmatprep.subr.bf16.mxu0 0
    %1610 = vmatpush2.bf16.xpose.msra.mxu0 0
    %1611 = vmatprep.subr.bf16.mxu0 0
    %1612 = vmatpush2.bf16.xpose.msra.mxu0 0
    %1613 = vmatprep.subr.bf16.mxu0 0
    %1614 = vmatpush2.bf16.xpose.msra.mxu0 0
    %1615 = vmatprep.mubr.bf16.mxu0 0
    %1616 = vmatmul.mubr.bf16.gmra.mxu0 %v1578
    %v1617 = vpop.f32.mrf.mxu0
    %v1618 = vadd.f32 %v139, %v1617
    %v1619 = vpop.f32.mrf.mxu0
    %v1620 = vpop.f32.mrf.mxu0
    %v1621 = vpop.f32.mrf.mxu0
    %1622 = vdwg.mxu0
    %v1624 = vsel %vm378, %v1572, 0
    %v1627 = vsel %vm378, %v1574, 0
    %1629 = vmatprep.subr.bf16.mxu0 0
    %1630 = vmatpush1.bf16.xpose.msra.mxu0 0
    %1631 = vmatprep.subr.bf16.mxu0 0
    %1632 = vmatpush1.bf16.xpose.msra.mxu0 0
    %1633 = vmatprep.subr.bf16.mxu0 0
    %1634 = vmatpush1.bf16.xpose.msra.mxu0 0
    %1635 = vmatprep.subr.bf16.mxu0 0
    %1636 = vmatpush1.bf16.xpose.msra.mxu0 0
    %1637 = vmatprep.subr.bf16.mxu0 0
    %1638 = vmatpush1.bf16.xpose.msra.mxu0 0
    %1639 = vmatprep.subr.bf16.mxu0 0
    %1640 = vmatpush1.bf16.xpose.msra.mxu0 0
    %1641 = vmatprep.subr.bf16.mxu0 0
    %1642 = vmatpush1.bf16.xpose.msra.mxu0 0
    %1643 = vmatprep.subr.bf16.mxu0 0
    %1644 = vmatpush1.bf16.xpose.msra.mxu0 %v1627
    %1645 = vmatprep.subr.bf16.mxu0 0
    %1646 = vmatpush2.bf16.xpose.msra.mxu0 0
    %1647 = vmatprep.subr.bf16.mxu0 0
    %1648 = vmatpush2.bf16.xpose.msra.mxu0 0
    %1649 = vmatprep.subr.bf16.mxu0 0
    %1650 = vmatpush2.bf16.xpose.msra.mxu0 0
    %1651 = vmatprep.subr.bf16.mxu0 0
    %1652 = vmatpush2.bf16.xpose.msra.mxu0 0
    %1653 = vmatprep.subr.bf16.mxu0 0
    %1654 = vmatpush2.bf16.xpose.msra.mxu0 0
    %1655 = vmatprep.subr.bf16.mxu0 0
    %1656 = vmatpush2.bf16.xpose.msra.mxu0 0
    %1657 = vmatprep.subr.bf16.mxu0 0
    %1658 = vmatpush2.bf16.xpose.msra.mxu0 0
    %1659 = vmatprep.subr.bf16.mxu0 0
    %1660 = vmatpush2.bf16.xpose.msra.mxu0 0
    %1661 = vmatprep.mubr.bf16.mxu0 0
    %1662 = vmatmul.mubr.bf16.gmra.mxu0 %v1624
    %v1663 = vpop.f32.mrf.mxu0
    %v1664 = vadd.f32 %v139, %v1663
    %v1665 = vpop.f32.mrf.mxu0
    %v1666 = vpop.f32.mrf.mxu0
    %v1667 = vpop.f32.mrf.mxu0
    %1668 = vdwg.mxu0
    %v1669 = vsel %vm471, %v1618, -inf
    %1670 = vmax.xlane.f32.xlu0 %v1669
    %v1671 = vpop.xlane.xlu0 %1670
    %v1672 = vsel %vm471, %v1664, -inf
    %1673 = vmax.xlane.f32.xlu0 %v1672
    %v1674 = vpop.xlane.xlu0 %1673
    %v1675 = vsub.f32 %v1618, %v1671
    %v1676 = vsub.f32 %v1664, %v1674
    %v1677 = vmul.f32 %v1675, 1.442695
    %v1678 = vpow.pop %v1677
    %v1679 = vmul.f32 %v1676, 1.442695
    %v1680 = vpow.pop %v1679
    %v1681 = vsel %vm471, %v1678, 0.0
    %1682 = vadd.xlane.f32.xlu0 %v1681
    %v1683 = vpop.xlane.xlu0 %1682
    %v1684 = vsel %vm471, %v1680, 0.0
    %1685 = vadd.xlane.f32.xlu0 %v1684
    %v1686 = vpop.xlane.xlu0 %1685
    %v1687 = vrcp.pop %v1683
    %v1688 = vrcp.pop %v1686
    %v1689 = vmul.f32 %v1678, %v1687
    %v1690 = vmul.f32 %v1680, %v1688
    %v1691 = vpack.c.bf16 %v1689, %v1689
    %v1692 = vpack.c.bf16 %v1690, %v1690
    %v1694 = vsel %vm471, %v1691, 0
    %v1697 = vsel %vm499, %v1575, 0
    %1699 = vmatprep.subr.bf16.mxu0 0
    %1700 = vmatpush1.bf16.msra.mxu0 0
    %1701 = vmatprep.subr.bf16.mxu0 0
    %1702 = vmatpush1.bf16.msra.mxu0 0
    %1703 = vmatprep.subr.bf16.mxu0 0
    %1704 = vmatpush1.bf16.msra.mxu0 0
    %1705 = vmatprep.subr.bf16.mxu0 0
    %1706 = vmatpush1.bf16.msra.mxu0 0
    %1707 = vmatprep.subr.bf16.mxu0 0
    %1708 = vmatpush1.bf16.msra.mxu0 0
    %1709 = vmatprep.subr.bf16.mxu0 0
    %1710 = vmatpush1.bf16.msra.mxu0 0
    %1711 = vmatprep.subr.bf16.mxu0 0
    %1712 = vmatpush1.bf16.msra.mxu0 0
    %1713 = vmatprep.subr.bf16.mxu0 0
    %1714 = vmatpush1.bf16.msra.mxu0 %v1697
    %1715 = vmatprep.subr.bf16.mxu0 0
    %1716 = vmatpush2.bf16.msra.mxu0 0
    %1717 = vmatprep.subr.bf16.mxu0 0
    %1718 = vmatpush2.bf16.msra.mxu0 0
    %1719 = vmatprep.subr.bf16.mxu0 0
    %1720 = vmatpush2.bf16.msra.mxu0 0
    %1721 = vmatprep.subr.bf16.mxu0 0
    %1722 = vmatpush2.bf16.msra.mxu0 0
    %1723 = vmatprep.subr.bf16.mxu0 0
    %1724 = vmatpush2.bf16.msra.mxu0 0
    %1725 = vmatprep.subr.bf16.mxu0 0
    %1726 = vmatpush2.bf16.msra.mxu0 0
    %1727 = vmatprep.subr.bf16.mxu0 0
    %1728 = vmatpush2.bf16.msra.mxu0 0
    %1729 = vmatprep.subr.bf16.mxu0 0
    %1730 = vmatpush2.bf16.msra.mxu0 0
    %1731 = vmatprep.mubr.bf16.mxu0 0
    %1732 = vmatmul.mubr.bf16.gmra.mxu0 %v1694
    %v1733 = vpop.f32.mrf.mxu0
    %v1734 = vadd.f32 0.0, %v1733
    %v1735 = vpop.f32.mrf.mxu0
    %v1736 = vpop.f32.mrf.mxu0
    %v1737 = vpop.f32.mrf.mxu0
    %1738 = vdwg.mxu0
    %v1740 = vsel %vm471, %v1692, 0
    %v1743 = vsel %vm499, %v1576, 0
    %1745 = vmatprep.subr.bf16.mxu0 0
    %1746 = vmatpush1.bf16.msra.mxu0 0
    %1747 = vmatprep.subr.bf16.mxu0 0
    %1748 = vmatpush1.bf16.msra.mxu0 0
    %1749 = vmatprep.subr.bf16.mxu0 0
    %1750 = vmatpush1.bf16.msra.mxu0 0
    %1751 = vmatprep.subr.bf16.mxu0 0
    %1752 = vmatpush1.bf16.msra.mxu0 0
    %1753 = vmatprep.subr.bf16.mxu0 0
    %1754 = vmatpush1.bf16.msra.mxu0 0
    %1755 = vmatprep.subr.bf16.mxu0 0
    %1756 = vmatpush1.bf16.msra.mxu0 0
    %1757 = vmatprep.subr.bf16.mxu0 0
    %1758 = vmatpush1.bf16.msra.mxu0 0
    %1759 = vmatprep.subr.bf16.mxu0 0
    %1760 = vmatpush1.bf16.msra.mxu0 %v1743
    %1761 = vmatprep.subr.bf16.mxu0 0
    %1762 = vmatpush2.bf16.msra.mxu0 0
    %1763 = vmatprep.subr.bf16.mxu0 0
    %1764 = vmatpush2.bf16.msra.mxu0 0
    %1765 = vmatprep.subr.bf16.mxu0 0
    %1766 = vmatpush2.bf16.msra.mxu0 0
    %1767 = vmatprep.subr.bf16.mxu0 0
    %1768 = vmatpush2.bf16.msra.mxu0 0
    %1769 = vmatprep.subr.bf16.mxu0 0
    %1770 = vmatpush2.bf16.msra.mxu0 0
    %1771 = vmatprep.subr.bf16.mxu0 0
    %1772 = vmatpush2.bf16.msra.mxu0 0
    %1773 = vmatprep.subr.bf16.mxu0 0
    %1774 = vmatpush2.bf16.msra.mxu0 0
    %1775 = vmatprep.subr.bf16.mxu0 0
    %1776 = vmatpush2.bf16.msra.mxu0 0
    %1777 = vmatprep.mubr.bf16.mxu0 0
    %1778 = vmatmul.mubr.bf16.gmra.mxu0 %v1740
    %v1779 = vpop.f32.mrf.mxu0
    %v1780 = vadd.f32 0.0, %v1779
    %v1781 = vpop.f32.mrf.mxu0
    %v1782 = vpop.f32.mrf.mxu0
    %v1783 = vpop.f32.mrf.mxu0
    %1784 = vdwg.mxu0
    %v1785 = vpack.c.bf16 %v1780, %v1734
    %v1786 = vld [vmem:[#allocation2 + $0x140] sm:$0xf]
    %v1787 = vld [vmem:[#allocation2 + $0x144] sm:$0xf]
    %v1788 = vld [vmem:[#allocation2 + $0xf0] sm:$0xf]
    %v1789 = vld [vmem:[#allocation2 + $0xf4] sm:$0xf]
    %v1790 = vld [vmem:[#allocation2 + $0xf8] sm:$0xf]
    %v1791 = vld [vmem:[#allocation2 + $0xfc] sm:$0xf]
    %v1792 = vld [vmem:[#allocation4 + $0x2b] sm:$0x1]
    %v1793 = vlaneseq
    %v1794 = vshrl.u32 %v1793, 7
    %v1795 = vsub.s32 0, %v1794
    %v1796 = vrot.slane %v1792, %v1795
    %v1801 = vunpack.c.l.b16 %v1788
    %v1802 = vunpack.c.l.b16 %v1789
    %v1803 = vunpack.c.l.b16 %v1790
    %v1804 = vunpack.c.l.b16 %v1791
    %v1805 = vpack.c.b16 %v1802, %v1801
    %v1806 = vpack.c.b16 %v1804, %v1803
    %1809 = vmatprep.subr.bf16.mxu0 0
    %1810 = vmatpush1.bf16.msra.mxu0 0
    %1811 = vmatprep.subr.bf16.mxu0 0
    %1812 = vmatpush1.bf16.msra.mxu0 0
    %1813 = vmatprep.subr.bf16.mxu0 0
    %1814 = vmatpush1.bf16.msra.mxu0 0
    %1815 = vmatprep.subr.bf16.mxu0 0
    %1816 = vmatpush1.bf16.msra.mxu0 0
    %1817 = vmatprep.subr.bf16.mxu0 0
    %1818 = vmatpush1.bf16.msra.mxu0 0
    %1819 = vmatprep.subr.bf16.mxu0 0
    %1820 = vmatpush1.bf16.msra.mxu0 0
    %1821 = vmatprep.subr.bf16.mxu0 0
    %1822 = vmatpush1.bf16.msra.mxu0 %v1806
    %1823 = vmatprep.subr.bf16.mxu0 0
    %1824 = vmatpush1.bf16.msra.mxu0 %v1805
    %1825 = vmatprep.subr.bf16.mxu0 0
    %1826 = vmatpush2.bf16.msra.mxu0 0
    %1827 = vmatprep.subr.bf16.mxu0 0
    %1828 = vmatpush2.bf16.msra.mxu0 0
    %1829 = vmatprep.subr.bf16.mxu0 0
    %1830 = vmatpush2.bf16.msra.mxu0 0
    %1831 = vmatprep.subr.bf16.mxu0 0
    %1832 = vmatpush2.bf16.msra.mxu0 0
    %1833 = vmatprep.subr.bf16.mxu0 0
    %1834 = vmatpush2.bf16.msra.mxu0 0
    %1835 = vmatprep.subr.bf16.mxu0 0
    %1836 = vmatpush2.bf16.msra.mxu0 0
    %1837 = vmatprep.subr.bf16.mxu0 0
    %1838 = vmatpush2.bf16.msra.mxu0 0
    %1839 = vmatprep.subr.bf16.mxu0 0
    %1840 = vmatpush2.bf16.msra.mxu0 0
    %1841 = vmatprep.mubr.bf16.mxu0 0
    %1842 = vmatmul.mubr.bf16.gmra.mxu0 %v1404
    %v1843 = vpop.f32.mrf.mxu0
    %v1844 = vadd.f32 %v1796, %v1843
    %v1845 = vpop.f32.mrf.mxu0
    %v1846 = vpop.f32.mrf.mxu0
    %v1847 = vadd.f32 %v1796, %v1846
    %v1848 = vpop.f32.mrf.mxu0
    %1849 = vdwg.mxu0
    %v1850 = vld [vmem:[#allocation2 + $0x110] sm:$0xf]
    %v1851 = vld [vmem:[#allocation2 + $0x114] sm:$0xf]
    %v1852 = vld [vmem:[#allocation2 + $0x118] sm:$0xf]
    %v1853 = vld [vmem:[#allocation2 + $0x11c] sm:$0xf]
    %v1854 = vld [vmem:[#allocation4 + $0x2d] sm:$0x1]
    %v1855 = vlaneseq
    %v1856 = vshrl.u32 %v1855, 7
    %v1857 = vsub.s32 0, %v1856
    %v1858 = vrot.slane %v1854, %v1857
    %v1863 = vunpack.c.l.b16 %v1850
    %v1864 = vunpack.c.l.b16 %v1851
    %v1865 = vunpack.c.l.b16 %v1852
    %v1866 = vunpack.c.l.b16 %v1853
    %v1867 = vpack.c.b16 %v1864, %v1863
    %v1868 = vpack.c.b16 %v1866, %v1865
    %1871 = vmatprep.subr.bf16.mxu0 0
    %1872 = vmatpush1.bf16.msra.mxu0 0
    %1873 = vmatprep.subr.bf16.mxu0 0
    %1874 = vmatpush1.bf16.msra.mxu0 0
    %1875 = vmatprep.subr.bf16.mxu0 0
    %1876 = vmatpush1.bf16.msra.mxu0 0
    %1877 = vmatprep.subr.bf16.mxu0 0
    %1878 = vmatpush1.bf16.msra.mxu0 0
    %1879 = vmatprep.subr.bf16.mxu0 0
    %1880 = vmatpush1.bf16.msra.mxu0 0
    %1881 = vmatprep.subr.bf16.mxu0 0
    %1882 = vmatpush1.bf16.msra.mxu0 0
    %1883 = vmatprep.subr.bf16.mxu0 0
    %1884 = vmatpush1.bf16.msra.mxu0 %v1868
    %1885 = vmatprep.subr.bf16.mxu0 0
    %1886 = vmatpush1.bf16.msra.mxu0 %v1867
    %1887 = vmatprep.subr.bf16.mxu0 0
    %1888 = vmatpush2.bf16.msra.mxu0 0
    %1889 = vmatprep.subr.bf16.mxu0 0
    %1890 = vmatpush2.bf16.msra.mxu0 0
    %1891 = vmatprep.subr.bf16.mxu0 0
    %1892 = vmatpush2.bf16.msra.mxu0 0
    %1893 = vmatprep.subr.bf16.mxu0 0
    %1894 = vmatpush2.bf16.msra.mxu0 0
    %1895 = vmatprep.subr.bf16.mxu0 0
    %1896 = vmatpush2.bf16.msra.mxu0 0
    %1897 = vmatprep.subr.bf16.mxu0 0
    %1898 = vmatpush2.bf16.msra.mxu0 0
    %1899 = vmatprep.subr.bf16.mxu0 0
    %1900 = vmatpush2.bf16.msra.mxu0 0
    %1901 = vmatprep.subr.bf16.mxu0 0
    %1902 = vmatpush2.bf16.msra.mxu0 0
    %1903 = vmatprep.mubr.bf16.mxu0 0
    %1904 = vmatmul.mubr.bf16.gmra.mxu0 %v1404
    %v1905 = vpop.f32.mrf.mxu0
    %v1906 = vadd.f32 %v1858, %v1905
    %v1907 = vpop.f32.mrf.mxu0
    %v1908 = vpop.f32.mrf.mxu0
    %v1909 = vadd.f32 %v1858, %v1908
    %v1910 = vpop.f32.mrf.mxu0
    %1911 = vdwg.mxu0
    %v1912 = vld [vmem:[#allocation2 + $0x130] sm:$0xf]
    %v1913 = vld [vmem:[#allocation2 + $0x134] sm:$0xf]
    %v1914 = vld [vmem:[#allocation2 + $0x138] sm:$0xf]
    %v1915 = vld [vmem:[#allocation2 + $0x13c] sm:$0xf]
    %v1916 = vld [vmem:[#allocation4 + $0x2f] sm:$0x1]
    %v1917 = vlaneseq
    %v1918 = vshrl.u32 %v1917, 7
    %v1919 = vsub.s32 0, %v1918
    %v1920 = vrot.slane %v1916, %v1919
    %v1925 = vunpack.c.l.b16 %v1912
    %v1926 = vunpack.c.l.b16 %v1913
    %v1927 = vunpack.c.l.b16 %v1914
    %v1928 = vunpack.c.l.b16 %v1915
    %v1929 = vpack.c.b16 %v1926, %v1925
    %v1930 = vpack.c.b16 %v1928, %v1927
    %1933 = vmatprep.subr.bf16.mxu0 0
    %1934 = vmatpush1.bf16.msra.mxu0 0
    %1935 = vmatprep.subr.bf16.mxu0 0
    %1936 = vmatpush1.bf16.msra.mxu0 0
    %1937 = vmatprep.subr.bf16.mxu0 0
    %1938 = vmatpush1.bf16.msra.mxu0 0
    %1939 = vmatprep.subr.bf16.mxu0 0
    %1940 = vmatpush1.bf16.msra.mxu0 0
    %1941 = vmatprep.subr.bf16.mxu0 0
    %1942 = vmatpush1.bf16.msra.mxu0 0
    %1943 = vmatprep.subr.bf16.mxu0 0
    %1944 = vmatpush1.bf16.msra.mxu0 0
    %1945 = vmatprep.subr.bf16.mxu0 0
    %1946 = vmatpush1.bf16.msra.mxu0 %v1930
    %1947 = vmatprep.subr.bf16.mxu0 0
    %1948 = vmatpush1.bf16.msra.mxu0 %v1929
    %1949 = vmatprep.subr.bf16.mxu0 0
    %1950 = vmatpush2.bf16.msra.mxu0 0
    %1951 = vmatprep.subr.bf16.mxu0 0
    %1952 = vmatpush2.bf16.msra.mxu0 0
    %1953 = vmatprep.subr.bf16.mxu0 0
    %1954 = vmatpush2.bf16.msra.mxu0 0
    %1955 = vmatprep.subr.bf16.mxu0 0
    %1956 = vmatpush2.bf16.msra.mxu0 0
    %1957 = vmatprep.subr.bf16.mxu0 0
    %1958 = vmatpush2.bf16.msra.mxu0 0
    %1959 = vmatprep.subr.bf16.mxu0 0
    %1960 = vmatpush2.bf16.msra.mxu0 0
    %1961 = vmatprep.subr.bf16.mxu0 0
    %1962 = vmatpush2.bf16.msra.mxu0 0
    %1963 = vmatprep.subr.bf16.mxu0 0
    %1964 = vmatpush2.bf16.msra.mxu0 0
    %1965 = vmatprep.mubr.bf16.mxu0 0
    %1966 = vmatmul.mubr.bf16.gmra.mxu0 %v1404
    %v1967 = vpop.f32.mrf.mxu0
    %v1968 = vadd.f32 %v1920, %v1967
    %v1969 = vpop.f32.mrf.mxu0
    %v1970 = vpop.f32.mrf.mxu0
    %v1971 = vadd.f32 %v1920, %v1970
    %v1972 = vpop.f32.mrf.mxu0
    %1973 = vdwg.mxu0
    %v1974 = vpack.c.bf16 %v1844, %v1844
    %v1975 = vpack.c.bf16 %v1847, %v1847
    %v1976 = vpack.c.bf16 %v1906, %v1906
    %v1977 = vpack.c.bf16 %v1909, %v1909
    %v1978 = vpack.c.bf16 %v1968, %v1968
    %v1979 = vpack.c.bf16 %v1971, %v1971
    %v1981 = vsel %vm378, %v1974, 0
    %v1984 = vsel %vm378, %v1976, 0
    %1986 = vmatprep.subr.bf16.mxu0 0
    %1987 = vmatpush1.bf16.xpose.msra.mxu0 0
    %1988 = vmatprep.subr.bf16.mxu0 0
    %1989 = vmatpush1.bf16.xpose.msra.mxu0 0
    %1990 = vmatprep.subr.bf16.mxu0 0
    %1991 = vmatpush1.bf16.xpose.msra.mxu0 0
    %1992 = vmatprep.subr.bf16.mxu0 0
    %1993 = vmatpush1.bf16.xpose.msra.mxu0 0
    %1994 = vmatprep.subr.bf16.mxu0 0
    %1995 = vmatpush1.bf16.xpose.msra.mxu0 0
    %1996 = vmatprep.subr.bf16.mxu0 0
    %1997 = vmatpush1.bf16.xpose.msra.mxu0 0
    %1998 = vmatprep.subr.bf16.mxu0 0
    %1999 = vmatpush1.bf16.xpose.msra.mxu0 0
    %2000 = vmatprep.subr.bf16.mxu0 0
    %2001 = vmatpush1.bf16.xpose.msra.mxu0 %v1984
    %2002 = vmatprep.subr.bf16.mxu0 0
    %2003 = vmatpush2.bf16.xpose.msra.mxu0 0
    %2004 = vmatprep.subr.bf16.mxu0 0
    %2005 = vmatpush2.bf16.xpose.msra.mxu0 0
    %2006 = vmatprep.subr.bf16.mxu0 0
    %2007 = vmatpush2.bf16.xpose.msra.mxu0 0
    %2008 = vmatprep.subr.bf16.mxu0 0
    %2009 = vmatpush2.bf16.xpose.msra.mxu0 0
    %2010 = vmatprep.subr.bf16.mxu0 0
    %2011 = vmatpush2.bf16.xpose.msra.mxu0 0
    %2012 = vmatprep.subr.bf16.mxu0 0
    %2013 = vmatpush2.bf16.xpose.msra.mxu0 0
    %2014 = vmatprep.subr.bf16.mxu0 0
    %2015 = vmatpush2.bf16.xpose.msra.mxu0 0
    %2016 = vmatprep.subr.bf16.mxu0 0
    %2017 = vmatpush2.bf16.xpose.msra.mxu0 0
    %2018 = vmatprep.mubr.bf16.mxu0 0
    %2019 = vmatmul.mubr.bf16.gmra.mxu0 %v1981
    %v2020 = vpop.f32.mrf.mxu0
    %v2021 = vadd.f32 %v139, %v2020
    %v2022 = vpop.f32.mrf.mxu0
    %v2023 = vpop.f32.mrf.mxu0
    %v2024 = vpop.f32.mrf.mxu0
    %2025 = vdwg.mxu0
    %v2027 = vsel %vm378, %v1975, 0
    %v2030 = vsel %vm378, %v1977, 0
    %2032 = vmatprep.subr.bf16.mxu0 0
    %2033 = vmatpush1.bf16.xpose.msra.mxu0 0
    %2034 = vmatprep.subr.bf16.mxu0 0
    %2035 = vmatpush1.bf16.xpose.msra.mxu0 0
    %2036 = vmatprep.subr.bf16.mxu0 0
    %2037 = vmatpush1.bf16.xpose.msra.mxu0 0
    %2038 = vmatprep.subr.bf16.mxu0 0
    %2039 = vmatpush1.bf16.xpose.msra.mxu0 0
    %2040 = vmatprep.subr.bf16.mxu0 0
    %2041 = vmatpush1.bf16.xpose.msra.mxu0 0
    %2042 = vmatprep.subr.bf16.mxu0 0
    %2043 = vmatpush1.bf16.xpose.msra.mxu0 0
    %2044 = vmatprep.subr.bf16.mxu0 0
    %2045 = vmatpush1.bf16.xpose.msra.mxu0 0
    %2046 = vmatprep.subr.bf16.mxu0 0
    %2047 = vmatpush1.bf16.xpose.msra.mxu0 %v2030
    %2048 = vmatprep.subr.bf16.mxu0 0
    %2049 = vmatpush2.bf16.xpose.msra.mxu0 0
    %2050 = vmatprep.subr.bf16.mxu0 0
    %2051 = vmatpush2.bf16.xpose.msra.mxu0 0
    %2052 = vmatprep.subr.bf16.mxu0 0
    %2053 = vmatpush2.bf16.xpose.msra.mxu0 0
    %2054 = vmatprep.subr.bf16.mxu0 0
    %2055 = vmatpush2.bf16.xpose.msra.mxu0 0
    %2056 = vmatprep.subr.bf16.mxu0 0
    %2057 = vmatpush2.bf16.xpose.msra.mxu0 0
    %2058 = vmatprep.subr.bf16.mxu0 0
    %2059 = vmatpush2.bf16.xpose.msra.mxu0 0
    %2060 = vmatprep.subr.bf16.mxu0 0
    %2061 = vmatpush2.bf16.xpose.msra.mxu0 0
    %2062 = vmatprep.subr.bf16.mxu0 0
    %2063 = vmatpush2.bf16.xpose.msra.mxu0 0
    %2064 = vmatprep.mubr.bf16.mxu0 0
    %2065 = vmatmul.mubr.bf16.gmra.mxu0 %v2027
    %v2066 = vpop.f32.mrf.mxu0
    %v2067 = vadd.f32 %v139, %v2066
    %v2068 = vpop.f32.mrf.mxu0
    %v2069 = vpop.f32.mrf.mxu0
    %v2070 = vpop.f32.mrf.mxu0
    %2071 = vdwg.mxu0
    %v2072 = vsel %vm471, %v2021, -inf
    %2073 = vmax.xlane.f32.xlu0 %v2072
    %v2074 = vpop.xlane.xlu0 %2073
    %v2075 = vsel %vm471, %v2067, -inf
    %2076 = vmax.xlane.f32.xlu0 %v2075
    %v2077 = vpop.xlane.xlu0 %2076
    %v2078 = vsub.f32 %v2021, %v2074
    %v2079 = vsub.f32 %v2067, %v2077
    %v2080 = vmul.f32 %v2078, 1.442695
    %v2081 = vpow.pop %v2080
    %v2082 = vmul.f32 %v2079, 1.442695
    %v2083 = vpow.pop %v2082
    %v2084 = vsel %vm471, %v2081, 0.0
    %2085 = vadd.xlane.f32.xlu0 %v2084
    %v2086 = vpop.xlane.xlu0 %2085
    %v2087 = vsel %vm471, %v2083, 0.0
    %2088 = vadd.xlane.f32.xlu0 %v2087
    %v2089 = vpop.xlane.xlu0 %2088
    %v2090 = vrcp.pop %v2086
    %v2091 = vrcp.pop %v2089
    %v2092 = vmul.f32 %v2081, %v2090
    %v2093 = vmul.f32 %v2083, %v2091
    %v2094 = vpack.c.bf16 %v2092, %v2092
    %v2095 = vpack.c.bf16 %v2093, %v2093
    %v2097 = vsel %vm471, %v2094, 0
    %v2100 = vsel %vm499, %v1978, 0
    %2102 = vmatprep.subr.bf16.mxu0 0
    %2103 = vmatpush1.bf16.msra.mxu0 0
    %2104 = vmatprep.subr.bf16.mxu0 0
    %2105 = vmatpush1.bf16.msra.mxu0 0
    %2106 = vmatprep.subr.bf16.mxu0 0
    %2107 = vmatpush1.bf16.msra.mxu0 0
    %2108 = vmatprep.subr.bf16.mxu0 0
    %2109 = vmatpush1.bf16.msra.mxu0 0
    %2110 = vmatprep.subr.bf16.mxu0 0
    %2111 = vmatpush1.bf16.msra.mxu0 0
    %2112 = vmatprep.subr.bf16.mxu0 0
    %2113 = vmatpush1.bf16.msra.mxu0 0
    %2114 = vmatprep.subr.bf16.mxu0 0
    %2115 = vmatpush1.bf16.msra.mxu0 0
    %2116 = vmatprep.subr.bf16.mxu0 0
    %2117 = vmatpush1.bf16.msra.mxu0 %v2100
    %2118 = vmatprep.subr.bf16.mxu0 0
    %2119 = vmatpush2.bf16.msra.mxu0 0
    %2120 = vmatprep.subr.bf16.mxu0 0
    %2121 = vmatpush2.bf16.msra.mxu0 0
    %2122 = vmatprep.subr.bf16.mxu0 0
    %2123 = vmatpush2.bf16.msra.mxu0 0
    %2124 = vmatprep.subr.bf16.mxu0 0
    %2125 = vmatpush2.bf16.msra.mxu0 0
    %2126 = vmatprep.subr.bf16.mxu0 0
    %2127 = vmatpush2.bf16.msra.mxu0 0
    %2128 = vmatprep.subr.bf16.mxu0 0
    %2129 = vmatpush2.bf16.msra.mxu0 0
    %2130 = vmatprep.subr.bf16.mxu0 0
    %2131 = vmatpush2.bf16.msra.mxu0 0
    %2132 = vmatprep.subr.bf16.mxu0 0
    %2133 = vmatpush2.bf16.msra.mxu0 0
    %2134 = vmatprep.mubr.bf16.mxu0 0
    %2135 = vmatmul.mubr.bf16.gmra.mxu0 %v2097
    %v2136 = vpop.f32.mrf.mxu0
    %v2137 = vadd.f32 0.0, %v2136
    %v2138 = vpop.f32.mrf.mxu0
    %v2139 = vpop.f32.mrf.mxu0
    %v2140 = vpop.f32.mrf.mxu0
    %2141 = vdwg.mxu0
    %v2143 = vsel %vm471, %v2095, 0
    %v2146 = vsel %vm499, %v1979, 0
    %2148 = vmatprep.subr.bf16.mxu0 0
    %2149 = vmatpush1.bf16.msra.mxu0 0
    %2150 = vmatprep.subr.bf16.mxu0 0
    %2151 = vmatpush1.bf16.msra.mxu0 0
    %2152 = vmatprep.subr.bf16.mxu0 0
    %2153 = vmatpush1.bf16.msra.mxu0 0
    %2154 = vmatprep.subr.bf16.mxu0 0
    %2155 = vmatpush1.bf16.msra.mxu0 0
    %2156 = vmatprep.subr.bf16.mxu0 0
    %2157 = vmatpush1.bf16.msra.mxu0 0
    %2158 = vmatprep.subr.bf16.mxu0 0
    %2159 = vmatpush1.bf16.msra.mxu0 0
    %2160 = vmatprep.subr.bf16.mxu0 0
    %2161 = vmatpush1.bf16.msra.mxu0 0
    %2162 = vmatprep.subr.bf16.mxu0 0
    %2163 = vmatpush1.bf16.msra.mxu0 %v2146
    %2164 = vmatprep.subr.bf16.mxu0 0
    %2165 = vmatpush2.bf16.msra.mxu0 0
    %2166 = vmatprep.subr.bf16.mxu0 0
    %2167 = vmatpush2.bf16.msra.mxu0 0
    %2168 = vmatprep.subr.bf16.mxu0 0
    %2169 = vmatpush2.bf16.msra.mxu0 0
    %2170 = vmatprep.subr.bf16.mxu0 0
    %2171 = vmatpush2.bf16.msra.mxu0 0
    %2172 = vmatprep.subr.bf16.mxu0 0
    %2173 = vmatpush2.bf16.msra.mxu0 0
    %2174 = vmatprep.subr.bf16.mxu0 0
    %2175 = vmatpush2.bf16.msra.mxu0 0
    %2176 = vmatprep.subr.bf16.mxu0 0
    %2177 = vmatpush2.bf16.msra.mxu0 0
    %2178 = vmatprep.subr.bf16.mxu0 0
    %2179 = vmatpush2.bf16.msra.mxu0 0
    %2180 = vmatprep.mubr.bf16.mxu0 0
    %2181 = vmatmul.mubr.bf16.gmra.mxu0 %v2143
    %v2182 = vpop.f32.mrf.mxu0
    %v2183 = vadd.f32 0.0, %v2182
    %v2184 = vpop.f32.mrf.mxu0
    %v2185 = vpop.f32.mrf.mxu0
    %v2186 = vpop.f32.mrf.mxu0
    %2187 = vdwg.mxu0
    %v2188 = vpack.c.bf16 %v2183, %v2137
    %v2189 = vld [vmem:[#allocation2 + $0x148] sm:$0xf]
    %v2190 = vld [vmem:[#allocation2 + $0x14c] sm:$0xf]
    %v2193 = vunpack.c.l.b16 %v2189
    %v2194 = vunpack.c.l.b16 %v2190
    %v2195 = vpack.c.b16 %v2194, %v2193
    %v2198 = vsel %vm378, %v2188, 0
    %2200 = vmatprep.subr.bf16.mxu0 0
    %2201 = vmatpush1.bf16.msra.mxu0 0
    %2202 = vmatprep.subr.bf16.mxu0 0
    %2203 = vmatpush1.bf16.msra.mxu0 0
    %2204 = vmatprep.subr.bf16.mxu0 0
    %2205 = vmatpush1.bf16.msra.mxu0 0
    %2206 = vmatprep.subr.bf16.mxu0 0
    %2207 = vmatpush1.bf16.msra.mxu0 0
    %2208 = vmatprep.subr.bf16.mxu0 0
    %2209 = vmatpush1.bf16.msra.mxu0 0
    %2210 = vmatprep.subr.bf16.mxu0 0
    %2211 = vmatpush1.bf16.msra.mxu0 0
    %2212 = vmatprep.subr.bf16.mxu0 0
    %2213 = vmatpush1.bf16.msra.mxu0 0
    %2214 = vmatprep.subr.bf16.mxu0 0
    %2215 = vmatpush1.bf16.msra.mxu0 %v2195
    %2216 = vmatprep.subr.bf16.mxu0 0
    %2217 = vmatpush2.bf16.msra.mxu0 0
    %2218 = vmatprep.subr.bf16.mxu0 0
    %2219 = vmatpush2.bf16.msra.mxu0 0
    %2220 = vmatprep.subr.bf16.mxu0 0
    %2221 = vmatpush2.bf16.msra.mxu0 0
    %2222 = vmatprep.subr.bf16.mxu0 0
    %2223 = vmatpush2.bf16.msra.mxu0 0
    %2224 = vmatprep.subr.bf16.mxu0 0
    %2225 = vmatpush2.bf16.msra.mxu0 0
    %2226 = vmatprep.subr.bf16.mxu0 0
    %2227 = vmatpush2.bf16.msra.mxu0 0
    %2228 = vmatprep.subr.bf16.mxu0 0
    %2229 = vmatpush2.bf16.msra.mxu0 0
    %2230 = vmatprep.subr.bf16.mxu0 0
    %2231 = vmatpush2.bf16.msra.mxu0 0
    %2232 = vmatprep.mubr.bf16.mxu0 0
    %2233 = vmatmul.mubr.bf16.gmra.mxu0 %v2198
    %v2234 = vpop.f32.mrf.mxu0
    %v2235 = vadd.f32 0.0, %v2234
    %v2236 = vpop.f32.mrf.mxu0
    %v2237 = vpop.f32.mrf.mxu0
    %v2238 = vadd.f32 0.0, %v2237
    %v2239 = vpop.f32.mrf.mxu0
    %2240 = vdwg.mxu0
    %v2243 = vunpack.c.l.b16 %v1786
    %v2244 = vunpack.c.l.b16 %v1787
    %v2245 = vpack.c.b16 %v2244, %v2243
    %v2248 = vsel %vm378, %v1785, 0
    %2250 = vmatprep.subr.bf16.mxu0 0
    %2251 = vmatpush1.bf16.msra.mxu0 0
    %2252 = vmatprep.subr.bf16.mxu0 0
    %2253 = vmatpush1.bf16.msra.mxu0 0
    %2254 = vmatprep.subr.bf16.mxu0 0
    %2255 = vmatpush1.bf16.msra.mxu0 0
    %2256 = vmatprep.subr.bf16.mxu0 0
    %2257 = vmatpush1.bf16.msra.mxu0 0
    %2258 = vmatprep.subr.bf16.mxu0 0
    %2259 = vmatpush1.bf16.msra.mxu0 0
    %2260 = vmatprep.subr.bf16.mxu0 0
    %2261 = vmatpush1.bf16.msra.mxu0 0
    %2262 = vmatprep.subr.bf16.mxu0 0
    %2263 = vmatpush1.bf16.msra.mxu0 0
    %2264 = vmatprep.subr.bf16.mxu0 0
    %2265 = vmatpush1.bf16.msra.mxu0 %v2245
    %2266 = vmatprep.subr.bf16.mxu0 0
    %2267 = vmatpush2.bf16.msra.mxu0 0
    %2268 = vmatprep.subr.bf16.mxu0 0
    %2269 = vmatpush2.bf16.msra.mxu0 0
    %2270 = vmatprep.subr.bf16.mxu0 0
    %2271 = vmatpush2.bf16.msra.mxu0 0
    %2272 = vmatprep.subr.bf16.mxu0 0
    %2273 = vmatpush2.bf16.msra.mxu0 0
    %2274 = vmatprep.subr.bf16.mxu0 0
    %2275 = vmatpush2.bf16.msra.mxu0 0
    %2276 = vmatprep.subr.bf16.mxu0 0
    %2277 = vmatpush2.bf16.msra.mxu0 0
    %2278 = vmatprep.subr.bf16.mxu0 0
    %2279 = vmatpush2.bf16.msra.mxu0 0
    %2280 = vmatprep.subr.bf16.mxu0 0
    %2281 = vmatpush2.bf16.msra.mxu0 0
    %2282 = vmatprep.mubr.bf16.mxu0 0
    %2283 = vmatmul.mubr.bf16.gmra.mxu0 %v2248
    %v2284 = vpop.f32.mrf.mxu0
    %v2285 = vadd.f32 %v2235, %v2284
    %v2286 = vpop.f32.mrf.mxu0
    %v2287 = vpop.f32.mrf.mxu0
    %v2288 = vadd.f32 %v2238, %v2287
    %v2289 = vpop.f32.mrf.mxu0
    %2290 = vdwg.mxu0
    %v2291 = vadd.f32 %v1379, %v2285
    %v2292 = vadd.f32 %v1380, %v2288
    %v2293 = vld [vmem:[#allocation4 + $0x30] sm:$0x1]
    %v2294 = vlaneseq
    %v2295 = vshrl.u32 %v2294, 7
    %v2296 = vsub.s32 0, %v2295
    %v2297 = vrot.slane %v2293, %v2296
    %v2298 = vadd.f32 %v2291, %v2297
    %v2299 = vadd.f32 %v2292, %v2297
    %v2300 = vld [vmem:[#allocation4 + $0x31] sm:$0x1]
    %v2301 = vld [vmem:[#allocation4 + $0x32] sm:$0x1]
    %v2302 = vsel %vm142, %v2298, 0.0
    %2303 = vadd.xlane.f32.xlu0 %v2302
    %v2304 = vpop.xlane.xlu0 %2303
    %v2305 = vsel %vm142, %v2299, 0.0
    %2306 = vadd.xlane.f32.xlu0 %v2305
    %v2307 = vpop.xlane.xlu0 %2306
    %v2308 = vmul.f32 %v2304, %v149
    %v2309 = vmul.f32 %v2307, %v149
    %v2310 = vsub.f32 %v2298, %v2308
    %v2311 = vsub.f32 %v2299, %v2309
    %v2312 = vmul.f32 %v2310, %v2310
    %v2313 = vmul.f32 %v2311, %v2311
    %v2314 = vsel %vm142, %v2312, 0.0
    %2315 = vadd.xlane.f32.xlu0 %v2314
    %v2316 = vpop.xlane.xlu0 %2315
    %v2317 = vsel %vm142, %v2313, 0.0
    %2318 = vadd.xlane.f32.xlu0 %v2317
    %v2319 = vpop.xlane.xlu0 %2318
    %v2320 = vmul.f32 %v2316, %v149
    %v2321 = vmul.f32 %v2319, %v149
    %v2322 = vadd.f32 %v2320, 1e-05
    %v2323 = vadd.f32 %v2321, 1e-05
    %v2324 = vrsqrt.pop %v2322
    %v2325 = vrsqrt.pop %v2323
    %v2326 = vmul.f32 %v2310, %v2324
    %v2327 = vmul.f32 %v2311, %v2325
    %v2328 = vlaneseq
    %v2329 = vshrl.u32 %v2328, 7
    %v2330 = vsub.s32 0, %v2329
    %v2331 = vrot.slane %v2300, %v2330
    %v2332 = vmul.f32 %v2326, %v2331
    %v2333 = vmul.f32 %v2327, %v2331
    %v2334 = vlaneseq
    %v2335 = vshrl.u32 %v2334, 7
    %v2336 = vsub.s32 0, %v2335
    %v2337 = vrot.slane %v2301, %v2336
    %v2338 = vadd.f32 %v2332, %v2337
    %v2339 = vadd.f32 %v2333, %v2337
    %v2340 = vpack.c.bf16 %v2339, %v2338
    %v2341 = vld [vmem:[#allocation2 + $0x150] sm:$0xf]
    %v2342 = vld [vmem:[#allocation2 + $0x154] sm:$0xf]
    %v2343 = vld [vmem:[#allocation2 + $0x158] sm:$0xf]
    %v2344 = vld [vmem:[#allocation2 + $0x15c] sm:$0xf]
    %v2345 = vld [vmem:[#allocation4 + $0x33] sm:$0x1]
    %v2346 = vlaneseq
    %v2347 = vshrl.u32 %v2346, 7
    %v2348 = vsub.s32 0, %v2347
    %v2349 = vrot.slane %v2345, %v2348
    %v2354 = vunpack.c.l.b16 %v2341
    %v2355 = vunpack.c.l.b16 %v2342
    %v2356 = vunpack.c.l.b16 %v2343
    %v2357 = vunpack.c.l.b16 %v2344
    %v2358 = vpack.c.b16 %v2355, %v2354
    %v2359 = vpack.c.b16 %v2357, %v2356
    %v2363 = vsel %vm142, %v2340, 0
    %2365 = vmatprep.subr.bf16.mxu0 0
    %2366 = vmatpush1.bf16.msra.mxu0 0
    %2367 = vmatprep.subr.bf16.mxu0 0
    %2368 = vmatpush1.bf16.msra.mxu0 0
    %2369 = vmatprep.subr.bf16.mxu0 0
    %2370 = vmatpush1.bf16.msra.mxu0 0
    %2371 = vmatprep.subr.bf16.mxu0 0
    %2372 = vmatpush1.bf16.msra.mxu0 0
    %2373 = vmatprep.subr.bf16.mxu0 0
    %2374 = vmatpush1.bf16.msra.mxu0 0
    %2375 = vmatprep.subr.bf16.mxu0 0
    %2376 = vmatpush1.bf16.msra.mxu0 0
    %2377 = vmatprep.subr.bf16.mxu0 0
    %2378 = vmatpush1.bf16.msra.mxu0 %v2359
    %2379 = vmatprep.subr.bf16.mxu0 0
    %2380 = vmatpush1.bf16.msra.mxu0 %v2358
    %2381 = vmatprep.subr.bf16.mxu0 0
    %2382 = vmatpush2.bf16.msra.mxu0 0
    %2383 = vmatprep.subr.bf16.mxu0 0
    %2384 = vmatpush2.bf16.msra.mxu0 0
    %2385 = vmatprep.subr.bf16.mxu0 0
    %2386 = vmatpush2.bf16.msra.mxu0 0
    %2387 = vmatprep.subr.bf16.mxu0 0
    %2388 = vmatpush2.bf16.msra.mxu0 0
    %2389 = vmatprep.subr.bf16.mxu0 0
    %2390 = vmatpush2.bf16.msra.mxu0 0
    %2391 = vmatprep.subr.bf16.mxu0 0
    %2392 = vmatpush2.bf16.msra.mxu0 0
    %2393 = vmatprep.subr.bf16.mxu0 0
    %2394 = vmatpush2.bf16.msra.mxu0 0
    %2395 = vmatprep.subr.bf16.mxu0 0
    %2396 = vmatpush2.bf16.msra.mxu0 0
    %2397 = vmatprep.mubr.bf16.mxu0 0
    %2398 = vmatmul.mubr.bf16.gmra.mxu0 %v2363
    %v2399 = vpop.f32.mrf.mxu0
    %v2400 = vadd.f32 %v2349, %v2399
    %v2401 = vpop.f32.mrf.mxu0
    %v2402 = vpop.f32.mrf.mxu0
    %v2403 = vadd.f32 %v2349, %v2402
    %v2404 = vpop.f32.mrf.mxu0
    %2405 = vdwg.mxu0
    %v2406 = vmul.f32 %v2400, 0.5
    %v2407 = vmul.f32 %v2403, 0.5
    %v2408 = vmul.f32 %v2400, 0.044715
    %v2409 = vmul.f32 %v2403, 0.044715
    %v2410 = vmul.f32 %v2408, %v2400
    %v2411 = vmul.f32 %v2409, %v2403
    %v2412 = vmul.f32 %v2410, %v2400
    %v2413 = vmul.f32 %v2411, %v2403
    %v2414 = vadd.f32 %v2400, %v2412
    %v2415 = vadd.f32 %v2403, %v2413
    %v2416 = vmul.f32 %v2414, 0.7978846
    %v2417 = vmul.f32 %v2415, 0.7978846
    %v2418 = vtanh.pop %v2416
    %v2419 = vtanh.pop %v2417
    %v2420 = vadd.f32 %v2418, 1.0
    %v2421 = vadd.f32 %v2419, 1.0
    %v2422 = vmul.f32 %v2406, %v2420
    %v2423 = vmul.f32 %v2407, %v2421
    %v2424 = vpack.c.bf16 %v2423, %v2422
    %v2425 = vld [vmem:[#allocation2 + $0x160] sm:$0xf]
    %v2426 = vld [vmem:[#allocation2 + $0x164] sm:$0xf]
    %v2427 = vld [vmem:[#allocation2 + $0x168] sm:$0xf]
    %v2428 = vld [vmem:[#allocation2 + $0x16c] sm:$0xf]
    %v2429 = vld [vmem:[#allocation2 + $0x170] sm:$0xf]
    %v2430 = vld [vmem:[#allocation2 + $0x174] sm:$0xf]
    %v2431 = vld [vmem:[#allocation2 + $0x178] sm:$0xf]
    %v2432 = vld [vmem:[#allocation2 + $0x17c] sm:$0xf]
    %v2433 = vld [vmem:[#allocation2 + $0x180] sm:$0xf]
    %v2434 = vld [vmem:[#allocation2 + $0x184] sm:$0xf]
    %v2435 = vld [vmem:[#allocation2 + $0x188] sm:$0xf]
    %v2436 = vld [vmem:[#allocation2 + $0x18c] sm:$0xf]
    %v2437 = vld [vmem:[#allocation2 + $0x190] sm:$0xf]
    %v2438 = vld [vmem:[#allocation2 + $0x194] sm:$0xf]
    %v2439 = vld [vmem:[#allocation2 + $0x198] sm:$0xf]
    %v2440 = vld [vmem:[#allocation2 + $0x19c] sm:$0xf]
    %v2441 = vld [vmem:[#allocation4 + $0x34] sm:$0x1]
    %v2442 = vlaneseq
    %v2443 = vshrl.u32 %v2442, 7
    %v2444 = vsub.s32 0, %v2443
    %v2445 = vrot.slane %v2441, %v2444
    %v2462 = vunpack.c.l.b16 %v2425
    %v2463 = vunpack.c.l.b16 %v2426
    %v2464 = vunpack.c.l.b16 %v2427
    %v2465 = vunpack.c.l.b16 %v2428
    %v2466 = vunpack.c.l.b16 %v2429
    %v2467 = vunpack.c.l.b16 %v2430
    %v2468 = vunpack.c.l.b16 %v2431
    %v2469 = vunpack.c.l.b16 %v2432
    %v2470 = vunpack.c.l.b16 %v2433
    %v2471 = vunpack.c.l.b16 %v2434
    %v2472 = vunpack.c.l.b16 %v2435
    %v2473 = vunpack.c.l.b16 %v2436
    %v2474 = vunpack.c.l.b16 %v2437
    %v2475 = vunpack.c.l.b16 %v2438
    %v2476 = vunpack.c.l.b16 %v2439
    %v2477 = vunpack.c.l.b16 %v2440
    %v2478 = vpack.c.b16 %v2463, %v2462
    %v2479 = vpack.c.b16 %v2465, %v2464
    %v2480 = vpack.c.b16 %v2467, %v2466
    %v2481 = vpack.c.b16 %v2469, %v2468
    %v2482 = vpack.c.b16 %v2471, %v2470
    %v2483 = vpack.c.b16 %v2473, %v2472
    %v2484 = vpack.c.b16 %v2475, %v2474
    %v2485 = vpack.c.b16 %v2477, %v2476
    %2494 = vmatprep.subr.bf16.mxu0 0
    %2495 = vmatpush1.bf16.msra.mxu0 %v2485
    %2496 = vmatprep.subr.bf16.mxu0 0
    %2497 = vmatpush1.bf16.msra.mxu0 %v2484
    %2498 = vmatprep.subr.bf16.mxu0 0
    %2499 = vmatpush1.bf16.msra.mxu0 %v2483
    %2500 = vmatprep.subr.bf16.mxu0 0
    %2501 = vmatpush1.bf16.msra.mxu0 %v2482
    %2502 = vmatprep.subr.bf16.mxu0 0
    %2503 = vmatpush1.bf16.msra.mxu0 %v2481
    %2504 = vmatprep.subr.bf16.mxu0 0
    %2505 = vmatpush1.bf16.msra.mxu0 %v2480
    %2506 = vmatprep.subr.bf16.mxu0 0
    %2507 = vmatpush1.bf16.msra.mxu0 %v2479
    %2508 = vmatprep.subr.bf16.mxu0 0
    %2509 = vmatpush1.bf16.msra.mxu0 %v2478
    %2510 = vmatprep.subr.bf16.mxu0 0
    %2511 = vmatpush2.bf16.msra.mxu0 0
    %2512 = vmatprep.subr.bf16.mxu0 0
    %2513 = vmatpush2.bf16.msra.mxu0 0
    %2514 = vmatprep.subr.bf16.mxu0 0
    %2515 = vmatpush2.bf16.msra.mxu0 0
    %2516 = vmatprep.subr.bf16.mxu0 0
    %2517 = vmatpush2.bf16.msra.mxu0 0
    %2518 = vmatprep.subr.bf16.mxu0 0
    %2519 = vmatpush2.bf16.msra.mxu0 0
    %2520 = vmatprep.subr.bf16.mxu0 0
    %2521 = vmatpush2.bf16.msra.mxu0 0
    %2522 = vmatprep.subr.bf16.mxu0 0
    %2523 = vmatpush2.bf16.msra.mxu0 0
    %2524 = vmatprep.subr.bf16.mxu0 0
    %2525 = vmatpush2.bf16.msra.mxu0 0
    %2526 = vmatprep.mubr.bf16.mxu0 0
    %2527 = vmatmul.mubr.bf16.gmra.mxu0 %v2424
    %v2528 = vpop.f32.mrf.mxu0
    %v2529 = vadd.f32 %v2445, %v2528
    %v2530 = vpop.f32.mrf.mxu0
    %v2531 = vpop.f32.mrf.mxu0
    %v2532 = vadd.f32 %v2445, %v2531
    %v2533 = vpop.f32.mrf.mxu0
    %2534 = vdwg.mxu0
    %v2535 = vadd.f32 %v2338, %v2529
    %v2536 = vadd.f32 %v2339, %v2532
    %v2537 = vld [vmem:[#allocation4 + $0x38] sm:$0x1]
    %v2538 = vld [vmem:[#allocation4 + $0x39] sm:$0x1]
    %v2539 = vsel %vm142, %v2535, 0.0
    %2540 = vadd.xlane.f32.xlu0 %v2539
    %v2541 = vpop.xlane.xlu0 %2540
    %v2542 = vsel %vm142, %v2536, 0.0
    %2543 = vadd.xlane.f32.xlu0 %v2542
    %v2544 = vpop.xlane.xlu0 %2543
    %v2545 = vmul.f32 %v2541, %v149
    %v2546 = vmul.f32 %v2544, %v149
    %v2547 = vsub.f32 %v2535, %v2545
    %v2548 = vsub.f32 %v2536, %v2546
    %v2549 = vmul.f32 %v2547, %v2547
    %v2550 = vmul.f32 %v2548, %v2548
    %v2551 = vsel %vm142, %v2549, 0.0
    %2552 = vadd.xlane.f32.xlu0 %v2551
    %v2553 = vpop.xlane.xlu0 %2552
    %v2554 = vsel %vm142, %v2550, 0.0
    %2555 = vadd.xlane.f32.xlu0 %v2554
    %v2556 = vpop.xlane.xlu0 %2555
    %v2557 = vmul.f32 %v2553, %v149
    %v2558 = vmul.f32 %v2556, %v149
    %v2559 = vadd.f32 %v2557, 1e-05
    %v2560 = vadd.f32 %v2558, 1e-05
    %v2561 = vrsqrt.pop %v2559
    %v2562 = vrsqrt.pop %v2560
    %v2563 = vmul.f32 %v2547, %v2561
    %v2564 = vmul.f32 %v2548, %v2562
    %v2565 = vlaneseq
    %v2566 = vshrl.u32 %v2565, 7
    %v2567 = vsub.s32 0, %v2566
    %v2568 = vrot.slane %v2537, %v2567
    %v2569 = vmul.f32 %v2563, %v2568
    %v2570 = vmul.f32 %v2564, %v2568
    %v2571 = vlaneseq
    %v2572 = vshrl.u32 %v2571, 7
    %v2573 = vsub.s32 0, %v2572
    %v2574 = vrot.slane %v2538, %v2573
    %v2575 = vadd.f32 %v2569, %v2574
    %v2576 = vadd.f32 %v2570, %v2574
    %v2577 = vpack.c.bf16 %v2576, %v2575
    %v2578 = vld [vmem:[#allocation2 + $0x1a0] sm:$0xf]
    %v2579 = vld [vmem:[#allocation2 + $0x1a4] sm:$0xf]
    %v2580 = vld [vmem:[#allocation2 + $0x1a8] sm:$0xf]
    %v2581 = vld [vmem:[#allocation2 + $0x1ac] sm:$0xf]
    %v2582 = vld [vmem:[#allocation4 + $0x3a] sm:$0x1]
    %v2583 = vlaneseq
    %v2584 = vshrl.u32 %v2583, 7
    %v2585 = vsub.s32 0, %v2584
    %v2586 = vrot.slane %v2582, %v2585
    %v2591 = vunpack.c.l.b16 %v2578
    %v2592 = vunpack.c.l.b16 %v2579
    %v2593 = vunpack.c.l.b16 %v2580
    %v2594 = vunpack.c.l.b16 %v2581
    %v2595 = vpack.c.b16 %v2592, %v2591
    %v2596 = vpack.c.b16 %v2594, %v2593
    %v2600 = vsel %vm142, %v2577, 0
    %2602 = vmatprep.subr.bf16.mxu0 0
    %2603 = vmatpush1.bf16.msra.mxu0 0
    %2604 = vmatprep.subr.bf16.mxu0 0
    %2605 = vmatpush1.bf16.msra.mxu0 0
    %2606 = vmatprep.subr.bf16.mxu0 0
    %2607 = vmatpush1.bf16.msra.mxu0 0
    %2608 = vmatprep.subr.bf16.mxu0 0
    %2609 = vmatpush1.bf16.msra.mxu0 0
    %2610 = vmatprep.subr.bf16.mxu0 0
    %2611 = vmatpush1.bf16.msra.mxu0 0
    %2612 = vmatprep.subr.bf16.mxu0 0
    %2613 = vmatpush1.bf16.msra.mxu0 0
    %2614 = vmatprep.subr.bf16.mxu0 0
    %2615 = vmatpush1.bf16.msra.mxu0 %v2596
    %2616 = vmatprep.subr.bf16.mxu0 0
    %2617 = vmatpush1.bf16.msra.mxu0 %v2595
    %2618 = vmatprep.subr.bf16.mxu0 0
    %2619 = vmatpush2.bf16.msra.mxu0 0
    %2620 = vmatprep.subr.bf16.mxu0 0
    %2621 = vmatpush2.bf16.msra.mxu0 0
    %2622 = vmatprep.subr.bf16.mxu0 0
    %2623 = vmatpush2.bf16.msra.mxu0 0
    %2624 = vmatprep.subr.bf16.mxu0 0
    %2625 = vmatpush2.bf16.msra.mxu0 0
    %2626 = vmatprep.subr.bf16.mxu0 0
    %2627 = vmatpush2.bf16.msra.mxu0 0
    %2628 = vmatprep.subr.bf16.mxu0 0
    %2629 = vmatpush2.bf16.msra.mxu0 0
    %2630 = vmatprep.subr.bf16.mxu0 0
    %2631 = vmatpush2.bf16.msra.mxu0 0
    %2632 = vmatprep.subr.bf16.mxu0 0
    %2633 = vmatpush2.bf16.msra.mxu0 0
    %2634 = vmatprep.mubr.bf16.mxu0 0
    %2635 = vmatmul.mubr.bf16.gmra.mxu0 %v2600
    %v2636 = vpop.f32.mrf.mxu0
    %v2637 = vadd.f32 %v2586, %v2636
    %v2638 = vpop.f32.mrf.mxu0
    %v2639 = vpop.f32.mrf.mxu0
    %v2640 = vadd.f32 %v2586, %v2639
    %v2641 = vpop.f32.mrf.mxu0
    %2642 = vdwg.mxu0
    %2643 = vst [vmem:[%s3] sm:$0xff] %v2637
    %2644 = vst [vmem:[%s3 + $0x8] sm:$0xff] %v2640
    // Predicated region
    $region22: #{transformer_forward.1} parent=1 // pred_check
      _
    $region23: #{transformer_forward.1} parent=1 // pred_check_branch
      %2646 = sbr.rel (0) target = $region25
    $region24: #{transformer_forward.1} parent=1 // pred_region
      _
    $region25: #{transformer_forward.1} parent=1 // pred_fallthru
      _
    // Predicated region
    $region26: #{transformer_forward.1} parent=1 // pred_check
      _
    $region27: #{transformer_forward.1} parent=1 // pred_check_branch
      %2648 = sbr.rel (0) target = $region29
    $region28: #{transformer_forward.1} parent=1 // pred_region
      _
    $region29: #{transformer_forward.1} parent=1 // pred_fallthru
      _
    %2649 = vsyncpa [#allocation3], 1
    %2650 = vsyncpa [#allocation5], 1

</llo_original>
